<compile_context>
chip_gen: v7x
topology: tpu7x:2x2x1
jax: 0.10.0
libtpu: 0.0.40
codegen_flags: <defaults>
</compile_context>

<pallas_src>
import functools

import numpy as np
import jax
import jax.numpy as jnp
from jax import lax
from jax.experimental import pallas as pl
from jax.experimental.pallas import tpu as pltpu

BN_EPS = 1e-5


def _out_size(n, ksize, stride, pad):
    return (n + 2 * pad - ksize) // stride + 1


def _build_shift_matrix(t_K, t_h, t_w, s_h, s_w, ksize, stride, pad):
    """Static 0/1 selection matrix implementing the depthwise-conv taps.

    Returns S of shape (ksize*ksize*L_out, N_in) such that for input tokens
    x (N_in, C) the slab (S @ x) stacked per tap gives, for tap t = di*ks+dj,
    the input pixel feeding output token p (zero rows where the tap falls in
    the zero padding or crosses an image boundary).  Token layout matches the
    module: t_K template images (row-major) followed by the search image.
    """
    n_t = t_K * t_h * t_w
    N = n_t + s_h * s_w
    oth, otw = _out_size(t_h, ksize, stride, pad), _out_size(t_w, ksize, stride, pad)
    osh, osw = _out_size(s_h, ksize, stride, pad), _out_size(s_w, ksize, stride, pad)
    L = t_K * oth * otw + osh * osw
    n_taps = ksize * ksize
    S = np.zeros((n_taps, L, N), np.float32)

    def fill(h, w, oh, ow, in_base, out_base):
        for oi in range(oh):
            for oj in range(ow):
                for di in range(ksize):
                    for dj in range(ksize):
                        ii = oi * stride + di - pad
                        jj = oj * stride + dj - pad
                        if 0 <= ii < h and 0 <= jj < w:
                            S[di * ksize + dj,
                              out_base + oi * ow + oj,
                              in_base + ii * w + jj] = 1.0

    for k in range(t_K):
        fill(t_h, t_w, oth, otw, k * t_h * t_w, k * oth * otw)
    fill(s_h, s_w, osh, osw, n_t, t_K * oth * otw)
    return S.reshape(n_taps * L, N), L


# ---------------------------------------------------------------------------
# Fused Pallas kernel (one grid step per batch element)
# ---------------------------------------------------------------------------

def _fused_attention_kernel(
    x_ref, sq_ref, skv_ref, wc_ref, bc_ref, wqkv_ref, wo_ref, bo_ref,  # inputs
    o_ref,                                                             # output
    *, L, T, l_mt, t_mt, num_heads, dim_out, n_taps, scale,
):
    C = x_ref.shape[-1]
    head_dim = dim_out // num_heads

    xb = x_ref[0]                                            # (N, C) f32 tokens

    # ---- depthwise q/k/v conv + folded BN via shift-matrix matmuls (MXU) --
    shifted_q = jnp.dot(sq_ref[...], xb,
                        preferred_element_type=jnp.float32)   # (n_taps*L, C)
    shifted_kv = jnp.dot(skv_ref[...], xb,
                         preferred_element_type=jnp.float32)  # (n_taps*T, C)

    wc = wc_ref[...]                                          # (3*n_taps, C)
    bc = bc_ref[...]                                          # (3, C)

    def conv_accum(shifted, rows, branch):
        base = branch * n_taps
        acc = shifted[0:rows, :] * wc[base:base + 1, :]
        for t in range(1, n_taps):
            acc = acc + shifted[t * rows:(t + 1) * rows, :] * wc[base + t:base + t + 1, :]
        return acc + bc[branch:branch + 1, :]

    q_tok = conv_accum(shifted_q, L, 0)                       # (L, C)
    k_tok = conv_accum(shifted_kv, T, 1)                      # (T, C)
    v_tok = conv_accum(shifted_kv, T, 2)                      # (T, C)

    # ---- q/k/v linear projections ------------------------------------------
    qm = jnp.dot(q_tok, wqkv_ref[0:C, :],
                 preferred_element_type=jnp.float32)          # (L, D)
    km = jnp.dot(k_tok, wqkv_ref[C:2 * C, :],
                 preferred_element_type=jnp.float32)          # (T, D)
    vm = jnp.dot(v_tok, wqkv_ref[2 * C:3 * C, :],
                 preferred_element_type=jnp.float32)          # (T, D)

    # ---- asymmetric mixed attention: two static score blocks per head -----
    def softmax_rows(s):
        s = s - jnp.max(s, axis=-1, keepdims=True)
        p = jnp.exp(s)
        return p / jnp.sum(p, axis=-1, keepdims=True)

    head_outs = []
    for hh in range(num_heads):
        c0 = hh * head_dim
        q_h = qm[:, c0:c0 + head_dim]                         # (L, d)
        k_h = km[:, c0:c0 + head_dim]                         # (T, d)
        v_h = vm[:, c0:c0 + head_dim]                         # (T, d)

        # template queries attend only to template kv
        s_mt = lax.dot_general(q_h[:l_mt], k_h[:t_mt],
                               (((1,), (1,)), ((), ())),
                               preferred_element_type=jnp.float32) * scale
        o_mt = jnp.dot(softmax_rows(s_mt), v_h[:t_mt],
                       preferred_element_type=jnp.float32)    # (l_mt, d)

        # search queries attend to every kv token
        s_s = lax.dot_general(q_h[l_mt:], k_h,
                              (((1,), (1,)), ((), ())),
                              preferred_element_type=jnp.float32) * scale
        o_s = jnp.dot(softmax_rows(s_s), v_h,
                      preferred_element_type=jnp.float32)     # (L-l_mt, d)

        head_outs.append(jnp.concatenate([o_mt, o_s], axis=0))

    attn_out = jnp.concatenate(head_outs, axis=1)             # (L, D)

    # ---- output projection --------------------------------------------------
    out = jnp.dot(attn_out, wo_ref[...],
                  preferred_element_type=jnp.float32) + bo_ref[...]
    o_ref[0] = out.astype(o_ref.dtype)


# ---------------------------------------------------------------------------
# Wrapper
# ---------------------------------------------------------------------------

def attention_forward(params, x, *, t_K, t_h, t_w, s_h, s_w, num_heads, dim_out,
                      stride_q=1, stride_kv=2, padding_q=1, padding_kv=1):
    B, N, C = x.shape
    n_t = t_K * t_h * t_w
    assert N == n_t + s_h * s_w

    # Fold eval-mode BatchNorm into the depthwise conv weights / bias.
    def fold(p):
        sc = p['bn_w'] / jnp.sqrt(p['bn_var'] + BN_EPS)
        return p['w'] * sc, p['bn_b'] - p['bn_mean'] * sc

    wq, bq = fold(params['conv_q'])
    wk, bk = fold(params['conv_k'])
    wv, bv = fold(params['conv_v'])
    ksize = wq.shape[0]
    n_taps = ksize * ksize

    w_conv = jnp.concatenate([wq.reshape(n_taps, C), wk.reshape(n_taps, C),
                              wv.reshape(n_taps, C)], axis=0)        # (3*9, C)
    b_conv = jnp.stack([bq, bk, bv], axis=0)                         # (3, C)
    w_qkv = jnp.concatenate([params['proj_q_w'], params['proj_k_w'],
                             params['proj_v_w']], axis=0)            # (3*C, D)

    # Static shift/selection matrices (trace-time constants).
    sq_np, L = _build_shift_matrix(t_K, t_h, t_w, s_h, s_w, ksize,
                                   stride_q, padding_q)
    skv_np, T = _build_shift_matrix(t_K, t_h, t_w, s_h, s_w, ksize,
                                    stride_kv, padding_kv)
    sq, skv = jnp.asarray(sq_np), jnp.asarray(skv_np)

    q_th = _out_size(t_h, ksize, stride_q, padding_q)
    q_tw = _out_size(t_w, ksize, stride_q, padding_q)
    k_th = _out_size(t_h, ksize, stride_kv, padding_kv)
    k_tw = _out_size(t_w, ksize, stride_kv, padding_kv)
    l_mt = t_K * q_th * q_tw
    t_mt = t_K * k_th * k_tw
    # Consistency with the module's hard-coded attention splits.
    assert l_mt == t_K * t_h * t_w
    assert t_mt == ((t_h + 1) // 2) ** 2 * t_K

    kern = functools.partial(
        _fused_attention_kernel,
        L=L, T=T, l_mt=l_mt, t_mt=t_mt, num_heads=num_heads, dim_out=dim_out,
        n_taps=n_taps, scale=dim_out ** (-0.5))

    return pl.pallas_call(
        kern,
        out_shape=jax.ShapeDtypeStruct((B, L, dim_out), x.dtype),
        grid=(B,),
        in_specs=[
            pl.BlockSpec((1, N, C), lambda b: (b, 0, 0)),             # x tokens
            pl.BlockSpec((n_taps * L, N), lambda b: (0, 0)),          # S_q
            pl.BlockSpec((n_taps * T, N), lambda b: (0, 0)),          # S_kv
            pl.BlockSpec((3 * n_taps, C), lambda b: (0, 0)),          # conv w
            pl.BlockSpec((3, C), lambda b: (0, 0)),                   # conv b
            pl.BlockSpec((3 * C, dim_out), lambda b: (0, 0)),         # qkv proj
            pl.BlockSpec((dim_out, dim_out), lambda b: (0, 0)),       # out proj
            pl.BlockSpec((1, dim_out), lambda b: (0, 0)),             # out bias
        ],
        out_specs=pl.BlockSpec((1, L, dim_out), lambda b: (b, 0, 0)),
        compiler_params=pltpu.CompilerParams(
            dimension_semantics=("parallel",)),
    )(x, sq, skv, w_conv, b_conv, w_qkv, params['proj_w'],
      params['proj_b'].reshape(1, dim_out))


# ---------------------------------------------------------------------------
# Parameters (deterministic, synthetic)
# ---------------------------------------------------------------------------

def init_params(key, dim_in, dim_out, kernel_size=3):
    ks = iter(jax.random.split(key, 24))

    def conv_bn():
        return dict(
            w=0.1 * jax.random.normal(next(ks), (kernel_size, kernel_size, dim_in), jnp.float32),
            bn_w=jax.random.uniform(next(ks), (dim_in,), jnp.float32, 0.8, 1.2),
            bn_b=0.1 * jax.random.normal(next(ks), (dim_in,), jnp.float32),
            bn_mean=0.1 * jax.random.normal(next(ks), (dim_in,), jnp.float32),
            bn_var=jax.random.uniform(next(ks), (dim_in,), jnp.float32, 0.5, 1.5),
        )

    def lin_w():
        return 0.05 * jax.random.normal(next(ks), (dim_in, dim_out), jnp.float32)

    return dict(
        conv_q=conv_bn(), conv_k=conv_bn(), conv_v=conv_bn(),
        proj_q_w=lin_w(), proj_k_w=lin_w(), proj_v_w=lin_w(),
        proj_q_b=jnp.zeros((dim_out,), jnp.float32),   # qkv_bias=False
        proj_k_b=jnp.zeros((dim_out,), jnp.float32),
        proj_v_b=jnp.zeros((dim_out,), jnp.float32),
        proj_w=0.05 * jax.random.normal(next(ks), (dim_out, dim_out), jnp.float32),
        proj_b=0.05 * jax.random.normal(next(ks), (dim_out,), jnp.float32),
    )


# ---------------------------------------------------------------------------
# Pure-JAX reference (mirrors the PyTorch forward, eval-mode BN, dropout p=0)
# ---------------------------------------------------------------------------

def reference_forward(params, x, *, t_K, t_h, t_w, s_h, s_w, num_heads, dim_out,
                      stride_q=1, stride_kv=2, padding_q=1, padding_kv=1):
    B, N, C = x.shape
    n_t = t_K * t_h * t_w
    templates = x[:, :n_t, :].reshape(B * t_K, t_h, t_w, C)
    search = x[:, n_t:, :].reshape(B, s_h, s_w, C)

    def dwconv_ref(xi, p, stride, padding):
        w = p['w'].reshape(p['w'].shape[0], p['w'].shape[1], 1, C)
        y = lax.conv_general_dilated(
            xi, w, window_strides=(stride, stride),
            padding=[(padding, padding), (padding, padding)],
            dimension_numbers=('NHWC', 'HWIO', 'NHWC'),
            feature_group_count=C, precision=lax.Precision.HIGHEST)
        scale = p['bn_w'] / jnp.sqrt(p['bn_var'] + BN_EPS)
        bias = p['bn_b'] - p['bn_mean'] * scale
        return y * scale + bias

    def branch(p, stride, padding):
        t = dwconv_ref(templates, p, stride, padding).reshape(B, -1, C)
        s = dwconv_ref(search, p, stride, padding).reshape(B, -1, C)
        return jnp.concatenate([t, s], axis=1)

    q = branch(params['conv_q'], stride_q, padding_q)
    k = branch(params['conv_k'], stride_kv, padding_kv)
    v = branch(params['conv_v'], stride_kv, padding_kv)

    head_dim = dim_out // num_heads

    def heads(t, w, b):
        y = jnp.einsum('btc,cd->btd', t, w, precision=lax.Precision.HIGHEST) + b
        return y.reshape(B, -1, num_heads, head_dim).transpose(0, 2, 1, 3)

    qh, kh, vh = (heads(q, params['proj_q_w'], params['proj_q_b']),
                  heads(k, params['proj_k_w'], params['proj_k_b']),
                  heads(v, params['proj_v_w'], params['proj_v_b']))

    scale = dim_out ** (-0.5)
    l_mt = t_h * t_w * t_K
    t_mt = ((t_h + 1) // 2) ** 2 * t_K
    q_mt, q_s = qh[:, :, :l_mt], qh[:, :, l_mt:]
    k_mt, v_mt = kh[:, :, :t_mt], vh[:, :, :t_mt]

    def attn(qq, kk, vv):
        s = jnp.einsum('bhlk,bhtk->bhlt', qq, kk,
                       precision=lax.Precision.HIGHEST) * scale
        p = jax.nn.softmax(s, axis=-1)
        return jnp.einsum('bhlt,bhtv->bhlv', p, vv,
                          precision=lax.Precision.HIGHEST)

    x_mt = attn(q_mt, k_mt, v_mt).transpose(0, 2, 1, 3).reshape(B, -1, dim_out)
    x_s = attn(q_s, kh, vh).transpose(0, 2, 1, 3).reshape(B, -1, dim_out)
    y = jnp.concatenate([x_mt, x_s], axis=1)
    return jnp.einsum('btc,cd->btd', y, params['proj_w'],
                      precision=lax.Precision.HIGHEST) + params['proj_b']


# ---------------------------------------------------------------------------

if __name__ == "__main__":
    B = 2
    dim_in = dim_out = 32
    num_heads = 4
    t_K, t_h, t_w = 2, 4, 4       # templates: 2 of size 4x4
    s_h = s_w = 8                 # search region: 8x8
    N = t_K * t_h * t_w + s_h * s_w   # 96 tokens

    key = jax.random.PRNGKey(0)
    k_par, k_x = jax.random.split(key)
    params = init_params(k_par, dim_in, dim_out)
    x = jax.random.normal(k_x, (B, N, dim_in), jnp.float32)

    cfg = dict(t_K=t_K, t_h=t_h, t_w=t_w, s_h=s_h, s_w=s_w,
               num_heads=num_heads, dim_out=dim_out)

    fwd = jax.jit(lambda p, xx: attention_forward(p, xx, **cfg))
    out = jax.block_until_ready(fwd(params, x))
    ref = jax.block_until_ready(reference_forward(params, x, **cfg))

    assert out.shape == (B, N, dim_out), out.shape
    assert bool(jnp.all(jnp.isfinite(out)))
    assert bool(jnp.allclose(out, ref, rtol=5e-2, atol=5e-2)), \
        float(jnp.max(jnp.abs(out - ref)))
    print("KERNEL_OK")
</pallas_src>

<mosaic_0001>
module attributes {stable_mosaic.version = 11 : i64} {
  func.func @_fused_attention_kernel(%arg0: i32, %arg1: memref<1x96x32xf32, #tpu.memory_space<vmem>>, %arg2: memref<864x96xf32, #tpu.memory_space<vmem>>, %arg3: memref<216x96xf32, #tpu.memory_space<vmem>>, %arg4: memref<27x32xf32, #tpu.memory_space<vmem>>, %arg5: memref<3x32xf32, #tpu.memory_space<vmem>>, %arg6: memref<96x32xf32, #tpu.memory_space<vmem>>, %arg7: memref<32x32xf32, #tpu.memory_space<vmem>>, %arg8: memref<1x32xf32, #tpu.memory_space<vmem>>, %arg9: memref<1x96x32xf32, #tpu.memory_space<vmem>>) attributes {dimension_semantics = [#tpu.dimension_semantics<parallel>], iteration_bounds = array<i64: 2>, scalar_prefetch = 0 : i64, scratch_operands = 0 : i64, tpu.core_type = #tpu.core_type<tc>, window_params = [{transform_indices = @transform_0, window_bounds = array<i64: 1, 96, 32>}, {pipeline_mode = #tpu.pipeline_mode<synchronous>, transform_indices = @transform_1, window_bounds = array<i64: 864, 96>}, {pipeline_mode = #tpu.pipeline_mode<synchronous>, transform_indices = @transform_2, window_bounds = array<i64: 216, 96>}, {pipeline_mode = #tpu.pipeline_mode<synchronous>, transform_indices = @transform_3, window_bounds = array<i64: 27, 32>}, {pipeline_mode = #tpu.pipeline_mode<synchronous>, transform_indices = @transform_4, window_bounds = array<i64: 3, 32>}, {pipeline_mode = #tpu.pipeline_mode<synchronous>, transform_indices = @transform_5, window_bounds = array<i64: 96, 32>}, {pipeline_mode = #tpu.pipeline_mode<synchronous>, transform_indices = @transform_6, window_bounds = array<i64: 32, 32>}, {pipeline_mode = #tpu.pipeline_mode<synchronous>, transform_indices = @transform_7, window_bounds = array<i64: 1, 32>}, {transform_indices = @transform_8, window_bounds = array<i64: 1, 96, 32>}]} {
    %c0 = arith.constant 0 : index
    %c0_0 = arith.constant 0 : index
    %c0_1 = arith.constant 0 : index
    %0 = vector.load %arg1[%c0, %c0_0, %c0_1] : memref<1x96x32xf32, #tpu.memory_space<vmem>>, vector<1x96x32xf32>
    %1 = vector.shape_cast %0 : vector<1x96x32xf32> to vector<96x32xf32>
    %c0_2 = arith.constant 0 : index
    %c0_3 = arith.constant 0 : index
    %2 = vector.load %arg2[%c0_2, %c0_3] : memref<864x96xf32, #tpu.memory_space<vmem>>, vector<864x96xf32>
    %cst = arith.constant dense<0.000000e+00> : vector<864x32xf32>
    %3 = tpu.matmul %2, %1, %cst {dimension_numbers = #tpu.dot_dimension_numbers<[1], [0], [0], [1], [0, 0, 1, 1], [], []>} : vector<864x96xf32>, vector<96x32xf32>, vector<864x32xf32> -> vector<864x32xf32>
    %c0_4 = arith.constant 0 : index
    %c0_5 = arith.constant 0 : index
    %4 = vector.load %arg3[%c0_4, %c0_5] : memref<216x96xf32, #tpu.memory_space<vmem>>, vector<216x96xf32>
    %cst_6 = arith.constant dense<0.000000e+00> : vector<216x32xf32>
    %5 = tpu.matmul %4, %1, %cst_6 {dimension_numbers = #tpu.dot_dimension_numbers<[1], [0], [0], [1], [0, 0, 1, 1], [], []>} : vector<216x96xf32>, vector<96x32xf32>, vector<216x32xf32> -> vector<216x32xf32>
    %c0_7 = arith.constant 0 : index
    %c0_8 = arith.constant 0 : index
    %6 = vector.load %arg4[%c0_7, %c0_8] : memref<27x32xf32, #tpu.memory_space<vmem>>, vector<27x32xf32>
    %c0_9 = arith.constant 0 : index
    %c0_10 = arith.constant 0 : index
    %7 = vector.load %arg5[%c0_9, %c0_10] : memref<3x32xf32, #tpu.memory_space<vmem>>, vector<3x32xf32>
    %8 = vector.extract_strided_slice %3 {offsets = [0, 0], sizes = [96, 32], strides = [1, 1]} : vector<864x32xf32> to vector<96x32xf32>
    %9 = vector.extract_strided_slice %6 {offsets = [0, 0], sizes = [1, 32], strides = [1, 1]} : vector<27x32xf32> to vector<1x32xf32>
    %10 = vector.broadcast %9 : vector<1x32xf32> to vector<96x32xf32>
    %11 = arith.mulf %8, %10 : vector<96x32xf32>
    %12 = vector.extract_strided_slice %3 {offsets = [96, 0], sizes = [96, 32], strides = [1, 1]} : vector<864x32xf32> to vector<96x32xf32>
    %13 = vector.extract_strided_slice %6 {offsets = [1, 0], sizes = [1, 32], strides = [1, 1]} : vector<27x32xf32> to vector<1x32xf32>
    %14 = vector.broadcast %13 : vector<1x32xf32> to vector<96x32xf32>
    %15 = arith.mulf %12, %14 : vector<96x32xf32>
    %16 = arith.addf %11, %15 : vector<96x32xf32>
    %17 = vector.extract_strided_slice %3 {offsets = [192, 0], sizes = [96, 32], strides = [1, 1]} : vector<864x32xf32> to vector<96x32xf32>
    %18 = vector.extract_strided_slice %6 {offsets = [2, 0], sizes = [1, 32], strides = [1, 1]} : vector<27x32xf32> to vector<1x32xf32>
    %19 = vector.broadcast %18 : vector<1x32xf32> to vector<96x32xf32>
    %20 = arith.mulf %17, %19 : vector<96x32xf32>
    %21 = arith.addf %16, %20 : vector<96x32xf32>
    %22 = vector.extract_strided_slice %3 {offsets = [288, 0], sizes = [96, 32], strides = [1, 1]} : vector<864x32xf32> to vector<96x32xf32>
    %23 = vector.extract_strided_slice %6 {offsets = [3, 0], sizes = [1, 32], strides = [1, 1]} : vector<27x32xf32> to vector<1x32xf32>
    %24 = vector.broadcast %23 : vector<1x32xf32> to vector<96x32xf32>
    %25 = arith.mulf %22, %24 : vector<96x32xf32>
    %26 = arith.addf %21, %25 : vector<96x32xf32>
    %27 = vector.extract_strided_slice %3 {offsets = [384, 0], sizes = [96, 32], strides = [1, 1]} : vector<864x32xf32> to vector<96x32xf32>
    %28 = vector.extract_strided_slice %6 {offsets = [4, 0], sizes = [1, 32], strides = [1, 1]} : vector<27x32xf32> to vector<1x32xf32>
    %29 = vector.broadcast %28 : vector<1x32xf32> to vector<96x32xf32>
    %30 = arith.mulf %27, %29 : vector<96x32xf32>
    %31 = arith.addf %26, %30 : vector<96x32xf32>
    %32 = vector.extract_strided_slice %3 {offsets = [480, 0], sizes = [96, 32], strides = [1, 1]} : vector<864x32xf32> to vector<96x32xf32>
    %33 = vector.extract_strided_slice %6 {offsets = [5, 0], sizes = [1, 32], strides = [1, 1]} : vector<27x32xf32> to vector<1x32xf32>
    %34 = vector.broadcast %33 : vector<1x32xf32> to vector<96x32xf32>
    %35 = arith.mulf %32, %34 : vector<96x32xf32>
    %36 = arith.addf %31, %35 : vector<96x32xf32>
    %37 = vector.extract_strided_slice %3 {offsets = [576, 0], sizes = [96, 32], strides = [1, 1]} : vector<864x32xf32> to vector<96x32xf32>
    %38 = vector.extract_strided_slice %6 {offsets = [6, 0], sizes = [1, 32], strides = [1, 1]} : vector<27x32xf32> to vector<1x32xf32>
    %39 = vector.broadcast %38 : vector<1x32xf32> to vector<96x32xf32>
    %40 = arith.mulf %37, %39 : vector<96x32xf32>
    %41 = arith.addf %36, %40 : vector<96x32xf32>
    %42 = vector.extract_strided_slice %3 {offsets = [672, 0], sizes = [96, 32], strides = [1, 1]} : vector<864x32xf32> to vector<96x32xf32>
    %43 = vector.extract_strided_slice %6 {offsets = [7, 0], sizes = [1, 32], strides = [1, 1]} : vector<27x32xf32> to vector<1x32xf32>
    %44 = vector.broadcast %43 : vector<1x32xf32> to vector<96x32xf32>
    %45 = arith.mulf %42, %44 : vector<96x32xf32>
    %46 = arith.addf %41, %45 : vector<96x32xf32>
    %47 = vector.extract_strided_slice %3 {offsets = [768, 0], sizes = [96, 32], strides = [1, 1]} : vector<864x32xf32> to vector<96x32xf32>
    %48 = vector.extract_strided_slice %6 {offsets = [8, 0], sizes = [1, 32], strides = [1, 1]} : vector<27x32xf32> to vector<1x32xf32>
    %49 = vector.broadcast %48 : vector<1x32xf32> to vector<96x32xf32>
    %50 = arith.mulf %47, %49 : vector<96x32xf32>
    %51 = arith.addf %46, %50 : vector<96x32xf32>
    %52 = vector.extract_strided_slice %7 {offsets = [0, 0], sizes = [1, 32], strides = [1, 1]} : vector<3x32xf32> to vector<1x32xf32>
    %53 = vector.broadcast %52 : vector<1x32xf32> to vector<96x32xf32>
    %54 = arith.addf %51, %53 : vector<96x32xf32>
    %55 = vector.extract_strided_slice %5 {offsets = [0, 0], sizes = [24, 32], strides = [1, 1]} : vector<216x32xf32> to vector<24x32xf32>
    %56 = vector.extract_strided_slice %6 {offsets = [9, 0], sizes = [1, 32], strides = [1, 1]} : vector<27x32xf32> to vector<1x32xf32>
    %57 = vector.broadcast %56 : vector<1x32xf32> to vector<24x32xf32>
    %58 = arith.mulf %55, %57 : vector<24x32xf32>
    %59 = vector.extract_strided_slice %5 {offsets = [24, 0], sizes = [24, 32], strides = [1, 1]} : vector<216x32xf32> to vector<24x32xf32>
    %60 = vector.extract_strided_slice %6 {offsets = [10, 0], sizes = [1, 32], strides = [1, 1]} : vector<27x32xf32> to vector<1x32xf32>
    %61 = vector.broadcast %60 : vector<1x32xf32> to vector<24x32xf32>
    %62 = arith.mulf %59, %61 : vector<24x32xf32>
    %63 = arith.addf %58, %62 : vector<24x32xf32>
    %64 = vector.extract_strided_slice %5 {offsets = [48, 0], sizes = [24, 32], strides = [1, 1]} : vector<216x32xf32> to vector<24x32xf32>
    %65 = vector.extract_strided_slice %6 {offsets = [11, 0], sizes = [1, 32], strides = [1, 1]} : vector<27x32xf32> to vector<1x32xf32>
    %66 = vector.broadcast %65 : vector<1x32xf32> to vector<24x32xf32>
    %67 = arith.mulf %64, %66 : vector<24x32xf32>
    %68 = arith.addf %63, %67 : vector<24x32xf32>
    %69 = vector.extract_strided_slice %5 {offsets = [72, 0], sizes = [24, 32], strides = [1, 1]} : vector<216x32xf32> to vector<24x32xf32>
    %70 = vector.extract_strided_slice %6 {offsets = [12, 0], sizes = [1, 32], strides = [1, 1]} : vector<27x32xf32> to vector<1x32xf32>
    %71 = vector.broadcast %70 : vector<1x32xf32> to vector<24x32xf32>
    %72 = arith.mulf %69, %71 : vector<24x32xf32>
    %73 = arith.addf %68, %72 : vector<24x32xf32>
    %74 = vector.extract_strided_slice %5 {offsets = [96, 0], sizes = [24, 32], strides = [1, 1]} : vector<216x32xf32> to vector<24x32xf32>
    %75 = vector.extract_strided_slice %6 {offsets = [13, 0], sizes = [1, 32], strides = [1, 1]} : vector<27x32xf32> to vector<1x32xf32>
    %76 = vector.broadcast %75 : vector<1x32xf32> to vector<24x32xf32>
    %77 = arith.mulf %74, %76 : vector<24x32xf32>
    %78 = arith.addf %73, %77 : vector<24x32xf32>
    %79 = vector.extract_strided_slice %5 {offsets = [120, 0], sizes = [24, 32], strides = [1, 1]} : vector<216x32xf32> to vector<24x32xf32>
    %80 = vector.extract_strided_slice %6 {offsets = [14, 0], sizes = [1, 32], strides = [1, 1]} : vector<27x32xf32> to vector<1x32xf32>
    %81 = vector.broadcast %80 : vector<1x32xf32> to vector<24x32xf32>
    %82 = arith.mulf %79, %81 : vector<24x32xf32>
    %83 = arith.addf %78, %82 : vector<24x32xf32>
    %84 = vector.extract_strided_slice %5 {offsets = [144, 0], sizes = [24, 32], strides = [1, 1]} : vector<216x32xf32> to vector<24x32xf32>
    %85 = vector.extract_strided_slice %6 {offsets = [15, 0], sizes = [1, 32], strides = [1, 1]} : vector<27x32xf32> to vector<1x32xf32>
    %86 = vector.broadcast %85 : vector<1x32xf32> to vector<24x32xf32>
    %87 = arith.mulf %84, %86 : vector<24x32xf32>
    %88 = arith.addf %83, %87 : vector<24x32xf32>
    %89 = vector.extract_strided_slice %5 {offsets = [168, 0], sizes = [24, 32], strides = [1, 1]} : vector<216x32xf32> to vector<24x32xf32>
    %90 = vector.extract_strided_slice %6 {offsets = [16, 0], sizes = [1, 32], strides = [1, 1]} : vector<27x32xf32> to vector<1x32xf32>
    %91 = vector.broadcast %90 : vector<1x32xf32> to vector<24x32xf32>
    %92 = arith.mulf %89, %91 : vector<24x32xf32>
    %93 = arith.addf %88, %92 : vector<24x32xf32>
    %94 = vector.extract_strided_slice %5 {offsets = [192, 0], sizes = [24, 32], strides = [1, 1]} : vector<216x32xf32> to vector<24x32xf32>
    %95 = vector.extract_strided_slice %6 {offsets = [17, 0], sizes = [1, 32], strides = [1, 1]} : vector<27x32xf32> to vector<1x32xf32>
    %96 = vector.broadcast %95 : vector<1x32xf32> to vector<24x32xf32>
    %97 = arith.mulf %94, %96 : vector<24x32xf32>
    %98 = arith.addf %93, %97 : vector<24x32xf32>
    %99 = vector.extract_strided_slice %7 {offsets = [1, 0], sizes = [1, 32], strides = [1, 1]} : vector<3x32xf32> to vector<1x32xf32>
    %100 = vector.broadcast %99 : vector<1x32xf32> to vector<24x32xf32>
    %101 = arith.addf %98, %100 : vector<24x32xf32>
    %102 = vector.extract_strided_slice %5 {offsets = [0, 0], sizes = [24, 32], strides = [1, 1]} : vector<216x32xf32> to vector<24x32xf32>
    %103 = vector.extract_strided_slice %6 {offsets = [18, 0], sizes = [1, 32], strides = [1, 1]} : vector<27x32xf32> to vector<1x32xf32>
    %104 = vector.broadcast %103 : vector<1x32xf32> to vector<24x32xf32>
    %105 = arith.mulf %102, %104 : vector<24x32xf32>
    %106 = vector.extract_strided_slice %5 {offsets = [24, 0], sizes = [24, 32], strides = [1, 1]} : vector<216x32xf32> to vector<24x32xf32>
    %107 = vector.extract_strided_slice %6 {offsets = [19, 0], sizes = [1, 32], strides = [1, 1]} : vector<27x32xf32> to vector<1x32xf32>
    %108 = vector.broadcast %107 : vector<1x32xf32> to vector<24x32xf32>
    %109 = arith.mulf %106, %108 : vector<24x32xf32>
    %110 = arith.addf %105, %109 : vector<24x32xf32>
    %111 = vector.extract_strided_slice %5 {offsets = [48, 0], sizes = [24, 32], strides = [1, 1]} : vector<216x32xf32> to vector<24x32xf32>
    %112 = vector.extract_strided_slice %6 {offsets = [20, 0], sizes = [1, 32], strides = [1, 1]} : vector<27x32xf32> to vector<1x32xf32>
    %113 = vector.broadcast %112 : vector<1x32xf32> to vector<24x32xf32>
    %114 = arith.mulf %111, %113 : vector<24x32xf32>
    %115 = arith.addf %110, %114 : vector<24x32xf32>
    %116 = vector.extract_strided_slice %5 {offsets = [72, 0], sizes = [24, 32], strides = [1, 1]} : vector<216x32xf32> to vector<24x32xf32>
    %117 = vector.extract_strided_slice %6 {offsets = [21, 0], sizes = [1, 32], strides = [1, 1]} : vector<27x32xf32> to vector<1x32xf32>
    %118 = vector.broadcast %117 : vector<1x32xf32> to vector<24x32xf32>
    %119 = arith.mulf %116, %118 : vector<24x32xf32>
    %120 = arith.addf %115, %119 : vector<24x32xf32>
    %121 = vector.extract_strided_slice %5 {offsets = [96, 0], sizes = [24, 32], strides = [1, 1]} : vector<216x32xf32> to vector<24x32xf32>
    %122 = vector.extract_strided_slice %6 {offsets = [22, 0], sizes = [1, 32], strides = [1, 1]} : vector<27x32xf32> to vector<1x32xf32>
    %123 = vector.broadcast %122 : vector<1x32xf32> to vector<24x32xf32>
    %124 = arith.mulf %121, %123 : vector<24x32xf32>
    %125 = arith.addf %120, %124 : vector<24x32xf32>
    %126 = vector.extract_strided_slice %5 {offsets = [120, 0], sizes = [24, 32], strides = [1, 1]} : vector<216x32xf32> to vector<24x32xf32>
    %127 = vector.extract_strided_slice %6 {offsets = [23, 0], sizes = [1, 32], strides = [1, 1]} : vector<27x32xf32> to vector<1x32xf32>
    %128 = vector.broadcast %127 : vector<1x32xf32> to vector<24x32xf32>
    %129 = arith.mulf %126, %128 : vector<24x32xf32>
    %130 = arith.addf %125, %129 : vector<24x32xf32>
    %131 = vector.extract_strided_slice %5 {offsets = [144, 0], sizes = [24, 32], strides = [1, 1]} : vector<216x32xf32> to vector<24x32xf32>
    %132 = vector.extract_strided_slice %6 {offsets = [24, 0], sizes = [1, 32], strides = [1, 1]} : vector<27x32xf32> to vector<1x32xf32>
    %133 = vector.broadcast %132 : vector<1x32xf32> to vector<24x32xf32>
    %134 = arith.mulf %131, %133 : vector<24x32xf32>
    %135 = arith.addf %130, %134 : vector<24x32xf32>
    %136 = vector.extract_strided_slice %5 {offsets = [168, 0], sizes = [24, 32], strides = [1, 1]} : vector<216x32xf32> to vector<24x32xf32>
    %137 = vector.extract_strided_slice %6 {offsets = [25, 0], sizes = [1, 32], strides = [1, 1]} : vector<27x32xf32> to vector<1x32xf32>
    %138 = vector.broadcast %137 : vector<1x32xf32> to vector<24x32xf32>
    %139 = arith.mulf %136, %138 : vector<24x32xf32>
    %140 = arith.addf %135, %139 : vector<24x32xf32>
    %141 = vector.extract_strided_slice %5 {offsets = [192, 0], sizes = [24, 32], strides = [1, 1]} : vector<216x32xf32> to vector<24x32xf32>
    %142 = vector.extract_strided_slice %6 {offsets = [26, 0], sizes = [1, 32], strides = [1, 1]} : vector<27x32xf32> to vector<1x32xf32>
    %143 = vector.broadcast %142 : vector<1x32xf32> to vector<24x32xf32>
    %144 = arith.mulf %141, %143 : vector<24x32xf32>
    %145 = arith.addf %140, %144 : vector<24x32xf32>
    %146 = vector.extract_strided_slice %7 {offsets = [2, 0], sizes = [1, 32], strides = [1, 1]} : vector<3x32xf32> to vector<1x32xf32>
    %147 = vector.broadcast %146 : vector<1x32xf32> to vector<24x32xf32>
    %148 = arith.addf %145, %147 : vector<24x32xf32>
    %c0_11 = arith.constant 0 : index
    %c0_12 = arith.constant 0 : index
    %149 = vector.load %arg6[%c0_11, %c0_12] : memref<96x32xf32, #tpu.memory_space<vmem>>, vector<32x32xf32>
    %cst_13 = arith.constant dense<0.000000e+00> : vector<96x32xf32>
    %150 = tpu.matmul %54, %149, %cst_13 {dimension_numbers = #tpu.dot_dimension_numbers<[1], [0], [0], [1], [0, 0, 1, 1], [], []>} : vector<96x32xf32>, vector<32x32xf32>, vector<96x32xf32> -> vector<96x32xf32>
    %c32 = arith.constant 32 : index
    %c0_14 = arith.constant 0 : index
    %151 = vector.load %arg6[%c32, %c0_14] : memref<96x32xf32, #tpu.memory_space<vmem>>, vector<32x32xf32>
    %cst_15 = arith.constant dense<0.000000e+00> : vector<24x32xf32>
    %152 = tpu.matmul %101, %151, %cst_15 {dimension_numbers = #tpu.dot_dimension_numbers<[1], [0], [0], [1], [0, 0, 1, 1], [], []>} : vector<24x32xf32>, vector<32x32xf32>, vector<24x32xf32> -> vector<24x32xf32>
    %c64 = arith.constant 64 : index
    %c0_16 = arith.constant 0 : index
    %153 = vector.load %arg6[%c64, %c0_16] : memref<96x32xf32, #tpu.memory_space<vmem>>, vector<32x32xf32>
    %cst_17 = arith.constant dense<0.000000e+00> : vector<24x32xf32>
    %154 = tpu.matmul %148, %153, %cst_17 {dimension_numbers = #tpu.dot_dimension_numbers<[1], [0], [0], [1], [0, 0, 1, 1], [], []>} : vector<24x32xf32>, vector<32x32xf32>, vector<24x32xf32> -> vector<24x32xf32>
    %155 = vector.extract_strided_slice %150 {offsets = [0, 0], sizes = [96, 8], strides = [1, 1]} : vector<96x32xf32> to vector<96x8xf32>
    %156 = vector.extract_strided_slice %152 {offsets = [0, 0], sizes = [24, 8], strides = [1, 1]} : vector<24x32xf32> to vector<24x8xf32>
    %157 = vector.extract_strided_slice %154 {offsets = [0, 0], sizes = [24, 8], strides = [1, 1]} : vector<24x32xf32> to vector<24x8xf32>
    %158 = vector.extract_strided_slice %155 {offsets = [0, 0], sizes = [32, 8], strides = [1, 1]} : vector<96x8xf32> to vector<32x8xf32>
    %159 = vector.extract_strided_slice %156 {offsets = [0, 0], sizes = [8, 8], strides = [1, 1]} : vector<24x8xf32> to vector<8x8xf32>
    %cst_18 = arith.constant dense<0.000000e+00> : vector<32x8xf32>
    %160 = tpu.matmul %158, %159, %cst_18 {dimension_numbers = #tpu.dot_dimension_numbers<[1], [1], [0], [0], [0, 0, 1, 0], [], []>} : vector<32x8xf32>, vector<8x8xf32>, vector<32x8xf32> -> vector<32x8xf32>
    %cst_19 = arith.constant 0.176776692 : f32
    %161 = vector.broadcast %cst_19 : f32 to vector<32x8xf32>
    %162 = arith.mulf %160, %161 : vector<32x8xf32>
    %cst_20 = arith.constant dense<0xFF800000> : vector<32xf32>
    %163 = vector.multi_reduction <maximumf>, %162, %cst_20 [1] : vector<32x8xf32> to vector<32xf32>
    %164 = vector.shape_cast %163 : vector<32xf32> to vector<32x1xf32>
    %165 = vector.broadcast %164 : vector<32x1xf32> to vector<32x8xf32>
    %166 = arith.subf %162, %165 : vector<32x8xf32>
    %167 = math.exp %166 : vector<32x8xf32>
    %cst_21 = arith.constant dense<0.000000e+00> : vector<32xf32>
    %168 = vector.multi_reduction <add>, %167, %cst_21 [1] : vector<32x8xf32> to vector<32xf32>
    %169 = vector.shape_cast %168 : vector<32xf32> to vector<32x1xf32>
    %170 = vector.broadcast %169 : vector<32x1xf32> to vector<32x8xf32>
    %171 = arith.divf %167, %170 : vector<32x8xf32>
    %172 = vector.extract_strided_slice %157 {offsets = [0, 0], sizes = [8, 8], strides = [1, 1]} : vector<24x8xf32> to vector<8x8xf32>
    %cst_22 = arith.constant dense<0.000000e+00> : vector<32x8xf32>
    %173 = tpu.matmul %171, %172, %cst_22 {dimension_numbers = #tpu.dot_dimension_numbers<[1], [0], [0], [1], [0, 0, 1, 1], [], []>} : vector<32x8xf32>, vector<8x8xf32>, vector<32x8xf32> -> vector<32x8xf32>
    %174 = vector.extract_strided_slice %155 {offsets = [32, 0], sizes = [64, 8], strides = [1, 1]} : vector<96x8xf32> to vector<64x8xf32>
    %cst_23 = arith.constant dense<0.000000e+00> : vector<64x24xf32>
    %175 = tpu.matmul %174, %156, %cst_23 {dimension_numbers = #tpu.dot_dimension_numbers<[1], [1], [0], [0], [0, 0, 1, 0], [], []>} : vector<64x8xf32>, vector<24x8xf32>, vector<64x24xf32> -> vector<64x24xf32>
    %cst_24 = arith.constant 0.176776692 : f32
    %176 = vector.broadcast %cst_24 : f32 to vector<64x24xf32>
    %177 = arith.mulf %175, %176 : vector<64x24xf32>
    %cst_25 = arith.constant dense<0xFF800000> : vector<64xf32>
    %178 = vector.multi_reduction <maximumf>, %177, %cst_25 [1] : vector<64x24xf32> to vector<64xf32>
    %179 = vector.shape_cast %178 : vector<64xf32> to vector<64x1xf32>
    %180 = vector.broadcast %179 : vector<64x1xf32> to vector<64x24xf32>
    %181 = arith.subf %177, %180 : vector<64x24xf32>
    %182 = math.exp %181 : vector<64x24xf32>
    %cst_26 = arith.constant dense<0.000000e+00> : vector<64xf32>
    %183 = vector.multi_reduction <add>, %182, %cst_26 [1] : vector<64x24xf32> to vector<64xf32>
    %184 = vector.shape_cast %183 : vector<64xf32> to vector<64x1xf32>
    %185 = vector.broadcast %184 : vector<64x1xf32> to vector<64x24xf32>
    %186 = arith.divf %182, %185 : vector<64x24xf32>
    %cst_27 = arith.constant dense<0.000000e+00> : vector<64x8xf32>
    %187 = tpu.matmul %186, %157, %cst_27 {dimension_numbers = #tpu.dot_dimension_numbers<[1], [0], [0], [1], [0, 0, 1, 1], [], []>} : vector<64x24xf32>, vector<24x8xf32>, vector<64x8xf32> -> vector<64x8xf32>
    %188 = tpu.concatenate %173, %187 in 0 : vector<32x8xf32>, vector<64x8xf32> -> vector<96x8xf32>
    %189 = vector.extract_strided_slice %150 {offsets = [0, 8], sizes = [96, 8], strides = [1, 1]} : vector<96x32xf32> to vector<96x8xf32>
    %190 = vector.extract_strided_slice %152 {offsets = [0, 8], sizes = [24, 8], strides = [1, 1]} : vector<24x32xf32> to vector<24x8xf32>
    %191 = vector.extract_strided_slice %154 {offsets = [0, 8], sizes = [24, 8], strides = [1, 1]} : vector<24x32xf32> to vector<24x8xf32>
    %192 = vector.extract_strided_slice %189 {offsets = [0, 0], sizes = [32, 8], strides = [1, 1]} : vector<96x8xf32> to vector<32x8xf32>
    %193 = vector.extract_strided_slice %190 {offsets = [0, 0], sizes = [8, 8], strides = [1, 1]} : vector<24x8xf32> to vector<8x8xf32>
    %cst_28 = arith.constant dense<0.000000e+00> : vector<32x8xf32>
    %194 = tpu.matmul %192, %193, %cst_28 {dimension_numbers = #tpu.dot_dimension_numbers<[1], [1], [0], [0], [0, 0, 1, 0], [], []>} : vector<32x8xf32>, vector<8x8xf32>, vector<32x8xf32> -> vector<32x8xf32>
    %cst_29 = arith.constant 0.176776692 : f32
    %195 = vector.broadcast %cst_29 : f32 to vector<32x8xf32>
    %196 = arith.mulf %194, %195 : vector<32x8xf32>
    %cst_30 = arith.constant dense<0xFF800000> : vector<32xf32>
    %197 = vector.multi_reduction <maximumf>, %196, %cst_30 [1] : vector<32x8xf32> to vector<32xf32>
    %198 = vector.shape_cast %197 : vector<32xf32> to vector<32x1xf32>
    %199 = vector.broadcast %198 : vector<32x1xf32> to vector<32x8xf32>
    %200 = arith.subf %196, %199 : vector<32x8xf32>
    %201 = math.exp %200 : vector<32x8xf32>
    %cst_31 = arith.constant dense<0.000000e+00> : vector<32xf32>
    %202 = vector.multi_reduction <add>, %201, %cst_31 [1] : vector<32x8xf32> to vector<32xf32>
    %203 = vector.shape_cast %202 : vector<32xf32> to vector<32x1xf32>
    %204 = vector.broadcast %203 : vector<32x1xf32> to vector<32x8xf32>
    %205 = arith.divf %201, %204 : vector<32x8xf32>
    %206 = vector.extract_strided_slice %191 {offsets = [0, 0], sizes = [8, 8], strides = [1, 1]} : vector<24x8xf32> to vector<8x8xf32>
    %cst_32 = arith.constant dense<0.000000e+00> : vector<32x8xf32>
    %207 = tpu.matmul %205, %206, %cst_32 {dimension_numbers = #tpu.dot_dimension_numbers<[1], [0], [0], [1], [0, 0, 1, 1], [], []>} : vector<32x8xf32>, vector<8x8xf32>, vector<32x8xf32> -> vector<32x8xf32>
    %208 = vector.extract_strided_slice %189 {offsets = [32, 0], sizes = [64, 8], strides = [1, 1]} : vector<96x8xf32> to vector<64x8xf32>
    %cst_33 = arith.constant dense<0.000000e+00> : vector<64x24xf32>
    %209 = tpu.matmul %208, %190, %cst_33 {dimension_numbers = #tpu.dot_dimension_numbers<[1], [1], [0], [0], [0, 0, 1, 0], [], []>} : vector<64x8xf32>, vector<24x8xf32>, vector<64x24xf32> -> vector<64x24xf32>
    %cst_34 = arith.constant 0.176776692 : f32
    %210 = vector.broadcast %cst_34 : f32 to vector<64x24xf32>
    %211 = arith.mulf %209, %210 : vector<64x24xf32>
    %cst_35 = arith.constant dense<0xFF800000> : vector<64xf32>
    %212 = vector.multi_reduction <maximumf>, %211, %cst_35 [1] : vector<64x24xf32> to vector<64xf32>
    %213 = vector.shape_cast %212 : vector<64xf32> to vector<64x1xf32>
    %214 = vector.broadcast %213 : vector<64x1xf32> to vector<64x24xf32>
    %215 = arith.subf %211, %214 : vector<64x24xf32>
    %216 = math.exp %215 : vector<64x24xf32>
    %cst_36 = arith.constant dense<0.000000e+00> : vector<64xf32>
    %217 = vector.multi_reduction <add>, %216, %cst_36 [1] : vector<64x24xf32> to vector<64xf32>
    %218 = vector.shape_cast %217 : vector<64xf32> to vector<64x1xf32>
    %219 = vector.broadcast %218 : vector<64x1xf32> to vector<64x24xf32>
    %220 = arith.divf %216, %219 : vector<64x24xf32>
    %cst_37 = arith.constant dense<0.000000e+00> : vector<64x8xf32>
    %221 = tpu.matmul %220, %191, %cst_37 {dimension_numbers = #tpu.dot_dimension_numbers<[1], [0], [0], [1], [0, 0, 1, 1], [], []>} : vector<64x24xf32>, vector<24x8xf32>, vector<64x8xf32> -> vector<64x8xf32>
    %222 = tpu.concatenate %207, %221 in 0 : vector<32x8xf32>, vector<64x8xf32> -> vector<96x8xf32>
    %223 = vector.extract_strided_slice %150 {offsets = [0, 16], sizes = [96, 8], strides = [1, 1]} : vector<96x32xf32> to vector<96x8xf32>
    %224 = vector.extract_strided_slice %152 {offsets = [0, 16], sizes = [24, 8], strides = [1, 1]} : vector<24x32xf32> to vector<24x8xf32>
    %225 = vector.extract_strided_slice %154 {offsets = [0, 16], sizes = [24, 8], strides = [1, 1]} : vector<24x32xf32> to vector<24x8xf32>
    %226 = vector.extract_strided_slice %223 {offsets = [0, 0], sizes = [32, 8], strides = [1, 1]} : vector<96x8xf32> to vector<32x8xf32>
    %227 = vector.extract_strided_slice %224 {offsets = [0, 0], sizes = [8, 8], strides = [1, 1]} : vector<24x8xf32> to vector<8x8xf32>
    %cst_38 = arith.constant dense<0.000000e+00> : vector<32x8xf32>
    %228 = tpu.matmul %226, %227, %cst_38 {dimension_numbers = #tpu.dot_dimension_numbers<[1], [1], [0], [0], [0, 0, 1, 0], [], []>} : vector<32x8xf32>, vector<8x8xf32>, vector<32x8xf32> -> vector<32x8xf32>
    %cst_39 = arith.constant 0.176776692 : f32
    %229 = vector.broadcast %cst_39 : f32 to vector<32x8xf32>
    %230 = arith.mulf %228, %229 : vector<32x8xf32>
    %cst_40 = arith.constant dense<0xFF800000> : vector<32xf32>
    %231 = vector.multi_reduction <maximumf>, %230, %cst_40 [1] : vector<32x8xf32> to vector<32xf32>
    %232 = vector.shape_cast %231 : vector<32xf32> to vector<32x1xf32>
    %233 = vector.broadcast %232 : vector<32x1xf32> to vector<32x8xf32>
    %234 = arith.subf %230, %233 : vector<32x8xf32>
    %235 = math.exp %234 : vector<32x8xf32>
    %cst_41 = arith.constant dense<0.000000e+00> : vector<32xf32>
    %236 = vector.multi_reduction <add>, %235, %cst_41 [1] : vector<32x8xf32> to vector<32xf32>
    %237 = vector.shape_cast %236 : vector<32xf32> to vector<32x1xf32>
    %238 = vector.broadcast %237 : vector<32x1xf32> to vector<32x8xf32>
    %239 = arith.divf %235, %238 : vector<32x8xf32>
    %240 = vector.extract_strided_slice %225 {offsets = [0, 0], sizes = [8, 8], strides = [1, 1]} : vector<24x8xf32> to vector<8x8xf32>
    %cst_42 = arith.constant dense<0.000000e+00> : vector<32x8xf32>
    %241 = tpu.matmul %239, %240, %cst_42 {dimension_numbers = #tpu.dot_dimension_numbers<[1], [0], [0], [1], [0, 0, 1, 1], [], []>} : vector<32x8xf32>, vector<8x8xf32>, vector<32x8xf32> -> vector<32x8xf32>
    %242 = vector.extract_strided_slice %223 {offsets = [32, 0], sizes = [64, 8], strides = [1, 1]} : vector<96x8xf32> to vector<64x8xf32>
    %cst_43 = arith.constant dense<0.000000e+00> : vector<64x24xf32>
    %243 = tpu.matmul %242, %224, %cst_43 {dimension_numbers = #tpu.dot_dimension_numbers<[1], [1], [0], [0], [0, 0, 1, 0], [], []>} : vector<64x8xf32>, vector<24x8xf32>, vector<64x24xf32> -> vector<64x24xf32>
    %cst_44 = arith.constant 0.176776692 : f32
    %244 = vector.broadcast %cst_44 : f32 to vector<64x24xf32>
    %245 = arith.mulf %243, %244 : vector<64x24xf32>
    %cst_45 = arith.constant dense<0xFF800000> : vector<64xf32>
    %246 = vector.multi_reduction <maximumf>, %245, %cst_45 [1] : vector<64x24xf32> to vector<64xf32>
    %247 = vector.shape_cast %246 : vector<64xf32> to vector<64x1xf32>
    %248 = vector.broadcast %247 : vector<64x1xf32> to vector<64x24xf32>
    %249 = arith.subf %245, %248 : vector<64x24xf32>
    %250 = math.exp %249 : vector<64x24xf32>
    %cst_46 = arith.constant dense<0.000000e+00> : vector<64xf32>
    %251 = vector.multi_reduction <add>, %250, %cst_46 [1] : vector<64x24xf32> to vector<64xf32>
    %252 = vector.shape_cast %251 : vector<64xf32> to vector<64x1xf32>
    %253 = vector.broadcast %252 : vector<64x1xf32> to vector<64x24xf32>
    %254 = arith.divf %250, %253 : vector<64x24xf32>
    %cst_47 = arith.constant dense<0.000000e+00> : vector<64x8xf32>
    %255 = tpu.matmul %254, %225, %cst_47 {dimension_numbers = #tpu.dot_dimension_numbers<[1], [0], [0], [1], [0, 0, 1, 1], [], []>} : vector<64x24xf32>, vector<24x8xf32>, vector<64x8xf32> -> vector<64x8xf32>
    %256 = tpu.concatenate %241, %255 in 0 : vector<32x8xf32>, vector<64x8xf32> -> vector<96x8xf32>
    %257 = vector.extract_strided_slice %150 {offsets = [0, 24], sizes = [96, 8], strides = [1, 1]} : vector<96x32xf32> to vector<96x8xf32>
    %258 = vector.extract_strided_slice %152 {offsets = [0, 24], sizes = [24, 8], strides = [1, 1]} : vector<24x32xf32> to vector<24x8xf32>
    %259 = vector.extract_strided_slice %154 {offsets = [0, 24], sizes = [24, 8], strides = [1, 1]} : vector<24x32xf32> to vector<24x8xf32>
    %260 = vector.extract_strided_slice %257 {offsets = [0, 0], sizes = [32, 8], strides = [1, 1]} : vector<96x8xf32> to vector<32x8xf32>
    %261 = vector.extract_strided_slice %258 {offsets = [0, 0], sizes = [8, 8], strides = [1, 1]} : vector<24x8xf32> to vector<8x8xf32>
    %cst_48 = arith.constant dense<0.000000e+00> : vector<32x8xf32>
    %262 = tpu.matmul %260, %261, %cst_48 {dimension_numbers = #tpu.dot_dimension_numbers<[1], [1], [0], [0], [0, 0, 1, 0], [], []>} : vector<32x8xf32>, vector<8x8xf32>, vector<32x8xf32> -> vector<32x8xf32>
    %cst_49 = arith.constant 0.176776692 : f32
    %263 = vector.broadcast %cst_49 : f32 to vector<32x8xf32>
    %264 = arith.mulf %262, %263 : vector<32x8xf32>
    %cst_50 = arith.constant dense<0xFF800000> : vector<32xf32>
    %265 = vector.multi_reduction <maximumf>, %264, %cst_50 [1] : vector<32x8xf32> to vector<32xf32>
    %266 = vector.shape_cast %265 : vector<32xf32> to vector<32x1xf32>
    %267 = vector.broadcast %266 : vector<32x1xf32> to vector<32x8xf32>
    %268 = arith.subf %264, %267 : vector<32x8xf32>
    %269 = math.exp %268 : vector<32x8xf32>
    %cst_51 = arith.constant dense<0.000000e+00> : vector<32xf32>
    %270 = vector.multi_reduction <add>, %269, %cst_51 [1] : vector<32x8xf32> to vector<32xf32>
    %271 = vector.shape_cast %270 : vector<32xf32> to vector<32x1xf32>
    %272 = vector.broadcast %271 : vector<32x1xf32> to vector<32x8xf32>
    %273 = arith.divf %269, %272 : vector<32x8xf32>
    %274 = vector.extract_strided_slice %259 {offsets = [0, 0], sizes = [8, 8], strides = [1, 1]} : vector<24x8xf32> to vector<8x8xf32>
    %cst_52 = arith.constant dense<0.000000e+00> : vector<32x8xf32>
    %275 = tpu.matmul %273, %274, %cst_52 {dimension_numbers = #tpu.dot_dimension_numbers<[1], [0], [0], [1], [0, 0, 1, 1], [], []>} : vector<32x8xf32>, vector<8x8xf32>, vector<32x8xf32> -> vector<32x8xf32>
    %276 = vector.extract_strided_slice %257 {offsets = [32, 0], sizes = [64, 8], strides = [1, 1]} : vector<96x8xf32> to vector<64x8xf32>
    %cst_53 = arith.constant dense<0.000000e+00> : vector<64x24xf32>
    %277 = tpu.matmul %276, %258, %cst_53 {dimension_numbers = #tpu.dot_dimension_numbers<[1], [1], [0], [0], [0, 0, 1, 0], [], []>} : vector<64x8xf32>, vector<24x8xf32>, vector<64x24xf32> -> vector<64x24xf32>
    %cst_54 = arith.constant 0.176776692 : f32
    %278 = vector.broadcast %cst_54 : f32 to vector<64x24xf32>
    %279 = arith.mulf %277, %278 : vector<64x24xf32>
    %cst_55 = arith.constant dense<0xFF800000> : vector<64xf32>
    %280 = vector.multi_reduction <maximumf>, %279, %cst_55 [1] : vector<64x24xf32> to vector<64xf32>
    %281 = vector.shape_cast %280 : vector<64xf32> to vector<64x1xf32>
    %282 = vector.broadcast %281 : vector<64x1xf32> to vector<64x24xf32>
    %283 = arith.subf %279, %282 : vector<64x24xf32>
    %284 = math.exp %283 : vector<64x24xf32>
    %cst_56 = arith.constant dense<0.000000e+00> : vector<64xf32>
    %285 = vector.multi_reduction <add>, %284, %cst_56 [1] : vector<64x24xf32> to vector<64xf32>
    %286 = vector.shape_cast %285 : vector<64xf32> to vector<64x1xf32>
    %287 = vector.broadcast %286 : vector<64x1xf32> to vector<64x24xf32>
    %288 = arith.divf %284, %287 : vector<64x24xf32>
    %cst_57 = arith.constant dense<0.000000e+00> : vector<64x8xf32>
    %289 = tpu.matmul %288, %259, %cst_57 {dimension_numbers = #tpu.dot_dimension_numbers<[1], [0], [0], [1], [0, 0, 1, 1], [], []>} : vector<64x24xf32>, vector<24x8xf32>, vector<64x8xf32> -> vector<64x8xf32>
    %290 = tpu.concatenate %275, %289 in 0 : vector<32x8xf32>, vector<64x8xf32> -> vector<96x8xf32>
    %291 = tpu.concatenate %188, %222, %256, %290 in 1 : vector<96x8xf32>, vector<96x8xf32>, vector<96x8xf32>, vector<96x8xf32> -> vector<96x32xf32>
    %c0_58 = arith.constant 0 : index
    %c0_59 = arith.constant 0 : index
    %292 = vector.load %arg7[%c0_58, %c0_59] : memref<32x32xf32, #tpu.memory_space<vmem>>, vector<32x32xf32>
    %cst_60 = arith.constant dense<0.000000e+00> : vector<96x32xf32>
    %293 = tpu.matmul %291, %292, %cst_60 {dimension_numbers = #tpu.dot_dimension_numbers<[1], [0], [0], [1], [0, 0, 1, 1], [], []>} : vector<96x32xf32>, vector<32x32xf32>, vector<96x32xf32> -> vector<96x32xf32>
    %c0_61 = arith.constant 0 : index
    %c0_62 = arith.constant 0 : index
    %294 = vector.load %arg8[%c0_61, %c0_62] : memref<1x32xf32, #tpu.memory_space<vmem>>, vector<1x32xf32>
    %295 = vector.broadcast %294 : vector<1x32xf32> to vector<96x32xf32>
    %296 = arith.addf %293, %295 : vector<96x32xf32>
    %c0_63 = arith.constant 0 : index
    %c0_64 = arith.constant 0 : index
    %c0_65 = arith.constant 0 : index
    %297 = vector.load %arg9[%c0_63, %c0_64, %c0_65] : memref<1x96x32xf32, #tpu.memory_space<vmem>>, vector<1x96x32xf32>
    %298 = vector.shape_cast %297 : vector<1x96x32xf32> to vector<96x32xf32>
    %299 = vector.shape_cast %296 : vector<96x32xf32> to vector<1x96x32xf32>
    tpu.vector_store %arg9[%c0_63, %c0_64, %c0_65], %299 {strides = array<i32>} : memref<1x96x32xf32, #tpu.memory_space<vmem>>, vector<1x96x32xf32>,
    return
  }
  func.func @transform_0(%arg0: i32) -> (i32, i32, i32) {
    %c0_i32 = arith.constant 0 : i32
    %c0_i32_0 = arith.constant 0 : i32
    %c0_i32_1 = arith.constant 0 : i32
    return %arg0, %c0_i32, %c0_i32_0 : i32, i32, i32
  }
  func.func @transform_1(%arg0: i32) -> (i32, i32) {
    %c0_i32 = arith.constant 0 : i32
    %c0_i32_0 = arith.constant 0 : i32
    %c0_i32_1 = arith.constant 0 : i32
    return %c0_i32, %c0_i32_0 : i32, i32
  }
  func.func @transform_2(%arg0: i32) -> (i32, i32) {
    %c0_i32 = arith.constant 0 : i32
    %c0_i32_0 = arith.constant 0 : i32
    %c0_i32_1 = arith.constant 0 : i32
    return %c0_i32, %c0_i32_0 : i32, i32
  }
  func.func @transform_3(%arg0: i32) -> (i32, i32) {
    %c0_i32 = arith.constant 0 : i32
    %c0_i32_0 = arith.constant 0 : i32
    %c0_i32_1 = arith.constant 0 : i32
    return %c0_i32, %c0_i32_0 : i32, i32
  }
  func.func @transform_4(%arg0: i32) -> (i32, i32) {
    %c0_i32 = arith.constant 0 : i32
    %c0_i32_0 = arith.constant 0 : i32
    %c0_i32_1 = arith.constant 0 : i32
    return %c0_i32, %c0_i32_0 : i32, i32
  }
  func.func @transform_5(%arg0: i32) -> (i32, i32) {
    %c0_i32 = arith.constant 0 : i32
    %c0_i32_0 = arith.constant 0 : i32
    %c0_i32_1 = arith.constant 0 : i32
    return %c0_i32, %c0_i32_0 : i32, i32
  }
  func.func @transform_6(%arg0: i32) -> (i32, i32) {
    %c0_i32 = arith.constant 0 : i32
    %c0_i32_0 = arith.constant 0 : i32
    %c0_i32_1 = arith.constant 0 : i32
    return %c0_i32, %c0_i32_0 : i32, i32
  }
  func.func @transform_7(%arg0: i32) -> (i32, i32) {
    %c0_i32 = arith.constant 0 : i32
    %c0_i32_0 = arith.constant 0 : i32
    %c0_i32_1 = arith.constant 0 : i32
    return %c0_i32, %c0_i32_0 : i32, i32
  }
  func.func @transform_8(%arg0: i32) -> (i32, i32, i32) {
    %c0_i32 = arith.constant 0 : i32
    %c0_i32_0 = arith.constant 0 : i32
    %c0_i32_1 = arith.constant 0 : i32
    return %arg0, %c0_i32, %c0_i32_0 : i32, i32, i32
  }
}

</mosaic_0001>

<llo_original>
// kernel: _lambda_.1
$region0: #{_lambda_.1}
  #allocation0 [shape = 'u32[]', space=smem, size = 0x4, offset = 0x4, fixed_abs, tag = 'smem constant byte address 0x4 - core index']
  #allocation1 [shape = 'u32[144,128]{1,0:T(1,128)}', space=vmem, size = 0x12000, scoped, tag = 'internal scratch']
  %s0 = inlined_call_operand.vmem [shape: f32[2,96,32], index: 0, kind: input, shape index: {}]
  %s1 = inlined_call_operand.hbm [shape: f32[864,96], index: 1, kind: input, shape index: {}]
  %s2 = inlined_call_operand.vmem [shape: f32[216,96], index: 2, kind: input, shape index: {}]
  %s3 = inlined_call_operand.vmem [shape: f32[27,32], index: 3, kind: input, shape index: {}]
  %s4 = inlined_call_operand.vmem [shape: f32[3,32], index: 4, kind: input, shape index: {}]
  %s5 = inlined_call_operand.vmem [shape: f32[96,32], index: 5, kind: input, shape index: {}]
  %s6 = inlined_call_operand.vmem [shape: f32[32,32], index: 6, kind: input, shape index: {}]
  %s7 = inlined_call_operand.vmem [shape: f32[1,32], index: 7, kind: input, shape index: {}]
  %s8 = inlined_call_operand.vmem [shape: f32[2,96,32], index: 8, kind: output, shape index: {}]
  %s9 = sld [smem:[#allocation0]]
  $region69: #{_lambda_.1} parent=0
    _
  %s11 = ssub.s32 1, %s9
  %s12 = scalar_select 0, %s11, %s9
  $region1: #{_lambda_.1} parent=0
    #allocation2 [shape = 'u8[442368]{0}', space=vmem, size = 0x6c000, scoped, tag = 'input window, operand 1, single buffered']
    #allocation3 [shape = 's32[2]{0}', space=sflag, size = 0x8, scoped, tag = 'scoped memory for _lambda_.1']
    %13 = vsyncpa [#allocation3], 0
    loop: start=0, step=1, limit=4
    $region2: #{_lambda_.1} parent=1 // loop_pre_header
      _
    $region3: #{_lambda_.1} parent=1 // loop_header
      %s15 = sphi 0, %s19
      %p16 = scmp.ge.s32.totalorder %s15, 4
      %s25 = sphi 0, %s27
      %s28 = sphi 0, %s25
      %s29 = sphi 0, %s28
      %s45 = sphi 0, %s29
      %s49 = sphi 0, %s49
      %s51 = sphi 0, %s49
      %s52 = sphi 0, %s51
      %s66 = sphi 0, %s52
      %s70 = sphi 0, %s70
      %s72 = sphi 0, %s70
      %s73 = sphi 0, %s72
      %s87 = sphi 0, %s73
      %s91 = sphi 0, %s91
      %s93 = sphi 0, %s91
      %s94 = sphi 0, %s93
      %s108 = sphi 0, %s94
      %s112 = sphi 0, %s112
      %s114 = sphi 0, %s112
      %s115 = sphi 0, %s114
      %s129 = sphi 0, %s115
      %s133 = sphi 0, %s133
      %s135 = sphi 0, %s133
      %s136 = sphi 0, %s135
      %s150 = sphi 0, %s136
      %s154 = sphi 0, %s154
      %s156 = sphi 0, %s154
      %s157 = sphi 0, %s156
      %s171 = sphi 0, %s157
      %s175 = sphi 0, %s175
      %s177 = sphi 0, %s175
      %s178 = sphi 0, %s177
      %s192 = sphi 0, %s178
      %s198 = sphi 0, %s200
      %s201 = sphi 0, %s198
      %s202 = sphi 0, %s201
      %s218 = sphi 0, %s202
    $region4: #{_lambda_.1} parent=1 // loop_header_branch
      %18 = sbr.rel (%p16) target = $region8
    $region5: #{_lambda_.1} parent=1 // loop_body
      %s20 = ssub.s32 %s15, 1
      %s21 = ssub.s32 %s15, 2
      %s22 = sadd.s32 %s15, 1
      %s23 = ssub.s32 %s15, %s22
      %p24 = scmp.eq.s32.totalorder %s23, 0
      %s26 = sadd.s32 %s25, 1
      %s27 = scalar_select %p24, %s25, %s26
      %p30 = pneg %p24
      %p31 = scmp.eq.s32.totalorder %s15, 1
      %p32 = por %p30, %p31
      %p33 = scmp.ne.s32.totalorder %s25, %s28
      %p34 = scmp.eq.s32.totalorder %s15, 0
      %p35 = por %p33, %p34
      %p36 = scmp.ne.s32.totalorder %s25, %s28
      %p37 = scmp.eq.s32.totalorder %s20, 1
      %p38 = por %p36, %p37
      %p39 = scmp.ne.s32.totalorder %s28, %s29
      %p40 = scmp.eq.s32.totalorder %s20, 0
      %p41 = por %p39, %p40
      %p42 = scmp.ne.s32.totalorder %s28, %s29
      %p43 = scmp.eq.s32.totalorder %s21, 1
      %p44 = por %p42, %p43
      %p46 = scmp.ne.s32.totalorder %s29, %s45
      %p47 = scmp.eq.s32.totalorder %s21, 0
      %p48 = por %p46, %p47
      %s50 = sadd.s32 %s49, 1
      %p53 = scmp.eq.s32.totalorder %s15, 1
      %p54 = scmp.ne.s32.totalorder %s49, %s51
      %p55 = scmp.eq.s32.totalorder %s15, 0
      %p56 = por %p54, %p55
      %p57 = scmp.ne.s32.totalorder %s49, %s51
      %p58 = scmp.eq.s32.totalorder %s20, 1
      %p59 = por %p57, %p58
      %p60 = scmp.ne.s32.totalorder %s51, %s52
      %p61 = scmp.eq.s32.totalorder %s20, 0
      %p62 = por %p60, %p61
      %p63 = scmp.ne.s32.totalorder %s51, %s52
      %p64 = scmp.eq.s32.totalorder %s21, 1
      %p65 = por %p63, %p64
      %p67 = scmp.ne.s32.totalorder %s52, %s66
      %p68 = scmp.eq.s32.totalorder %s21, 0
      %p69 = por %p67, %p68
      %s71 = sadd.s32 %s70, 1
      %p74 = scmp.eq.s32.totalorder %s15, 1
      %p75 = scmp.ne.s32.totalorder %s70, %s72
      %p76 = scmp.eq.s32.totalorder %s15, 0
      %p77 = por %p75, %p76
      %p78 = scmp.ne.s32.totalorder %s70, %s72
      %p79 = scmp.eq.s32.totalorder %s20, 1
      %p80 = por %p78, %p79
      %p81 = scmp.ne.s32.totalorder %s72, %s73
      %p82 = scmp.eq.s32.totalorder %s20, 0
      %p83 = por %p81, %p82
      %p84 = scmp.ne.s32.totalorder %s72, %s73
      %p85 = scmp.eq.s32.totalorder %s21, 1
      %p86 = por %p84, %p85
      %p88 = scmp.ne.s32.totalorder %s73, %s87
      %p89 = scmp.eq.s32.totalorder %s21, 0
      %p90 = por %p88, %p89
      %s92 = sadd.s32 %s91, 1
      %p95 = scmp.eq.s32.totalorder %s15, 1
      %p96 = scmp.ne.s32.totalorder %s91, %s93
      %p97 = scmp.eq.s32.totalorder %s15, 0
      %p98 = por %p96, %p97
      %p99 = scmp.ne.s32.totalorder %s91, %s93
      %p100 = scmp.eq.s32.totalorder %s20, 1
      %p101 = por %p99, %p100
      %p102 = scmp.ne.s32.totalorder %s93, %s94
      %p103 = scmp.eq.s32.totalorder %s20, 0
      %p104 = por %p102, %p103
      %p105 = scmp.ne.s32.totalorder %s93, %s94
      %p106 = scmp.eq.s32.totalorder %s21, 1
      %p107 = por %p105, %p106
      %p109 = scmp.ne.s32.totalorder %s94, %s108
      %p110 = scmp.eq.s32.totalorder %s21, 0
      %p111 = por %p109, %p110
      %s113 = sadd.s32 %s112, 1
      %p116 = scmp.eq.s32.totalorder %s15, 1
      %p117 = scmp.ne.s32.totalorder %s112, %s114
      %p118 = scmp.eq.s32.totalorder %s15, 0
      %p119 = por %p117, %p118
      %p120 = scmp.ne.s32.totalorder %s112, %s114
      %p121 = scmp.eq.s32.totalorder %s20, 1
      %p122 = por %p120, %p121
      %p123 = scmp.ne.s32.totalorder %s114, %s115
      %p124 = scmp.eq.s32.totalorder %s20, 0
      %p125 = por %p123, %p124
      %p126 = scmp.ne.s32.totalorder %s114, %s115
      %p127 = scmp.eq.s32.totalorder %s21, 1
      %p128 = por %p126, %p127
      %p130 = scmp.ne.s32.totalorder %s115, %s129
      %p131 = scmp.eq.s32.totalorder %s21, 0
      %p132 = por %p130, %p131
      %s134 = sadd.s32 %s133, 1
      %p137 = scmp.eq.s32.totalorder %s15, 1
      %p138 = scmp.ne.s32.totalorder %s133, %s135
      %p139 = scmp.eq.s32.totalorder %s15, 0
      %p140 = por %p138, %p139
      %p141 = scmp.ne.s32.totalorder %s133, %s135
      %p142 = scmp.eq.s32.totalorder %s20, 1
      %p143 = por %p141, %p142
      %p144 = scmp.ne.s32.totalorder %s135, %s136
      %p145 = scmp.eq.s32.totalorder %s20, 0
      %p146 = por %p144, %p145
      %p147 = scmp.ne.s32.totalorder %s135, %s136
      %p148 = scmp.eq.s32.totalorder %s21, 1
      %p149 = por %p147, %p148
      %p151 = scmp.ne.s32.totalorder %s136, %s150
      %p152 = scmp.eq.s32.totalorder %s21, 0
      %p153 = por %p151, %p152
      %s155 = sadd.s32 %s154, 1
      %p158 = scmp.eq.s32.totalorder %s15, 1
      %p159 = scmp.ne.s32.totalorder %s154, %s156
      %p160 = scmp.eq.s32.totalorder %s15, 0
      %p161 = por %p159, %p160
      %p162 = scmp.ne.s32.totalorder %s154, %s156
      %p163 = scmp.eq.s32.totalorder %s20, 1
      %p164 = por %p162, %p163
      %p165 = scmp.ne.s32.totalorder %s156, %s157
      %p166 = scmp.eq.s32.totalorder %s20, 0
      %p167 = por %p165, %p166
      %p168 = scmp.ne.s32.totalorder %s156, %s157
      %p169 = scmp.eq.s32.totalorder %s21, 1
      %p170 = por %p168, %p169
      %p172 = scmp.ne.s32.totalorder %s157, %s171
      %p173 = scmp.eq.s32.totalorder %s21, 0
      %p174 = por %p172, %p173
      %s176 = sadd.s32 %s175, 1
      %p179 = scmp.eq.s32.totalorder %s15, 1
      %p180 = scmp.ne.s32.totalorder %s175, %s177
      %p181 = scmp.eq.s32.totalorder %s15, 0
      %p182 = por %p180, %p181
      %p183 = scmp.ne.s32.totalorder %s175, %s177
      %p184 = scmp.eq.s32.totalorder %s20, 1
      %p185 = por %p183, %p184
      %p186 = scmp.ne.s32.totalorder %s177, %s178
      %p187 = scmp.eq.s32.totalorder %s20, 0
      %p188 = por %p186, %p187
      %p189 = scmp.ne.s32.totalorder %s177, %s178
      %p190 = scmp.eq.s32.totalorder %s21, 1
      %p191 = por %p189, %p190
      %p193 = scmp.ne.s32.totalorder %s178, %s192
      %p194 = scmp.eq.s32.totalorder %s21, 0
      %p195 = por %p193, %p194
      %s196 = ssub.s32 %s15, %s22
      %p197 = scmp.eq.s32.totalorder %s196, 0
      %s199 = sadd.s32 %s198, 1
      %s200 = scalar_select %p197, %s198, %s199
      %p203 = pneg %p197
      %p204 = scmp.eq.s32.totalorder %s15, 1
      %p205 = por %p203, %p204
      %p206 = scmp.ne.s32.totalorder %s198, %s201
      %p207 = scmp.eq.s32.totalorder %s15, 0
      %p208 = por %p206, %p207
      %p209 = scmp.ne.s32.totalorder %s198, %s201
      %p210 = scmp.eq.s32.totalorder %s20, 1
      %p211 = por %p209, %p210
      %p212 = scmp.ne.s32.totalorder %s201, %s202
      %p213 = scmp.eq.s32.totalorder %s20, 0
      %p214 = por %p212, %p213
      %p215 = scmp.ne.s32.totalorder %s201, %s202
      %p216 = scmp.eq.s32.totalorder %s21, 1
      %p217 = por %p215, %p216
      %p219 = scmp.ne.s32.totalorder %s202, %s218
      %p220 = scmp.eq.s32.totalorder %s21, 0
      %p221 = por %p219, %p220
      %p222 = scmp.le.s32.totalorder 1, %s15
      %p223 = scmp.lt.s32.totalorder %s15, 3
      %p224 = pnand %p222, %p223
      %p225 = pneg %p224
      // Predicated region
      $region9: #{_lambda_.1} parent=5 // pred_check
        _
      $region10: #{_lambda_.1} parent=5 // pred_check_branch
        %227 = sbr.rel (%p224) target = $region12
      $region11: #{_lambda_.1} parent=5 // pred_region
        %s228 = ssub.s32 %s15, 1
        // Predicated region
        $region13: #{_lambda_.1} parent=11 // pred_check
          %p229 = pneg %p62
        $region14: #{_lambda_.1} parent=11 // pred_check_branch
          %231 = sbr.rel (%p229) target = $region16
        $region15: #{_lambda_.1} parent=11 // pred_region
          %s233 = ssub.s32 13824, 13824
          %234 = vsyncadd [#allocation3], %s233
          %s235 = sshll.u32 [#allocation2], 4
          %s236 = int_to_ptr.vmem [resolvable:$true] %s235
          %241 = dma.hbm_to_vmem [thread:$0]  %s1, 13824, %s236, [#allocation3], 128, 128, 8
        $region16: #{_lambda_.1} parent=11 // pred_fallthru
          _
        // Predicated region
        $region17: #{_lambda_.1} parent=11 // pred_check
          %p242 = pneg %p83
        $region18: #{_lambda_.1} parent=11 // pred_check_branch
          %244 = sbr.rel (%p242) target = $region20
        $region19: #{_lambda_.1} parent=11 // pred_region
          _
        $region20: #{_lambda_.1} parent=11 // pred_fallthru
          _
        // Predicated region
        $region21: #{_lambda_.1} parent=11 // pred_check
          %p245 = pneg %p104
        $region22: #{_lambda_.1} parent=11 // pred_check_branch
          %247 = sbr.rel (%p245) target = $region24
        $region23: #{_lambda_.1} parent=11 // pred_region
          _
        $region24: #{_lambda_.1} parent=11 // pred_fallthru
          _
        // Predicated region
        $region25: #{_lambda_.1} parent=11 // pred_check
          %p248 = pneg %p125
        $region26: #{_lambda_.1} parent=11 // pred_check_branch
          %250 = sbr.rel (%p248) target = $region28
        $region27: #{_lambda_.1} parent=11 // pred_region
          _
        $region28: #{_lambda_.1} parent=11 // pred_fallthru
          _
        // Predicated region
        $region29: #{_lambda_.1} parent=11 // pred_check
          %p251 = pneg %p146
        $region30: #{_lambda_.1} parent=11 // pred_check_branch
          %253 = sbr.rel (%p251) target = $region32
        $region31: #{_lambda_.1} parent=11 // pred_region
          _
        $region32: #{_lambda_.1} parent=11 // pred_fallthru
          _
        // Predicated region
        $region33: #{_lambda_.1} parent=11 // pred_check
          %p254 = pneg %p167
        $region34: #{_lambda_.1} parent=11 // pred_check_branch
          %256 = sbr.rel (%p254) target = $region36
        $region35: #{_lambda_.1} parent=11 // pred_region
          _
        $region36: #{_lambda_.1} parent=11 // pred_fallthru
          _
        // Predicated region
        $region37: #{_lambda_.1} parent=11 // pred_check
          %p257 = pneg %p188
        $region38: #{_lambda_.1} parent=11 // pred_check_branch
          %259 = sbr.rel (%p257) target = $region40
        $region39: #{_lambda_.1} parent=11 // pred_region
          _
        $region40: #{_lambda_.1} parent=11 // pred_fallthru
          _
      $region12: #{_lambda_.1} parent=5 // pred_fallthru
        _
      %p260 = scmp.lt.s32.totalorder %s15, 2
      // Predicated region
      $region41: #{_lambda_.1} parent=5 // pred_check
        %p261 = pneg %p260
      $region42: #{_lambda_.1} parent=5 // pred_check_branch
        %263 = sbr.rel (%p261) target = $region44
      $region43: #{_lambda_.1} parent=5 // pred_region
        // Predicated region
        $region45: #{_lambda_.1} parent=43 // pred_check
          %p264 = pneg %p35
        $region46: #{_lambda_.1} parent=43 // pred_check_branch
          %266 = sbr.rel (%p264) target = $region48
        $region47: #{_lambda_.1} parent=43 // pred_region
          %p267 = scmp.lt.s32.totalorder %s15, 1
          %s268 = scalar_select %p267, %s15, 1
          %s269 = smul.addr %s268, 12
          %s270 = smul.addr %s269, 8
          %s271 = scalar_lea.vmem %s0, %s270
        $region48: #{_lambda_.1} parent=43 // pred_fallthru
          _
      $region44: #{_lambda_.1} parent=5 // pred_fallthru
        _
      %p272 = scmp.le.s32.totalorder 1, %s15
      %p273 = scmp.lt.s32.totalorder %s15, 3
      %p274 = pnand %p272, %p273
      %p275 = pneg %p274
      // Predicated region
      $region49: #{_lambda_.1} parent=5 // pred_check
        _
      $region50: #{_lambda_.1} parent=5 // pred_check_branch
        %277 = sbr.rel (%p274) target = $region52
      $region51: #{_lambda_.1} parent=5 // pred_region
        %s278 = ssub.s32 %s15, 1
        // Predicated region
        $region53: #{_lambda_.1} parent=51 // pred_check
          %p279 = pneg %p62
        $region54: #{_lambda_.1} parent=51 // pred_check_branch
          %281 = sbr.rel (%p279) target = $region56
        $region55: #{_lambda_.1} parent=51 // pred_region
          %282 = dma.done [#allocation3], 13824
        $region56: #{_lambda_.1} parent=51 // pred_fallthru
          _
        %p283 = scmp.lt.s32.totalorder %s20, 1
        %s284 = scalar_select %p283, %s20, 1
        %s285 = smul.addr %s284, 12
        %s286 = smul.addr %s285, 8
        %s287 = scalar_lea.vmem %s0, %s286
        %p288 = pneg %p41
        %p289 = pneg %p38
        %p290 = pneg %p62
        %p291 = pneg %p59
        %p292 = pneg %p83
        %p293 = pneg %p80
        %p294 = pneg %p104
        %p295 = pneg %p101
        %p296 = pneg %p125
        %p297 = pneg %p122
        %p298 = pneg %p146
        %p299 = pneg %p143
        %p300 = pneg %p167
        %p301 = pneg %p164
        %p302 = pneg %p188
        %p303 = pneg %p185
        %p304 = pneg %p214
        %p305 = pneg %p211
        %p306 = scmp.lt.s32.totalorder %s20, 1
        %s307 = scalar_select %p306, %s20, 1
        %s308 = smul.addr %s307, 12
        %s309 = smul.addr %s308, 8
        %s310 = scalar_lea.vmem %s8, %s309
        %p311 = scmp.lt.s32.totalorder %s20, 1
        %s312 = scalar_select %p311, %s20, 1
        %s313 = smul.addr %s312, 12
        %s314 = smul.addr %s313, 8
        %s315 = scalar_lea.vmem %s0, %s314
        %p316 = scmp.lt.s32.totalorder %s20, 1
        %s317 = scalar_select %p316, %s20, 1
        %s318 = smul.addr %s317, 12
        %s319 = smul.addr %s318, 8
        %s320 = scalar_lea.vmem %s8, %s319
        %v321 = vld [vmem:[%s315] sm:$0xff]
        %v322 = vld [vmem:[%s315 + $0x8] sm:$0xff]
        %v323 = vld [vmem:[%s315 + $0x10] sm:$0xff]
        %v324 = vld [vmem:[%s315 + $0x18] sm:$0xff]
        %v325 = vld [vmem:[%s315 + $0x20] sm:$0xff]
        %v326 = vld [vmem:[%s315 + $0x28] sm:$0xff]
        %v327 = vld [vmem:[%s315 + $0x30] sm:$0xff]
        %v328 = vld [vmem:[%s315 + $0x38] sm:$0xff]
        %v329 = vld [vmem:[%s315 + $0x40] sm:$0xff]
        %v330 = vld [vmem:[%s315 + $0x48] sm:$0xff]
        %v331 = vld [vmem:[%s315 + $0x50] sm:$0xff]
        %v332 = vld [vmem:[%s315 + $0x58] sm:$0xff]
        %v333 = vld [vmem:[#allocation2] sm:$0xff]
        %v334 = vld [vmem:[#allocation2 + $0x8] sm:$0xff]
        %v335 = vld [vmem:[#allocation2 + $0x10] sm:$0xff]
        %v336 = vld [vmem:[#allocation2 + $0x18] sm:$0xff]
        %v337 = vld [vmem:[#allocation2 + $0x20] sm:$0xff]
        %v338 = vld [vmem:[#allocation2 + $0x28] sm:$0xff]
        %v339 = vld [vmem:[#allocation2 + $0x30] sm:$0xff]
        %v340 = vld [vmem:[#allocation2 + $0x38] sm:$0xff]
        %v341 = vld [vmem:[#allocation2 + $0x40] sm:$0xff]
        %v342 = vld [vmem:[#allocation2 + $0x48] sm:$0xff]
        %v343 = vld [vmem:[#allocation2 + $0x50] sm:$0xff]
        %v344 = vld [vmem:[#allocation2 + $0x58] sm:$0xff]
        %v345 = vld [vmem:[#allocation2 + $0x60] sm:$0xff]
        %v346 = vld [vmem:[#allocation2 + $0x68] sm:$0xff]
        %v347 = vld [vmem:[#allocation2 + $0x70] sm:$0xff]
        %v348 = vld [vmem:[#allocation2 + $0x78] sm:$0xff]
        %v349 = vld [vmem:[#allocation2 + $0x80] sm:$0xff]
        %v350 = vld [vmem:[#allocation2 + $0x88] sm:$0xff]
        %v351 = vld [vmem:[#allocation2 + $0x90] sm:$0xff]
        %v352 = vld [vmem:[#allocation2 + $0x98] sm:$0xff]
        %v353 = vld [vmem:[#allocation2 + $0xa0] sm:$0xff]
        %v354 = vld [vmem:[#allocation2 + $0xa8] sm:$0xff]
        %v355 = vld [vmem:[#allocation2 + $0xb0] sm:$0xff]
        %v356 = vld [vmem:[#allocation2 + $0xb8] sm:$0xff]
        %v357 = vld [vmem:[#allocation2 + $0xc0] sm:$0xff]
        %v358 = vld [vmem:[#allocation2 + $0xc8] sm:$0xff]
        %v359 = vld [vmem:[#allocation2 + $0xd0] sm:$0xff]
        %v360 = vld [vmem:[#allocation2 + $0xd8] sm:$0xff]
        %v361 = vld [vmem:[#allocation2 + $0xe0] sm:$0xff]
        %v362 = vld [vmem:[#allocation2 + $0xe8] sm:$0xff]
        %v363 = vld [vmem:[#allocation2 + $0xf0] sm:$0xff]
        %v364 = vld [vmem:[#allocation2 + $0xf8] sm:$0xff]
        %v365 = vld [vmem:[#allocation2 + $0x100] sm:$0xff]
        %v366 = vld [vmem:[#allocation2 + $0x108] sm:$0xff]
        %v367 = vld [vmem:[#allocation2 + $0x110] sm:$0xff]
        %v368 = vld [vmem:[#allocation2 + $0x118] sm:$0xff]
        %v369 = vld [vmem:[#allocation2 + $0x120] sm:$0xff]
        %v370 = vld [vmem:[#allocation2 + $0x128] sm:$0xff]
        %v371 = vld [vmem:[#allocation2 + $0x130] sm:$0xff]
        %v372 = vld [vmem:[#allocation2 + $0x138] sm:$0xff]
        %v373 = vld [vmem:[#allocation2 + $0x140] sm:$0xff]
        %v374 = vld [vmem:[#allocation2 + $0x148] sm:$0xff]
        %v375 = vld [vmem:[#allocation2 + $0x150] sm:$0xff]
        %v376 = vld [vmem:[#allocation2 + $0x158] sm:$0xff]
        %v377 = vld [vmem:[#allocation2 + $0x160] sm:$0xff]
        %v378 = vld [vmem:[#allocation2 + $0x168] sm:$0xff]
        %v379 = vld [vmem:[#allocation2 + $0x170] sm:$0xff]
        %v380 = vld [vmem:[#allocation2 + $0x178] sm:$0xff]
        %v381 = vld [vmem:[#allocation2 + $0x180] sm:$0xff]
        %v382 = vld [vmem:[#allocation2 + $0x188] sm:$0xff]
        %v383 = vld [vmem:[#allocation2 + $0x190] sm:$0xff]
        %v384 = vld [vmem:[#allocation2 + $0x198] sm:$0xff]
        %v385 = vld [vmem:[#allocation2 + $0x1a0] sm:$0xff]
        %v386 = vld [vmem:[#allocation2 + $0x1a8] sm:$0xff]
        %v387 = vld [vmem:[#allocation2 + $0x1b0] sm:$0xff]
        %v388 = vld [vmem:[#allocation2 + $0x1b8] sm:$0xff]
        %v389 = vld [vmem:[#allocation2 + $0x1c0] sm:$0xff]
        %v390 = vld [vmem:[#allocation2 + $0x1c8] sm:$0xff]
        %v391 = vld [vmem:[#allocation2 + $0x1d0] sm:$0xff]
        %v392 = vld [vmem:[#allocation2 + $0x1d8] sm:$0xff]
        %v393 = vld [vmem:[#allocation2 + $0x1e0] sm:$0xff]
        %v394 = vld [vmem:[#allocation2 + $0x1e8] sm:$0xff]
        %v395 = vld [vmem:[#allocation2 + $0x1f0] sm:$0xff]
        %v396 = vld [vmem:[#allocation2 + $0x1f8] sm:$0xff]
        %v397 = vld [vmem:[#allocation2 + $0x200] sm:$0xff]
        %v398 = vld [vmem:[#allocation2 + $0x208] sm:$0xff]
        %v399 = vld [vmem:[#allocation2 + $0x210] sm:$0xff]
        %v400 = vld [vmem:[#allocation2 + $0x218] sm:$0xff]
        %v401 = vld [vmem:[#allocation2 + $0x220] sm:$0xff]
        %v402 = vld [vmem:[#allocation2 + $0x228] sm:$0xff]
        %v403 = vld [vmem:[#allocation2 + $0x230] sm:$0xff]
        %v404 = vld [vmem:[#allocation2 + $0x238] sm:$0xff]
        %v405 = vld [vmem:[#allocation2 + $0x240] sm:$0xff]
        %v406 = vld [vmem:[#allocation2 + $0x248] sm:$0xff]
        %v407 = vld [vmem:[#allocation2 + $0x250] sm:$0xff]
        %v408 = vld [vmem:[#allocation2 + $0x258] sm:$0xff]
        %v409 = vld [vmem:[#allocation2 + $0x260] sm:$0xff]
        %v410 = vld [vmem:[#allocation2 + $0x268] sm:$0xff]
        %v411 = vld [vmem:[#allocation2 + $0x270] sm:$0xff]
        %v412 = vld [vmem:[#allocation2 + $0x278] sm:$0xff]
        %v413 = vld [vmem:[#allocation2 + $0x280] sm:$0xff]
        %v414 = vld [vmem:[#allocation2 + $0x288] sm:$0xff]
        %v415 = vld [vmem:[#allocation2 + $0x290] sm:$0xff]
        %v416 = vld [vmem:[#allocation2 + $0x298] sm:$0xff]
        %v417 = vld [vmem:[#allocation2 + $0x2a0] sm:$0xff]
        %v418 = vld [vmem:[#allocation2 + $0x2a8] sm:$0xff]
        %v419 = vld [vmem:[#allocation2 + $0x2b0] sm:$0xff]
        %v420 = vld [vmem:[#allocation2 + $0x2b8] sm:$0xff]
        %v421 = vld [vmem:[#allocation2 + $0x2c0] sm:$0xff]
        %v422 = vld [vmem:[#allocation2 + $0x2c8] sm:$0xff]
        %v423 = vld [vmem:[#allocation2 + $0x2d0] sm:$0xff]
        %v424 = vld [vmem:[#allocation2 + $0x2d8] sm:$0xff]
        %v425 = vld [vmem:[#allocation2 + $0x2e0] sm:$0xff]
        %v426 = vld [vmem:[#allocation2 + $0x2e8] sm:$0xff]
        %v427 = vld [vmem:[#allocation2 + $0x2f0] sm:$0xff]
        %v428 = vld [vmem:[#allocation2 + $0x2f8] sm:$0xff]
        %v429 = vld [vmem:[#allocation2 + $0x300] sm:$0xff]
        %v430 = vld [vmem:[#allocation2 + $0x308] sm:$0xff]
        %v431 = vld [vmem:[#allocation2 + $0x310] sm:$0xff]
        %v432 = vld [vmem:[#allocation2 + $0x318] sm:$0xff]
        %v433 = vld [vmem:[#allocation2 + $0x320] sm:$0xff]
        %v434 = vld [vmem:[#allocation2 + $0x328] sm:$0xff]
        %v435 = vld [vmem:[#allocation2 + $0x330] sm:$0xff]
        %v436 = vld [vmem:[#allocation2 + $0x338] sm:$0xff]
        %v437 = vld [vmem:[#allocation2 + $0x340] sm:$0xff]
        %v438 = vld [vmem:[#allocation2 + $0x348] sm:$0xff]
        %v439 = vld [vmem:[#allocation2 + $0x350] sm:$0xff]
        %v440 = vld [vmem:[#allocation2 + $0x358] sm:$0xff]
        %vm441 = vcmask 785408
        %v443 = vsel %vm441, %v333, 0
        %v446 = vsel %vm441, %v334, 0
        %v449 = vsel %vm441, %v335, 0
        %v452 = vsel %vm441, %v336, 0
        %v455 = vsel %vm441, %v337, 0
        %v458 = vsel %vm441, %v338, 0
        %v461 = vsel %vm441, %v339, 0
        %v464 = vsel %vm441, %v340, 0
        %v467 = vsel %vm441, %v341, 0
        %v470 = vsel %vm441, %v342, 0
        %v473 = vsel %vm441, %v343, 0
        %v476 = vsel %vm441, %v344, 0
        %v479 = vsel %vm441, %v345, 0
        %v482 = vsel %vm441, %v346, 0
        %v485 = vsel %vm441, %v347, 0
        %v488 = vsel %vm441, %v348, 0
        %v491 = vsel %vm441, %v349, 0
        %v494 = vsel %vm441, %v350, 0
        %v497 = vsel %vm441, %v351, 0
        %v500 = vsel %vm441, %v352, 0
        %v503 = vsel %vm441, %v353, 0
        %v506 = vsel %vm441, %v354, 0
        %v509 = vsel %vm441, %v355, 0
        %v512 = vsel %vm441, %v356, 0
        %v515 = vsel %vm441, %v357, 0
        %v518 = vsel %vm441, %v358, 0
        %v521 = vsel %vm441, %v359, 0
        %v524 = vsel %vm441, %v360, 0
        %v527 = vsel %vm441, %v361, 0
        %v530 = vsel %vm441, %v362, 0
        %v533 = vsel %vm441, %v363, 0
        %v536 = vsel %vm441, %v364, 0
        %v539 = vsel %vm441, %v365, 0
        %v542 = vsel %vm441, %v366, 0
        %v545 = vsel %vm441, %v367, 0
        %v548 = vsel %vm441, %v368, 0
        %v551 = vsel %vm441, %v369, 0
        %v554 = vsel %vm441, %v370, 0
        %v557 = vsel %vm441, %v371, 0
        %v560 = vsel %vm441, %v372, 0
        %v563 = vsel %vm441, %v373, 0
        %v566 = vsel %vm441, %v374, 0
        %v569 = vsel %vm441, %v375, 0
        %v572 = vsel %vm441, %v376, 0
        %v575 = vsel %vm441, %v377, 0
        %v578 = vsel %vm441, %v378, 0
        %v581 = vsel %vm441, %v379, 0
        %v584 = vsel %vm441, %v380, 0
        %v587 = vsel %vm441, %v381, 0
        %v590 = vsel %vm441, %v382, 0
        %v593 = vsel %vm441, %v383, 0
        %v596 = vsel %vm441, %v384, 0
        %v599 = vsel %vm441, %v385, 0
        %v602 = vsel %vm441, %v386, 0
        %v605 = vsel %vm441, %v387, 0
        %v608 = vsel %vm441, %v388, 0
        %v611 = vsel %vm441, %v389, 0
        %v614 = vsel %vm441, %v390, 0
        %v617 = vsel %vm441, %v391, 0
        %v620 = vsel %vm441, %v392, 0
        %v623 = vsel %vm441, %v393, 0
        %v626 = vsel %vm441, %v394, 0
        %v629 = vsel %vm441, %v395, 0
        %v632 = vsel %vm441, %v396, 0
        %v635 = vsel %vm441, %v397, 0
        %v638 = vsel %vm441, %v398, 0
        %v641 = vsel %vm441, %v399, 0
        %v644 = vsel %vm441, %v400, 0
        %v647 = vsel %vm441, %v401, 0
        %v650 = vsel %vm441, %v402, 0
        %v653 = vsel %vm441, %v403, 0
        %v656 = vsel %vm441, %v404, 0
        %v659 = vsel %vm441, %v405, 0
        %v662 = vsel %vm441, %v406, 0
        %v665 = vsel %vm441, %v407, 0
        %v668 = vsel %vm441, %v408, 0
        %v671 = vsel %vm441, %v409, 0
        %v674 = vsel %vm441, %v410, 0
        %v677 = vsel %vm441, %v411, 0
        %v680 = vsel %vm441, %v412, 0
        %v683 = vsel %vm441, %v413, 0
        %v686 = vsel %vm441, %v414, 0
        %v689 = vsel %vm441, %v415, 0
        %v692 = vsel %vm441, %v416, 0
        %v695 = vsel %vm441, %v417, 0
        %v698 = vsel %vm441, %v418, 0
        %v701 = vsel %vm441, %v419, 0
        %v704 = vsel %vm441, %v420, 0
        %v707 = vsel %vm441, %v421, 0
        %v710 = vsel %vm441, %v422, 0
        %v713 = vsel %vm441, %v423, 0
        %v716 = vsel %vm441, %v424, 0
        %v719 = vsel %vm441, %v425, 0
        %v722 = vsel %vm441, %v426, 0
        %v725 = vsel %vm441, %v427, 0
        %v728 = vsel %vm441, %v428, 0
        %v731 = vsel %vm441, %v429, 0
        %v734 = vsel %vm441, %v430, 0
        %v737 = vsel %vm441, %v431, 0
        %v740 = vsel %vm441, %v432, 0
        %v743 = vsel %vm441, %v433, 0
        %v746 = vsel %vm441, %v434, 0
        %v749 = vsel %vm441, %v435, 0
        %v752 = vsel %vm441, %v436, 0
        %v755 = vsel %vm441, %v437, 0
        %v758 = vsel %vm441, %v438, 0
        %v761 = vsel %vm441, %v439, 0
        %v764 = vsel %vm441, %v440, 0
        %766 = vmatprep.subr.mxu0 0.0
        %767 = vmatpush1.msra.mxu0 %v321
        %768 = vmatprep.subr.mxu0 0.0
        %769 = vmatpush1.msra.mxu0 %v322
        %770 = vmatprep.subr.mxu0 0.0
        %771 = vmatpush1.msra.mxu0 %v323
        %772 = vmatprep.subr.mxu0 0.0
        %773 = vmatpush1.msra.mxu0 %v324
        %774 = vmatprep.subr.mxu0 0.0
        %775 = vmatpush1.msra.mxu0 %v325
        %776 = vmatprep.subr.mxu0 0.0
        %777 = vmatpush1.msra.mxu0 %v326
        %778 = vmatprep.subr.mxu0 0.0
        %779 = vmatpush1.msra.mxu0 %v327
        %780 = vmatprep.subr.mxu0 0.0
        %781 = vmatpush1.msra.mxu0 %v328
        %782 = vmatprep.subr.mxu0 0.0
        %783 = vmatpush1.msra.mxu0 %v329
        %784 = vmatprep.subr.mxu0 0.0
        %785 = vmatpush1.msra.mxu0 %v330
        %786 = vmatprep.subr.mxu0 0.0
        %787 = vmatpush1.msra.mxu0 %v331
        %788 = vmatprep.subr.mxu0 0.0
        %789 = vmatpush1.msra.mxu0 %v332
        %790 = vmatprep.subr.mxu0 0.0
        %791 = vmatpush1.msra.mxu0 0.0
        %792 = vmatprep.subr.mxu0 0.0
        %793 = vmatpush1.msra.mxu0 0.0
        %794 = vmatprep.subr.mxu0 0.0
        %795 = vmatpush1.msra.mxu0 0.0
        %796 = vmatprep.subr.mxu0 0.0
        %797 = vmatpush1.msra.mxu0 0.0
        %798 = vmatprep.subr.mxu0 0.0
        %799 = vmatpush1.msra.mxu0 0.0
        %800 = vmatprep.subr.mxu0 0.0
        %801 = vmatpush1.msra.mxu0 0.0
        %802 = vmatprep.subr.mxu0 0.0
        %803 = vmatpush1.msra.mxu0 0.0
        %804 = vmatprep.subr.mxu0 0.0
        %805 = vmatpush1.msra.mxu0 0.0
        %806 = vmatprep.subr.mxu0 0.0
        %807 = vmatpush1.msra.mxu0 0.0
        %808 = vmatprep.subr.mxu0 0.0
        %809 = vmatpush1.msra.mxu0 0.0
        %810 = vmatprep.subr.mxu0 0.0
        %811 = vmatpush1.msra.mxu0 0.0
        %812 = vmatprep.subr.mxu0 0.0
        %813 = vmatpush1.msra.mxu0 0.0
        %814 = vmatprep.subr.mxu0 0.0
        %815 = vmatpush1.msra.mxu0 0.0
        %816 = vmatprep.subr.mxu0 0.0
        %817 = vmatpush1.msra.mxu0 0.0
        %818 = vmatprep.subr.mxu0 0.0
        %819 = vmatpush1.msra.mxu0 0.0
        %820 = vmatprep.subr.mxu0 0.0
        %821 = vmatpush1.msra.mxu0 0.0
        %822 = vmatprep.subr.mxu0 0.0
        %823 = vmatpush1.msra.mxu0 0.0
        %824 = vmatprep.subr.mxu0 0.0
        %825 = vmatpush1.msra.mxu0 0.0
        %826 = vmatprep.subr.mxu0 0.0
        %827 = vmatpush1.msra.mxu0 0.0
        %828 = vmatprep.subr.mxu0 0.0
        %829 = vmatpush1.msra.mxu0 0.0
        %830 = vmatprep.mubr.f32.mxu0 0.0
        %831 = vmatmul.mubr.f32.gmra.mrb[0].mxu0 %v443
        %v832 = vpop.f32.mrb[0].mxu0
        %v833 = vadd.f32 0.0, %v832
        %v834 = vpop.f32.mrb[0].mxu0
        %835 = vmatprep.mubr.f32.mxu0 0.0
        %836 = vmatmul.mubr.f32.gmra.mrb[0].mxu0 %v446
        %v837 = vpop.f32.mrb[0].mxu0
        %v838 = vadd.f32 0.0, %v837
        %v839 = vpop.f32.mrb[0].mxu0
        %840 = vmatprep.mubr.f32.mxu0 0.0
        %841 = vmatmul.mubr.f32.gmra.mrb[0].mxu0 %v449
        %v842 = vpop.f32.mrb[0].mxu0
        %v843 = vadd.f32 0.0, %v842
        %v844 = vpop.f32.mrb[0].mxu0
        %845 = vmatprep.mubr.f32.mxu0 0.0
        %846 = vmatmul.mubr.f32.gmra.mrb[0].mxu0 %v452
        %v847 = vpop.f32.mrb[0].mxu0
        %v848 = vadd.f32 0.0, %v847
        %v849 = vpop.f32.mrb[0].mxu0
        %850 = vmatprep.mubr.f32.mxu0 0.0
        %851 = vmatmul.mubr.f32.gmra.mrb[0].mxu0 %v455
        %v852 = vpop.f32.mrb[0].mxu0
        %v853 = vadd.f32 0.0, %v852
        %v854 = vpop.f32.mrb[0].mxu0
        %855 = vmatprep.mubr.f32.mxu0 0.0
        %856 = vmatmul.mubr.f32.gmra.mrb[0].mxu0 %v458
        %v857 = vpop.f32.mrb[0].mxu0
        %v858 = vadd.f32 0.0, %v857
        %v859 = vpop.f32.mrb[0].mxu0
        %860 = vmatprep.mubr.f32.mxu0 0.0
        %861 = vmatmul.mubr.f32.gmra.mrb[0].mxu0 %v461
        %v862 = vpop.f32.mrb[0].mxu0
        %v863 = vadd.f32 0.0, %v862
        %v864 = vpop.f32.mrb[0].mxu0
        %865 = vmatprep.mubr.f32.mxu0 0.0
        %866 = vmatmul.mubr.f32.gmra.mrb[0].mxu0 %v464
        %v867 = vpop.f32.mrb[0].mxu0
        %v868 = vadd.f32 0.0, %v867
        %v869 = vpop.f32.mrb[0].mxu0
        %870 = vmatprep.mubr.f32.mxu0 0.0
        %871 = vmatmul.mubr.f32.gmra.mrb[0].mxu0 %v467
        %v872 = vpop.f32.mrb[0].mxu0
        %v873 = vadd.f32 0.0, %v872
        %v874 = vpop.f32.mrb[0].mxu0
        %875 = vmatprep.mubr.f32.mxu0 0.0
        %876 = vmatmul.mubr.f32.gmra.mrb[0].mxu0 %v470
        %v877 = vpop.f32.mrb[0].mxu0
        %v878 = vadd.f32 0.0, %v877
        %v879 = vpop.f32.mrb[0].mxu0
        %880 = vmatprep.mubr.f32.mxu0 0.0
        %881 = vmatmul.mubr.f32.gmra.mrb[0].mxu0 %v473
        %v882 = vpop.f32.mrb[0].mxu0
        %v883 = vadd.f32 0.0, %v882
        %v884 = vpop.f32.mrb[0].mxu0
        %885 = vmatprep.mubr.f32.mxu0 0.0
        %886 = vmatmul.mubr.f32.gmra.mrb[0].mxu0 %v476
        %v887 = vpop.f32.mrb[0].mxu0
        %v888 = vadd.f32 0.0, %v887
        %v889 = vpop.f32.mrb[0].mxu0
        %890 = vmatprep.mubr.f32.mxu0 0.0
        %891 = vmatmul.mubr.f32.gmra.mrb[0].mxu0 %v479
        %v892 = vpop.f32.mrb[0].mxu0
        %v893 = vadd.f32 0.0, %v892
        %v894 = vpop.f32.mrb[0].mxu0
        %895 = vmatprep.mubr.f32.mxu0 0.0
        %896 = vmatmul.mubr.f32.gmra.mrb[0].mxu0 %v482
        %v897 = vpop.f32.mrb[0].mxu0
        %v898 = vadd.f32 0.0, %v897
        %v899 = vpop.f32.mrb[0].mxu0
        %900 = vmatprep.mubr.f32.mxu0 0.0
        %901 = vmatmul.mubr.f32.gmra.mrb[0].mxu0 %v485
        %v902 = vpop.f32.mrb[0].mxu0
        %v903 = vadd.f32 0.0, %v902
        %v904 = vpop.f32.mrb[0].mxu0
        %905 = vmatprep.mubr.f32.mxu0 0.0
        %906 = vmatmul.mubr.f32.gmra.mrb[0].mxu0 %v488
        %v907 = vpop.f32.mrb[0].mxu0
        %v908 = vadd.f32 0.0, %v907
        %v909 = vpop.f32.mrb[0].mxu0
        %910 = vmatprep.mubr.f32.mxu0 0.0
        %911 = vmatmul.mubr.f32.gmra.mrb[0].mxu0 %v491
        %v912 = vpop.f32.mrb[0].mxu0
        %v913 = vadd.f32 0.0, %v912
        %v914 = vpop.f32.mrb[0].mxu0
        %915 = vmatprep.mubr.f32.mxu0 0.0
        %916 = vmatmul.mubr.f32.gmra.mrb[0].mxu0 %v494
        %v917 = vpop.f32.mrb[0].mxu0
        %v918 = vadd.f32 0.0, %v917
        %v919 = vpop.f32.mrb[0].mxu0
        %920 = vmatprep.mubr.f32.mxu0 0.0
        %921 = vmatmul.mubr.f32.gmra.mrb[0].mxu0 %v497
        %v922 = vpop.f32.mrb[0].mxu0
        %v923 = vadd.f32 0.0, %v922
        %v924 = vpop.f32.mrb[0].mxu0
        %925 = vmatprep.mubr.f32.mxu0 0.0
        %926 = vmatmul.mubr.f32.gmra.mrb[0].mxu0 %v500
        %v927 = vpop.f32.mrb[0].mxu0
        %v928 = vadd.f32 0.0, %v927
        %v929 = vpop.f32.mrb[0].mxu0
        %930 = vmatprep.mubr.f32.mxu0 0.0
        %931 = vmatmul.mubr.f32.gmra.mrb[0].mxu0 %v503
        %v932 = vpop.f32.mrb[0].mxu0
        %v933 = vadd.f32 0.0, %v932
        %v934 = vpop.f32.mrb[0].mxu0
        %935 = vmatprep.mubr.f32.mxu0 0.0
        %936 = vmatmul.mubr.f32.gmra.mrb[0].mxu0 %v506
        %v937 = vpop.f32.mrb[0].mxu0
        %v938 = vadd.f32 0.0, %v937
        %v939 = vpop.f32.mrb[0].mxu0
        %940 = vmatprep.mubr.f32.mxu0 0.0
        %941 = vmatmul.mubr.f32.gmra.mrb[0].mxu0 %v509
        %v942 = vpop.f32.mrb[0].mxu0
        %v943 = vadd.f32 0.0, %v942
        %v944 = vpop.f32.mrb[0].mxu0
        %945 = vmatprep.mubr.f32.mxu0 0.0
        %946 = vmatmul.mubr.f32.gmra.mrb[0].mxu0 %v512
        %v947 = vpop.f32.mrb[0].mxu0
        %v948 = vadd.f32 0.0, %v947
        %v949 = vpop.f32.mrb[0].mxu0
        %950 = vmatprep.mubr.f32.mxu0 0.0
        %951 = vmatmul.mubr.f32.gmra.mrb[0].mxu0 %v515
        %v952 = vpop.f32.mrb[0].mxu0
        %v953 = vadd.f32 0.0, %v952
        %v954 = vpop.f32.mrb[0].mxu0
        %955 = vmatprep.mubr.f32.mxu0 0.0
        %956 = vmatmul.mubr.f32.gmra.mrb[0].mxu0 %v518
        %v957 = vpop.f32.mrb[0].mxu0
        %v958 = vadd.f32 0.0, %v957
        %v959 = vpop.f32.mrb[0].mxu0
        %960 = vmatprep.mubr.f32.mxu0 0.0
        %961 = vmatmul.mubr.f32.gmra.mrb[0].mxu0 %v521
        %v962 = vpop.f32.mrb[0].mxu0
        %v963 = vadd.f32 0.0, %v962
        %v964 = vpop.f32.mrb[0].mxu0
        %965 = vmatprep.mubr.f32.mxu0 0.0
        %966 = vmatmul.mubr.f32.gmra.mrb[0].mxu0 %v524
        %v967 = vpop.f32.mrb[0].mxu0
        %v968 = vadd.f32 0.0, %v967
        %v969 = vpop.f32.mrb[0].mxu0
        %970 = vmatprep.mubr.f32.mxu0 0.0
        %971 = vmatmul.mubr.f32.gmra.mrb[0].mxu0 %v527
        %v972 = vpop.f32.mrb[0].mxu0
        %v973 = vadd.f32 0.0, %v972
        %v974 = vpop.f32.mrb[0].mxu0
        %975 = vmatprep.mubr.f32.mxu0 0.0
        %976 = vmatmul.mubr.f32.gmra.mrb[0].mxu0 %v530
        %v977 = vpop.f32.mrb[0].mxu0
        %v978 = vadd.f32 0.0, %v977
        %v979 = vpop.f32.mrb[0].mxu0
        %980 = vmatprep.mubr.f32.mxu0 0.0
        %981 = vmatmul.mubr.f32.gmra.mrb[0].mxu0 %v533
        %v982 = vpop.f32.mrb[0].mxu0
        %v983 = vadd.f32 0.0, %v982
        %v984 = vpop.f32.mrb[0].mxu0
        %985 = vmatprep.mubr.f32.mxu0 0.0
        %986 = vmatmul.mubr.f32.gmra.mrb[0].mxu0 %v536
        %v987 = vpop.f32.mrb[0].mxu0
        %v988 = vadd.f32 0.0, %v987
        %v989 = vpop.f32.mrb[0].mxu0
        %990 = vmatprep.mubr.f32.mxu0 0.0
        %991 = vmatmul.mubr.f32.gmra.mrb[0].mxu0 %v539
        %v992 = vpop.f32.mrb[0].mxu0
        %v993 = vadd.f32 0.0, %v992
        %v994 = vpop.f32.mrb[0].mxu0
        %995 = vmatprep.mubr.f32.mxu0 0.0
        %996 = vmatmul.mubr.f32.gmra.mrb[0].mxu0 %v542
        %v997 = vpop.f32.mrb[0].mxu0
        %v998 = vadd.f32 0.0, %v997
        %v999 = vpop.f32.mrb[0].mxu0
        %1000 = vmatprep.mubr.f32.mxu0 0.0
        %1001 = vmatmul.mubr.f32.gmra.mrb[0].mxu0 %v545
        %v1002 = vpop.f32.mrb[0].mxu0
        %v1003 = vadd.f32 0.0, %v1002
        %v1004 = vpop.f32.mrb[0].mxu0
        %1005 = vmatprep.mubr.f32.mxu0 0.0
        %1006 = vmatmul.mubr.f32.gmra.mrb[0].mxu0 %v548
        %v1007 = vpop.f32.mrb[0].mxu0
        %v1008 = vadd.f32 0.0, %v1007
        %v1009 = vpop.f32.mrb[0].mxu0
        %1010 = vmatprep.mubr.f32.mxu0 0.0
        %1011 = vmatmul.mubr.f32.gmra.mrb[0].mxu0 %v551
        %v1012 = vpop.f32.mrb[0].mxu0
        %v1013 = vadd.f32 0.0, %v1012
        %v1014 = vpop.f32.mrb[0].mxu0
        %1015 = vmatprep.mubr.f32.mxu0 0.0
        %1016 = vmatmul.mubr.f32.gmra.mrb[0].mxu0 %v554
        %v1017 = vpop.f32.mrb[0].mxu0
        %v1018 = vadd.f32 0.0, %v1017
        %v1019 = vpop.f32.mrb[0].mxu0
        %1020 = vmatprep.mubr.f32.mxu0 0.0
        %1021 = vmatmul.mubr.f32.gmra.mrb[0].mxu0 %v557
        %v1022 = vpop.f32.mrb[0].mxu0
        %v1023 = vadd.f32 0.0, %v1022
        %v1024 = vpop.f32.mrb[0].mxu0
        %1025 = vmatprep.mubr.f32.mxu0 0.0
        %1026 = vmatmul.mubr.f32.gmra.mrb[0].mxu0 %v560
        %v1027 = vpop.f32.mrb[0].mxu0
        %v1028 = vadd.f32 0.0, %v1027
        %v1029 = vpop.f32.mrb[0].mxu0
        %1030 = vmatprep.mubr.f32.mxu0 0.0
        %1031 = vmatmul.mubr.f32.gmra.mrb[0].mxu0 %v563
        %v1032 = vpop.f32.mrb[0].mxu0
        %v1033 = vadd.f32 0.0, %v1032
        %v1034 = vpop.f32.mrb[0].mxu0
        %1035 = vmatprep.mubr.f32.mxu0 0.0
        %1036 = vmatmul.mubr.f32.gmra.mrb[0].mxu0 %v566
        %v1037 = vpop.f32.mrb[0].mxu0
        %v1038 = vadd.f32 0.0, %v1037
        %v1039 = vpop.f32.mrb[0].mxu0
        %1040 = vmatprep.mubr.f32.mxu0 0.0
        %1041 = vmatmul.mubr.f32.gmra.mrb[0].mxu0 %v569
        %v1042 = vpop.f32.mrb[0].mxu0
        %v1043 = vadd.f32 0.0, %v1042
        %v1044 = vpop.f32.mrb[0].mxu0
        %1045 = vmatprep.mubr.f32.mxu0 0.0
        %1046 = vmatmul.mubr.f32.gmra.mrb[0].mxu0 %v572
        %v1047 = vpop.f32.mrb[0].mxu0
        %v1048 = vadd.f32 0.0, %v1047
        %v1049 = vpop.f32.mrb[0].mxu0
        %1050 = vmatprep.mubr.f32.mxu0 0.0
        %1051 = vmatmul.mubr.f32.gmra.mrb[0].mxu0 %v575
        %v1052 = vpop.f32.mrb[0].mxu0
        %v1053 = vadd.f32 0.0, %v1052
        %v1054 = vpop.f32.mrb[0].mxu0
        %1055 = vmatprep.mubr.f32.mxu0 0.0
        %1056 = vmatmul.mubr.f32.gmra.mrb[0].mxu0 %v578
        %v1057 = vpop.f32.mrb[0].mxu0
        %v1058 = vadd.f32 0.0, %v1057
        %v1059 = vpop.f32.mrb[0].mxu0
        %1060 = vmatprep.mubr.f32.mxu0 0.0
        %1061 = vmatmul.mubr.f32.gmra.mrb[0].mxu0 %v581
        %v1062 = vpop.f32.mrb[0].mxu0
        %v1063 = vadd.f32 0.0, %v1062
        %v1064 = vpop.f32.mrb[0].mxu0
        %1065 = vmatprep.mubr.f32.mxu0 0.0
        %1066 = vmatmul.mubr.f32.gmra.mrb[0].mxu0 %v584
        %v1067 = vpop.f32.mrb[0].mxu0
        %v1068 = vadd.f32 0.0, %v1067
        %v1069 = vpop.f32.mrb[0].mxu0
        %1070 = vmatprep.mubr.f32.mxu0 0.0
        %1071 = vmatmul.mubr.f32.gmra.mrb[0].mxu0 %v587
        %v1072 = vpop.f32.mrb[0].mxu0
        %v1073 = vadd.f32 0.0, %v1072
        %v1074 = vpop.f32.mrb[0].mxu0
        %1075 = vmatprep.mubr.f32.mxu0 0.0
        %1076 = vmatmul.mubr.f32.gmra.mrb[0].mxu0 %v590
        %v1077 = vpop.f32.mrb[0].mxu0
        %v1078 = vadd.f32 0.0, %v1077
        %v1079 = vpop.f32.mrb[0].mxu0
        %1080 = vmatprep.mubr.f32.mxu0 0.0
        %1081 = vmatmul.mubr.f32.gmra.mrb[0].mxu0 %v593
        %v1082 = vpop.f32.mrb[0].mxu0
        %v1083 = vadd.f32 0.0, %v1082
        %v1084 = vpop.f32.mrb[0].mxu0
        %1085 = vmatprep.mubr.f32.mxu0 0.0
        %1086 = vmatmul.mubr.f32.gmra.mrb[0].mxu0 %v596
        %v1087 = vpop.f32.mrb[0].mxu0
        %v1088 = vadd.f32 0.0, %v1087
        %v1089 = vpop.f32.mrb[0].mxu0
        %1090 = vmatprep.mubr.f32.mxu0 0.0
        %1091 = vmatmul.mubr.f32.gmra.mrb[0].mxu0 %v599
        %v1092 = vpop.f32.mrb[0].mxu0
        %v1093 = vadd.f32 0.0, %v1092
        %v1094 = vpop.f32.mrb[0].mxu0
        %1095 = vmatprep.mubr.f32.mxu0 0.0
        %1096 = vmatmul.mubr.f32.gmra.mrb[0].mxu0 %v602
        %v1097 = vpop.f32.mrb[0].mxu0
        %v1098 = vadd.f32 0.0, %v1097
        %v1099 = vpop.f32.mrb[0].mxu0
        %1100 = vmatprep.mubr.f32.mxu0 0.0
        %1101 = vmatmul.mubr.f32.gmra.mrb[0].mxu0 %v605
        %v1102 = vpop.f32.mrb[0].mxu0
        %v1103 = vadd.f32 0.0, %v1102
        %v1104 = vpop.f32.mrb[0].mxu0
        %1105 = vmatprep.mubr.f32.mxu0 0.0
        %1106 = vmatmul.mubr.f32.gmra.mrb[0].mxu0 %v608
        %v1107 = vpop.f32.mrb[0].mxu0
        %v1108 = vadd.f32 0.0, %v1107
        %v1109 = vpop.f32.mrb[0].mxu0
        %1110 = vmatprep.mubr.f32.mxu0 0.0
        %1111 = vmatmul.mubr.f32.gmra.mrb[0].mxu0 %v611
        %v1112 = vpop.f32.mrb[0].mxu0
        %v1113 = vadd.f32 0.0, %v1112
        %v1114 = vpop.f32.mrb[0].mxu0
        %1115 = vmatprep.mubr.f32.mxu0 0.0
        %1116 = vmatmul.mubr.f32.gmra.mrb[0].mxu0 %v614
        %v1117 = vpop.f32.mrb[0].mxu0
        %v1118 = vadd.f32 0.0, %v1117
        %v1119 = vpop.f32.mrb[0].mxu0
        %1120 = vmatprep.mubr.f32.mxu0 0.0
        %1121 = vmatmul.mubr.f32.gmra.mrb[0].mxu0 %v617
        %v1122 = vpop.f32.mrb[0].mxu0
        %v1123 = vadd.f32 0.0, %v1122
        %v1124 = vpop.f32.mrb[0].mxu0
        %1125 = vmatprep.mubr.f32.mxu0 0.0
        %1126 = vmatmul.mubr.f32.gmra.mrb[0].mxu0 %v620
        %v1127 = vpop.f32.mrb[0].mxu0
        %v1128 = vadd.f32 0.0, %v1127
        %v1129 = vpop.f32.mrb[0].mxu0
        %1130 = vmatprep.mubr.f32.mxu0 0.0
        %1131 = vmatmul.mubr.f32.gmra.mrb[0].mxu0 %v623
        %v1132 = vpop.f32.mrb[0].mxu0
        %v1133 = vadd.f32 0.0, %v1132
        %v1134 = vpop.f32.mrb[0].mxu0
        %1135 = vmatprep.mubr.f32.mxu0 0.0
        %1136 = vmatmul.mubr.f32.gmra.mrb[0].mxu0 %v626
        %v1137 = vpop.f32.mrb[0].mxu0
        %v1138 = vadd.f32 0.0, %v1137
        %v1139 = vpop.f32.mrb[0].mxu0
        %1140 = vmatprep.mubr.f32.mxu0 0.0
        %1141 = vmatmul.mubr.f32.gmra.mrb[0].mxu0 %v629
        %v1142 = vpop.f32.mrb[0].mxu0
        %v1143 = vadd.f32 0.0, %v1142
        %v1144 = vpop.f32.mrb[0].mxu0
        %1145 = vmatprep.mubr.f32.mxu0 0.0
        %1146 = vmatmul.mubr.f32.gmra.mrb[0].mxu0 %v632
        %v1147 = vpop.f32.mrb[0].mxu0
        %v1148 = vadd.f32 0.0, %v1147
        %v1149 = vpop.f32.mrb[0].mxu0
        %1150 = vmatprep.mubr.f32.mxu0 0.0
        %1151 = vmatmul.mubr.f32.gmra.mrb[0].mxu0 %v635
        %v1152 = vpop.f32.mrb[0].mxu0
        %v1153 = vadd.f32 0.0, %v1152
        %v1154 = vpop.f32.mrb[0].mxu0
        %1155 = vmatprep.mubr.f32.mxu0 0.0
        %1156 = vmatmul.mubr.f32.gmra.mrb[0].mxu0 %v638
        %v1157 = vpop.f32.mrb[0].mxu0
        %v1158 = vadd.f32 0.0, %v1157
        %v1159 = vpop.f32.mrb[0].mxu0
        %1160 = vmatprep.mubr.f32.mxu0 0.0
        %1161 = vmatmul.mubr.f32.gmra.mrb[0].mxu0 %v641
        %v1162 = vpop.f32.mrb[0].mxu0
        %v1163 = vadd.f32 0.0, %v1162
        %v1164 = vpop.f32.mrb[0].mxu0
        %1165 = vmatprep.mubr.f32.mxu0 0.0
        %1166 = vmatmul.mubr.f32.gmra.mrb[0].mxu0 %v644
        %v1167 = vpop.f32.mrb[0].mxu0
        %v1168 = vadd.f32 0.0, %v1167
        %v1169 = vpop.f32.mrb[0].mxu0
        %1170 = vmatprep.mubr.f32.mxu0 0.0
        %1171 = vmatmul.mubr.f32.gmra.mrb[0].mxu0 %v647
        %v1172 = vpop.f32.mrb[0].mxu0
        %v1173 = vadd.f32 0.0, %v1172
        %v1174 = vpop.f32.mrb[0].mxu0
        %1175 = vmatprep.mubr.f32.mxu0 0.0
        %1176 = vmatmul.mubr.f32.gmra.mrb[0].mxu0 %v650
        %v1177 = vpop.f32.mrb[0].mxu0
        %v1178 = vadd.f32 0.0, %v1177
        %v1179 = vpop.f32.mrb[0].mxu0
        %1180 = vmatprep.mubr.f32.mxu0 0.0
        %1181 = vmatmul.mubr.f32.gmra.mrb[0].mxu0 %v653
        %v1182 = vpop.f32.mrb[0].mxu0
        %v1183 = vadd.f32 0.0, %v1182
        %v1184 = vpop.f32.mrb[0].mxu0
        %1185 = vmatprep.mubr.f32.mxu0 0.0
        %1186 = vmatmul.mubr.f32.gmra.mrb[0].mxu0 %v656
        %v1187 = vpop.f32.mrb[0].mxu0
        %v1188 = vadd.f32 0.0, %v1187
        %v1189 = vpop.f32.mrb[0].mxu0
        %1190 = vmatprep.mubr.f32.mxu0 0.0
        %1191 = vmatmul.mubr.f32.gmra.mrb[0].mxu0 %v659
        %v1192 = vpop.f32.mrb[0].mxu0
        %v1193 = vadd.f32 0.0, %v1192
        %v1194 = vpop.f32.mrb[0].mxu0
        %1195 = vmatprep.mubr.f32.mxu0 0.0
        %1196 = vmatmul.mubr.f32.gmra.mrb[0].mxu0 %v662
        %v1197 = vpop.f32.mrb[0].mxu0
        %v1198 = vadd.f32 0.0, %v1197
        %v1199 = vpop.f32.mrb[0].mxu0
        %1200 = vmatprep.mubr.f32.mxu0 0.0
        %1201 = vmatmul.mubr.f32.gmra.mrb[0].mxu0 %v665
        %v1202 = vpop.f32.mrb[0].mxu0
        %v1203 = vadd.f32 0.0, %v1202
        %v1204 = vpop.f32.mrb[0].mxu0
        %1205 = vmatprep.mubr.f32.mxu0 0.0
        %1206 = vmatmul.mubr.f32.gmra.mrb[0].mxu0 %v668
        %v1207 = vpop.f32.mrb[0].mxu0
        %v1208 = vadd.f32 0.0, %v1207
        %v1209 = vpop.f32.mrb[0].mxu0
        %1210 = vmatprep.mubr.f32.mxu0 0.0
        %1211 = vmatmul.mubr.f32.gmra.mrb[0].mxu0 %v671
        %v1212 = vpop.f32.mrb[0].mxu0
        %v1213 = vadd.f32 0.0, %v1212
        %v1214 = vpop.f32.mrb[0].mxu0
        %1215 = vmatprep.mubr.f32.mxu0 0.0
        %1216 = vmatmul.mubr.f32.gmra.mrb[0].mxu0 %v674
        %v1217 = vpop.f32.mrb[0].mxu0
        %v1218 = vadd.f32 0.0, %v1217
        %v1219 = vpop.f32.mrb[0].mxu0
        %1220 = vmatprep.mubr.f32.mxu0 0.0
        %1221 = vmatmul.mubr.f32.gmra.mrb[0].mxu0 %v677
        %v1222 = vpop.f32.mrb[0].mxu0
        %v1223 = vadd.f32 0.0, %v1222
        %v1224 = vpop.f32.mrb[0].mxu0
        %1225 = vmatprep.mubr.f32.mxu0 0.0
        %1226 = vmatmul.mubr.f32.gmra.mrb[0].mxu0 %v680
        %v1227 = vpop.f32.mrb[0].mxu0
        %v1228 = vadd.f32 0.0, %v1227
        %v1229 = vpop.f32.mrb[0].mxu0
        %1230 = vmatprep.mubr.f32.mxu0 0.0
        %1231 = vmatmul.mubr.f32.gmra.mrb[0].mxu0 %v683
        %v1232 = vpop.f32.mrb[0].mxu0
        %v1233 = vadd.f32 0.0, %v1232
        %v1234 = vpop.f32.mrb[0].mxu0
        %1235 = vmatprep.mubr.f32.mxu0 0.0
        %1236 = vmatmul.mubr.f32.gmra.mrb[0].mxu0 %v686
        %v1237 = vpop.f32.mrb[0].mxu0
        %v1238 = vadd.f32 0.0, %v1237
        %v1239 = vpop.f32.mrb[0].mxu0
        %1240 = vmatprep.mubr.f32.mxu0 0.0
        %1241 = vmatmul.mubr.f32.gmra.mrb[0].mxu0 %v689
        %v1242 = vpop.f32.mrb[0].mxu0
        %v1243 = vadd.f32 0.0, %v1242
        %v1244 = vpop.f32.mrb[0].mxu0
        %1245 = vmatprep.mubr.f32.mxu0 0.0
        %1246 = vmatmul.mubr.f32.gmra.mrb[0].mxu0 %v692
        %v1247 = vpop.f32.mrb[0].mxu0
        %v1248 = vadd.f32 0.0, %v1247
        %v1249 = vpop.f32.mrb[0].mxu0
        %1250 = vmatprep.mubr.f32.mxu0 0.0
        %1251 = vmatmul.mubr.f32.gmra.mrb[0].mxu0 %v695
        %v1252 = vpop.f32.mrb[0].mxu0
        %v1253 = vadd.f32 0.0, %v1252
        %v1254 = vpop.f32.mrb[0].mxu0
        %1255 = vmatprep.mubr.f32.mxu0 0.0
        %1256 = vmatmul.mubr.f32.gmra.mrb[0].mxu0 %v698
        %v1257 = vpop.f32.mrb[0].mxu0
        %v1258 = vadd.f32 0.0, %v1257
        %v1259 = vpop.f32.mrb[0].mxu0
        %1260 = vmatprep.mubr.f32.mxu0 0.0
        %1261 = vmatmul.mubr.f32.gmra.mrb[0].mxu0 %v701
        %v1262 = vpop.f32.mrb[0].mxu0
        %v1263 = vadd.f32 0.0, %v1262
        %v1264 = vpop.f32.mrb[0].mxu0
        %1265 = vmatprep.mubr.f32.mxu0 0.0
        %1266 = vmatmul.mubr.f32.gmra.mrb[0].mxu0 %v704
        %v1267 = vpop.f32.mrb[0].mxu0
        %v1268 = vadd.f32 0.0, %v1267
        %v1269 = vpop.f32.mrb[0].mxu0
        %1270 = vmatprep.mubr.f32.mxu0 0.0
        %1271 = vmatmul.mubr.f32.gmra.mrb[0].mxu0 %v707
        %v1272 = vpop.f32.mrb[0].mxu0
        %v1273 = vadd.f32 0.0, %v1272
        %v1274 = vpop.f32.mrb[0].mxu0
        %1275 = vmatprep.mubr.f32.mxu0 0.0
        %1276 = vmatmul.mubr.f32.gmra.mrb[0].mxu0 %v710
        %v1277 = vpop.f32.mrb[0].mxu0
        %v1278 = vadd.f32 0.0, %v1277
        %v1279 = vpop.f32.mrb[0].mxu0
        %1280 = vmatprep.mubr.f32.mxu0 0.0
        %1281 = vmatmul.mubr.f32.gmra.mrb[0].mxu0 %v713
        %v1282 = vpop.f32.mrb[0].mxu0
        %v1283 = vadd.f32 0.0, %v1282
        %v1284 = vpop.f32.mrb[0].mxu0
        %1285 = vmatprep.mubr.f32.mxu0 0.0
        %1286 = vmatmul.mubr.f32.gmra.mrb[0].mxu0 %v716
        %v1287 = vpop.f32.mrb[0].mxu0
        %v1288 = vadd.f32 0.0, %v1287
        %v1289 = vpop.f32.mrb[0].mxu0
        %1290 = vmatprep.mubr.f32.mxu0 0.0
        %1291 = vmatmul.mubr.f32.gmra.mrb[0].mxu0 %v719
        %v1292 = vpop.f32.mrb[0].mxu0
        %v1293 = vadd.f32 0.0, %v1292
        %v1294 = vpop.f32.mrb[0].mxu0
        %1295 = vmatprep.mubr.f32.mxu0 0.0
        %1296 = vmatmul.mubr.f32.gmra.mrb[0].mxu0 %v722
        %v1297 = vpop.f32.mrb[0].mxu0
        %v1298 = vadd.f32 0.0, %v1297
        %v1299 = vpop.f32.mrb[0].mxu0
        %1300 = vmatprep.mubr.f32.mxu0 0.0
        %1301 = vmatmul.mubr.f32.gmra.mrb[0].mxu0 %v725
        %v1302 = vpop.f32.mrb[0].mxu0
        %v1303 = vadd.f32 0.0, %v1302
        %v1304 = vpop.f32.mrb[0].mxu0
        %1305 = vmatprep.mubr.f32.mxu0 0.0
        %1306 = vmatmul.mubr.f32.gmra.mrb[0].mxu0 %v728
        %v1307 = vpop.f32.mrb[0].mxu0
        %v1308 = vadd.f32 0.0, %v1307
        %v1309 = vpop.f32.mrb[0].mxu0
        %1310 = vmatprep.mubr.f32.mxu0 0.0
        %1311 = vmatmul.mubr.f32.gmra.mrb[0].mxu0 %v731
        %v1312 = vpop.f32.mrb[0].mxu0
        %v1313 = vadd.f32 0.0, %v1312
        %v1314 = vpop.f32.mrb[0].mxu0
        %1315 = vmatprep.mubr.f32.mxu0 0.0
        %1316 = vmatmul.mubr.f32.gmra.mrb[0].mxu0 %v734
        %v1317 = vpop.f32.mrb[0].mxu0
        %v1318 = vadd.f32 0.0, %v1317
        %v1319 = vpop.f32.mrb[0].mxu0
        %1320 = vmatprep.mubr.f32.mxu0 0.0
        %1321 = vmatmul.mubr.f32.gmra.mrb[0].mxu0 %v737
        %v1322 = vpop.f32.mrb[0].mxu0
        %v1323 = vadd.f32 0.0, %v1322
        %v1324 = vpop.f32.mrb[0].mxu0
        %1325 = vmatprep.mubr.f32.mxu0 0.0
        %1326 = vmatmul.mubr.f32.gmra.mrb[0].mxu0 %v740
        %v1327 = vpop.f32.mrb[0].mxu0
        %v1328 = vadd.f32 0.0, %v1327
        %v1329 = vpop.f32.mrb[0].mxu0
        %1330 = vmatprep.mubr.f32.mxu0 0.0
        %1331 = vmatmul.mubr.f32.gmra.mrb[0].mxu0 %v743
        %v1332 = vpop.f32.mrb[0].mxu0
        %v1333 = vadd.f32 0.0, %v1332
        %v1334 = vpop.f32.mrb[0].mxu0
        %1335 = vmatprep.mubr.f32.mxu0 0.0
        %1336 = vmatmul.mubr.f32.gmra.mrb[0].mxu0 %v746
        %v1337 = vpop.f32.mrb[0].mxu0
        %v1338 = vadd.f32 0.0, %v1337
        %v1339 = vpop.f32.mrb[0].mxu0
        %1340 = vmatprep.mubr.f32.mxu0 0.0
        %1341 = vmatmul.mubr.f32.gmra.mrb[0].mxu0 %v749
        %v1342 = vpop.f32.mrb[0].mxu0
        %v1343 = vadd.f32 0.0, %v1342
        %v1344 = vpop.f32.mrb[0].mxu0
        %1345 = vmatprep.mubr.f32.mxu0 0.0
        %1346 = vmatmul.mubr.f32.gmra.mrb[0].mxu0 %v752
        %v1347 = vpop.f32.mrb[0].mxu0
        %v1348 = vadd.f32 0.0, %v1347
        %v1349 = vpop.f32.mrb[0].mxu0
        %1350 = vmatprep.mubr.f32.mxu0 0.0
        %1351 = vmatmul.mubr.f32.gmra.mrb[0].mxu0 %v755
        %v1352 = vpop.f32.mrb[0].mxu0
        %v1353 = vadd.f32 0.0, %v1352
        %v1354 = vpop.f32.mrb[0].mxu0
        %1355 = vmatprep.mubr.f32.mxu0 0.0
        %1356 = vmatmul.mubr.f32.gmra.mrb[0].mxu0 %v758
        %v1357 = vpop.f32.mrb[0].mxu0
        %v1358 = vadd.f32 0.0, %v1357
        %v1359 = vpop.f32.mrb[0].mxu0
        %1360 = vmatprep.mubr.f32.mxu0 0.0
        %1361 = vmatmul.mubr.f32.gmra.mrb[0].mxu0 %v761
        %v1362 = vpop.f32.mrb[0].mxu0
        %v1363 = vadd.f32 0.0, %v1362
        %v1364 = vpop.f32.mrb[0].mxu0
        %1365 = vmatprep.mubr.f32.mxu0 0.0
        %1366 = vmatmul.mubr.f32.gmra.mrb[0].mxu0 %v764
        %v1367 = vpop.f32.mrb[0].mxu0
        %v1368 = vadd.f32 0.0, %v1367
        %v1369 = vpop.f32.mrb[0].mxu0
        %1370 = vdwg.mxu0
        %v1371 = vld [vmem:[%s2] sm:$0xff]
        %v1372 = vld [vmem:[%s2 + $0x8] sm:$0xff]
        %v1373 = vld [vmem:[%s2 + $0x10] sm:$0xff]
        %v1374 = vld [vmem:[%s2 + $0x18] sm:$0xff]
        %v1375 = vld [vmem:[%s2 + $0x20] sm:$0xff]
        %v1376 = vld [vmem:[%s2 + $0x28] sm:$0xff]
        %v1377 = vld [vmem:[%s2 + $0x30] sm:$0xff]
        %v1378 = vld [vmem:[%s2 + $0x38] sm:$0xff]
        %v1379 = vld [vmem:[%s2 + $0x40] sm:$0xff]
        %v1380 = vld [vmem:[%s2 + $0x48] sm:$0xff]
        %v1381 = vld [vmem:[%s2 + $0x50] sm:$0xff]
        %v1382 = vld [vmem:[%s2 + $0x58] sm:$0xff]
        %v1383 = vld [vmem:[%s2 + $0x60] sm:$0xff]
        %v1384 = vld [vmem:[%s2 + $0x68] sm:$0xff]
        %v1385 = vld [vmem:[%s2 + $0x70] sm:$0xff]
        %v1386 = vld [vmem:[%s2 + $0x78] sm:$0xff]
        %v1387 = vld [vmem:[%s2 + $0x80] sm:$0xff]
        %v1388 = vld [vmem:[%s2 + $0x88] sm:$0xff]
        %v1389 = vld [vmem:[%s2 + $0x90] sm:$0xff]
        %v1390 = vld [vmem:[%s2 + $0x98] sm:$0xff]
        %v1391 = vld [vmem:[%s2 + $0xa0] sm:$0xff]
        %v1392 = vld [vmem:[%s2 + $0xa8] sm:$0xff]
        %v1393 = vld [vmem:[%s2 + $0xb0] sm:$0xff]
        %v1394 = vld [vmem:[%s2 + $0xb8] sm:$0xff]
        %v1395 = vld [vmem:[%s2 + $0xc0] sm:$0xff]
        %v1396 = vld [vmem:[%s2 + $0xc8] sm:$0xff]
        %v1397 = vld [vmem:[%s2 + $0xd0] sm:$0xff]
        %v1399 = vsel %vm441, %v1371, 0
        %v1402 = vsel %vm441, %v1372, 0
        %v1405 = vsel %vm441, %v1373, 0
        %v1408 = vsel %vm441, %v1374, 0
        %v1411 = vsel %vm441, %v1375, 0
        %v1414 = vsel %vm441, %v1376, 0
        %v1417 = vsel %vm441, %v1377, 0
        %v1420 = vsel %vm441, %v1378, 0
        %v1423 = vsel %vm441, %v1379, 0
        %v1426 = vsel %vm441, %v1380, 0
        %v1429 = vsel %vm441, %v1381, 0
        %v1432 = vsel %vm441, %v1382, 0
        %v1435 = vsel %vm441, %v1383, 0
        %v1438 = vsel %vm441, %v1384, 0
        %v1441 = vsel %vm441, %v1385, 0
        %v1444 = vsel %vm441, %v1386, 0
        %v1447 = vsel %vm441, %v1387, 0
        %v1450 = vsel %vm441, %v1388, 0
        %v1453 = vsel %vm441, %v1389, 0
        %v1456 = vsel %vm441, %v1390, 0
        %v1459 = vsel %vm441, %v1391, 0
        %v1462 = vsel %vm441, %v1392, 0
        %v1465 = vsel %vm441, %v1393, 0
        %v1468 = vsel %vm441, %v1394, 0
        %v1471 = vsel %vm441, %v1395, 0
        %v1474 = vsel %vm441, %v1396, 0
        %v1477 = vsel %vm441, %v1397, 0
        %1479 = vmatprep.subr.mxu0 0.0
        %1480 = vmatpush1.msra.mxu0 %v321
        %1481 = vmatprep.subr.mxu0 0.0
        %1482 = vmatpush1.msra.mxu0 %v322
        %1483 = vmatprep.subr.mxu0 0.0
        %1484 = vmatpush1.msra.mxu0 %v323
        %1485 = vmatprep.subr.mxu0 0.0
        %1486 = vmatpush1.msra.mxu0 %v324
        %1487 = vmatprep.subr.mxu0 0.0
        %1488 = vmatpush1.msra.mxu0 %v325
        %1489 = vmatprep.subr.mxu0 0.0
        %1490 = vmatpush1.msra.mxu0 %v326
        %1491 = vmatprep.subr.mxu0 0.0
        %1492 = vmatpush1.msra.mxu0 %v327
        %1493 = vmatprep.subr.mxu0 0.0
        %1494 = vmatpush1.msra.mxu0 %v328
        %1495 = vmatprep.subr.mxu0 0.0
        %1496 = vmatpush1.msra.mxu0 %v329
        %1497 = vmatprep.subr.mxu0 0.0
        %1498 = vmatpush1.msra.mxu0 %v330
        %1499 = vmatprep.subr.mxu0 0.0
        %1500 = vmatpush1.msra.mxu0 %v331
        %1501 = vmatprep.subr.mxu0 0.0
        %1502 = vmatpush1.msra.mxu0 %v332
        %1503 = vmatprep.subr.mxu0 0.0
        %1504 = vmatpush1.msra.mxu0 0.0
        %1505 = vmatprep.subr.mxu0 0.0
        %1506 = vmatpush1.msra.mxu0 0.0
        %1507 = vmatprep.subr.mxu0 0.0
        %1508 = vmatpush1.msra.mxu0 0.0
        %1509 = vmatprep.subr.mxu0 0.0
        %1510 = vmatpush1.msra.mxu0 0.0
        %1511 = vmatprep.subr.mxu0 0.0
        %1512 = vmatpush1.msra.mxu0 0.0
        %1513 = vmatprep.subr.mxu0 0.0
        %1514 = vmatpush1.msra.mxu0 0.0
        %1515 = vmatprep.subr.mxu0 0.0
        %1516 = vmatpush1.msra.mxu0 0.0
        %1517 = vmatprep.subr.mxu0 0.0
        %1518 = vmatpush1.msra.mxu0 0.0
        %1519 = vmatprep.subr.mxu0 0.0
        %1520 = vmatpush1.msra.mxu0 0.0
        %1521 = vmatprep.subr.mxu0 0.0
        %1522 = vmatpush1.msra.mxu0 0.0
        %1523 = vmatprep.subr.mxu0 0.0
        %1524 = vmatpush1.msra.mxu0 0.0
        %1525 = vmatprep.subr.mxu0 0.0
        %1526 = vmatpush1.msra.mxu0 0.0
        %1527 = vmatprep.subr.mxu0 0.0
        %1528 = vmatpush1.msra.mxu0 0.0
        %1529 = vmatprep.subr.mxu0 0.0
        %1530 = vmatpush1.msra.mxu0 0.0
        %1531 = vmatprep.subr.mxu0 0.0
        %1532 = vmatpush1.msra.mxu0 0.0
        %1533 = vmatprep.subr.mxu0 0.0
        %1534 = vmatpush1.msra.mxu0 0.0
        %1535 = vmatprep.subr.mxu0 0.0
        %1536 = vmatpush1.msra.mxu0 0.0
        %1537 = vmatprep.subr.mxu0 0.0
        %1538 = vmatpush1.msra.mxu0 0.0
        %1539 = vmatprep.subr.mxu0 0.0
        %1540 = vmatpush1.msra.mxu0 0.0
        %1541 = vmatprep.subr.mxu0 0.0
        %1542 = vmatpush1.msra.mxu0 0.0
        %1543 = vmatprep.mubr.f32.mxu0 0.0
        %1544 = vmatmul.mubr.f32.gmra.mrb[0].mxu0 %v1399
        %v1545 = vpop.f32.mrb[0].mxu0
        %v1546 = vadd.f32 0.0, %v1545
        %v1547 = vpop.f32.mrb[0].mxu0
        %1548 = vmatprep.mubr.f32.mxu0 0.0
        %1549 = vmatmul.mubr.f32.gmra.mrb[0].mxu0 %v1402
        %v1550 = vpop.f32.mrb[0].mxu0
        %v1551 = vadd.f32 0.0, %v1550
        %v1552 = vpop.f32.mrb[0].mxu0
        %1553 = vmatprep.mubr.f32.mxu0 0.0
        %1554 = vmatmul.mubr.f32.gmra.mrb[0].mxu0 %v1405
        %v1555 = vpop.f32.mrb[0].mxu0
        %v1556 = vadd.f32 0.0, %v1555
        %v1557 = vpop.f32.mrb[0].mxu0
        %1558 = vmatprep.mubr.f32.mxu0 0.0
        %1559 = vmatmul.mubr.f32.gmra.mrb[0].mxu0 %v1408
        %v1560 = vpop.f32.mrb[0].mxu0
        %v1561 = vadd.f32 0.0, %v1560
        %v1562 = vpop.f32.mrb[0].mxu0
        %1563 = vmatprep.mubr.f32.mxu0 0.0
        %1564 = vmatmul.mubr.f32.gmra.mrb[0].mxu0 %v1411
        %v1565 = vpop.f32.mrb[0].mxu0
        %v1566 = vadd.f32 0.0, %v1565
        %v1567 = vpop.f32.mrb[0].mxu0
        %1568 = vmatprep.mubr.f32.mxu0 0.0
        %1569 = vmatmul.mubr.f32.gmra.mrb[0].mxu0 %v1414
        %v1570 = vpop.f32.mrb[0].mxu0
        %v1571 = vadd.f32 0.0, %v1570
        %v1572 = vpop.f32.mrb[0].mxu0
        %1573 = vmatprep.mubr.f32.mxu0 0.0
        %1574 = vmatmul.mubr.f32.gmra.mrb[0].mxu0 %v1417
        %v1575 = vpop.f32.mrb[0].mxu0
        %v1576 = vadd.f32 0.0, %v1575
        %v1577 = vpop.f32.mrb[0].mxu0
        %1578 = vmatprep.mubr.f32.mxu0 0.0
        %1579 = vmatmul.mubr.f32.gmra.mrb[0].mxu0 %v1420
        %v1580 = vpop.f32.mrb[0].mxu0
        %v1581 = vadd.f32 0.0, %v1580
        %v1582 = vpop.f32.mrb[0].mxu0
        %1583 = vmatprep.mubr.f32.mxu0 0.0
        %1584 = vmatmul.mubr.f32.gmra.mrb[0].mxu0 %v1423
        %v1585 = vpop.f32.mrb[0].mxu0
        %v1586 = vadd.f32 0.0, %v1585
        %v1587 = vpop.f32.mrb[0].mxu0
        %1588 = vmatprep.mubr.f32.mxu0 0.0
        %1589 = vmatmul.mubr.f32.gmra.mrb[0].mxu0 %v1426
        %v1590 = vpop.f32.mrb[0].mxu0
        %v1591 = vadd.f32 0.0, %v1590
        %v1592 = vpop.f32.mrb[0].mxu0
        %1593 = vmatprep.mubr.f32.mxu0 0.0
        %1594 = vmatmul.mubr.f32.gmra.mrb[0].mxu0 %v1429
        %v1595 = vpop.f32.mrb[0].mxu0
        %v1596 = vadd.f32 0.0, %v1595
        %v1597 = vpop.f32.mrb[0].mxu0
        %1598 = vmatprep.mubr.f32.mxu0 0.0
        %1599 = vmatmul.mubr.f32.gmra.mrb[0].mxu0 %v1432
        %v1600 = vpop.f32.mrb[0].mxu0
        %v1601 = vadd.f32 0.0, %v1600
        %v1602 = vpop.f32.mrb[0].mxu0
        %1603 = vmatprep.mubr.f32.mxu0 0.0
        %1604 = vmatmul.mubr.f32.gmra.mrb[0].mxu0 %v1435
        %v1605 = vpop.f32.mrb[0].mxu0
        %v1606 = vadd.f32 0.0, %v1605
        %v1607 = vpop.f32.mrb[0].mxu0
        %1608 = vmatprep.mubr.f32.mxu0 0.0
        %1609 = vmatmul.mubr.f32.gmra.mrb[0].mxu0 %v1438
        %v1610 = vpop.f32.mrb[0].mxu0
        %v1611 = vadd.f32 0.0, %v1610
        %v1612 = vpop.f32.mrb[0].mxu0
        %1613 = vmatprep.mubr.f32.mxu0 0.0
        %1614 = vmatmul.mubr.f32.gmra.mrb[0].mxu0 %v1441
        %v1615 = vpop.f32.mrb[0].mxu0
        %v1616 = vadd.f32 0.0, %v1615
        %v1617 = vpop.f32.mrb[0].mxu0
        %1618 = vmatprep.mubr.f32.mxu0 0.0
        %1619 = vmatmul.mubr.f32.gmra.mrb[0].mxu0 %v1444
        %v1620 = vpop.f32.mrb[0].mxu0
        %v1621 = vadd.f32 0.0, %v1620
        %v1622 = vpop.f32.mrb[0].mxu0
        %1623 = vmatprep.mubr.f32.mxu0 0.0
        %1624 = vmatmul.mubr.f32.gmra.mrb[0].mxu0 %v1447
        %v1625 = vpop.f32.mrb[0].mxu0
        %v1626 = vadd.f32 0.0, %v1625
        %v1627 = vpop.f32.mrb[0].mxu0
        %1628 = vmatprep.mubr.f32.mxu0 0.0
        %1629 = vmatmul.mubr.f32.gmra.mrb[0].mxu0 %v1450
        %v1630 = vpop.f32.mrb[0].mxu0
        %v1631 = vadd.f32 0.0, %v1630
        %v1632 = vpop.f32.mrb[0].mxu0
        %1633 = vmatprep.mubr.f32.mxu0 0.0
        %1634 = vmatmul.mubr.f32.gmra.mrb[0].mxu0 %v1453
        %v1635 = vpop.f32.mrb[0].mxu0
        %v1636 = vadd.f32 0.0, %v1635
        %v1637 = vpop.f32.mrb[0].mxu0
        %1638 = vmatprep.mubr.f32.mxu0 0.0
        %1639 = vmatmul.mubr.f32.gmra.mrb[0].mxu0 %v1456
        %v1640 = vpop.f32.mrb[0].mxu0
        %v1641 = vadd.f32 0.0, %v1640
        %v1642 = vpop.f32.mrb[0].mxu0
        %1643 = vmatprep.mubr.f32.mxu0 0.0
        %1644 = vmatmul.mubr.f32.gmra.mrb[0].mxu0 %v1459
        %v1645 = vpop.f32.mrb[0].mxu0
        %v1646 = vadd.f32 0.0, %v1645
        %v1647 = vpop.f32.mrb[0].mxu0
        %1648 = vmatprep.mubr.f32.mxu0 0.0
        %1649 = vmatmul.mubr.f32.gmra.mrb[0].mxu0 %v1462
        %v1650 = vpop.f32.mrb[0].mxu0
        %v1651 = vadd.f32 0.0, %v1650
        %v1652 = vpop.f32.mrb[0].mxu0
        %1653 = vmatprep.mubr.f32.mxu0 0.0
        %1654 = vmatmul.mubr.f32.gmra.mrb[0].mxu0 %v1465
        %v1655 = vpop.f32.mrb[0].mxu0
        %v1656 = vadd.f32 0.0, %v1655
        %v1657 = vpop.f32.mrb[0].mxu0
        %1658 = vmatprep.mubr.f32.mxu0 0.0
        %1659 = vmatmul.mubr.f32.gmra.mrb[0].mxu0 %v1468
        %v1660 = vpop.f32.mrb[0].mxu0
        %v1661 = vadd.f32 0.0, %v1660
        %v1662 = vpop.f32.mrb[0].mxu0
        %1663 = vmatprep.mubr.f32.mxu0 0.0
        %1664 = vmatmul.mubr.f32.gmra.mrb[0].mxu0 %v1471
        %v1665 = vpop.f32.mrb[0].mxu0
        %v1666 = vadd.f32 0.0, %v1665
        %v1667 = vpop.f32.mrb[0].mxu0
        %1668 = vmatprep.mubr.f32.mxu0 0.0
        %1669 = vmatmul.mubr.f32.gmra.mrb[0].mxu0 %v1474
        %v1670 = vpop.f32.mrb[0].mxu0
        %v1671 = vadd.f32 0.0, %v1670
        %v1672 = vpop.f32.mrb[0].mxu0
        %1673 = vmatprep.mubr.f32.mxu0 0.0
        %1674 = vmatmul.mubr.f32.gmra.mrb[0].mxu0 %v1477
        %v1675 = vpop.f32.mrb[0].mxu0
        %v1676 = vadd.f32 0.0, %v1675
        %v1677 = vpop.f32.mrb[0].mxu0
        %1678 = vdwg.mxu0
        %v1679 = vld [vmem:[%s3] sm:$0xff]
        %v1680 = vld [vmem:[%s3 + $0x8] sm:$0xff]
        %v1681 = vld [vmem:[%s3 + $0x10] sm:$0xff]
        %v1682 = vld [vmem:[%s3 + $0x18] sm:$0x7]
        %v1683 = vld [vmem:[%s4] sm:$0x7]
        %v1684 = vlaneseq
        %v1685 = vshrl.u32 %v1684, 7
        %v1686 = vsub.s32 0, %v1685
        %v1687 = vrot.slane %v1679, %v1686
        %v1688 = vmul.f32 %v833, %v1687
        %v1689 = vmul.f32 %v838, %v1687
        %v1690 = vmul.f32 %v843, %v1687
        %v1691 = vmul.f32 %v848, %v1687
        %v1692 = vmul.f32 %v853, %v1687
        %v1693 = vmul.f32 %v858, %v1687
        %v1694 = vmul.f32 %v863, %v1687
        %v1695 = vmul.f32 %v868, %v1687
        %v1696 = vmul.f32 %v873, %v1687
        %v1697 = vmul.f32 %v878, %v1687
        %v1698 = vmul.f32 %v883, %v1687
        %v1699 = vmul.f32 %v888, %v1687
        %v1700 = vlaneseq
        %v1701 = vshrl.u32 %v1700, 7
        %v1702 = vsub.s32 1, %v1701
        %v1703 = vrot.slane %v1679, %v1702
        %v1704 = vmul.f32 %v893, %v1703
        %v1705 = vmul.f32 %v898, %v1703
        %v1706 = vmul.f32 %v903, %v1703
        %v1707 = vmul.f32 %v908, %v1703
        %v1708 = vmul.f32 %v913, %v1703
        %v1709 = vmul.f32 %v918, %v1703
        %v1710 = vmul.f32 %v923, %v1703
        %v1711 = vmul.f32 %v928, %v1703
        %v1712 = vmul.f32 %v933, %v1703
        %v1713 = vmul.f32 %v938, %v1703
        %v1714 = vmul.f32 %v943, %v1703
        %v1715 = vmul.f32 %v948, %v1703
        %v1716 = vadd.f32 %v1688, %v1704
        %v1717 = vadd.f32 %v1689, %v1705
        %v1718 = vadd.f32 %v1690, %v1706
        %v1719 = vadd.f32 %v1691, %v1707
        %v1720 = vadd.f32 %v1692, %v1708
        %v1721 = vadd.f32 %v1693, %v1709
        %v1722 = vadd.f32 %v1694, %v1710
        %v1723 = vadd.f32 %v1695, %v1711
        %v1724 = vadd.f32 %v1696, %v1712
        %v1725 = vadd.f32 %v1697, %v1713
        %v1726 = vadd.f32 %v1698, %v1714
        %v1727 = vadd.f32 %v1699, %v1715
        %v1728 = vlaneseq
        %v1729 = vshrl.u32 %v1728, 7
        %v1730 = vsub.s32 2, %v1729
        %v1731 = vrot.slane %v1679, %v1730
        %v1732 = vmul.f32 %v953, %v1731
        %v1733 = vmul.f32 %v958, %v1731
        %v1734 = vmul.f32 %v963, %v1731
        %v1735 = vmul.f32 %v968, %v1731
        %v1736 = vmul.f32 %v973, %v1731
        %v1737 = vmul.f32 %v978, %v1731
        %v1738 = vmul.f32 %v983, %v1731
        %v1739 = vmul.f32 %v988, %v1731
        %v1740 = vmul.f32 %v993, %v1731
        %v1741 = vmul.f32 %v998, %v1731
        %v1742 = vmul.f32 %v1003, %v1731
        %v1743 = vmul.f32 %v1008, %v1731
        %v1744 = vadd.f32 %v1716, %v1732
        %v1745 = vadd.f32 %v1717, %v1733
        %v1746 = vadd.f32 %v1718, %v1734
        %v1747 = vadd.f32 %v1719, %v1735
        %v1748 = vadd.f32 %v1720, %v1736
        %v1749 = vadd.f32 %v1721, %v1737
        %v1750 = vadd.f32 %v1722, %v1738
        %v1751 = vadd.f32 %v1723, %v1739
        %v1752 = vadd.f32 %v1724, %v1740
        %v1753 = vadd.f32 %v1725, %v1741
        %v1754 = vadd.f32 %v1726, %v1742
        %v1755 = vadd.f32 %v1727, %v1743
        %v1756 = vlaneseq
        %v1757 = vshrl.u32 %v1756, 7
        %v1758 = vsub.s32 3, %v1757
        %v1759 = vrot.slane %v1679, %v1758
        %v1760 = vmul.f32 %v1013, %v1759
        %v1761 = vmul.f32 %v1018, %v1759
        %v1762 = vmul.f32 %v1023, %v1759
        %v1763 = vmul.f32 %v1028, %v1759
        %v1764 = vmul.f32 %v1033, %v1759
        %v1765 = vmul.f32 %v1038, %v1759
        %v1766 = vmul.f32 %v1043, %v1759
        %v1767 = vmul.f32 %v1048, %v1759
        %v1768 = vmul.f32 %v1053, %v1759
        %v1769 = vmul.f32 %v1058, %v1759
        %v1770 = vmul.f32 %v1063, %v1759
        %v1771 = vmul.f32 %v1068, %v1759
        %v1772 = vadd.f32 %v1744, %v1760
        %v1773 = vadd.f32 %v1745, %v1761
        %v1774 = vadd.f32 %v1746, %v1762
        %v1775 = vadd.f32 %v1747, %v1763
        %v1776 = vadd.f32 %v1748, %v1764
        %v1777 = vadd.f32 %v1749, %v1765
        %v1778 = vadd.f32 %v1750, %v1766
        %v1779 = vadd.f32 %v1751, %v1767
        %v1780 = vadd.f32 %v1752, %v1768
        %v1781 = vadd.f32 %v1753, %v1769
        %v1782 = vadd.f32 %v1754, %v1770
        %v1783 = vadd.f32 %v1755, %v1771
        %v1784 = vlaneseq
        %v1785 = vshrl.u32 %v1784, 7
        %v1786 = vsub.s32 4, %v1785
        %v1787 = vrot.slane %v1679, %v1786
        %v1788 = vmul.f32 %v1073, %v1787
        %v1789 = vmul.f32 %v1078, %v1787
        %v1790 = vmul.f32 %v1083, %v1787
        %v1791 = vmul.f32 %v1088, %v1787
        %v1792 = vmul.f32 %v1093, %v1787
        %v1793 = vmul.f32 %v1098, %v1787
        %v1794 = vmul.f32 %v1103, %v1787
        %v1795 = vmul.f32 %v1108, %v1787
        %v1796 = vmul.f32 %v1113, %v1787
        %v1797 = vmul.f32 %v1118, %v1787
        %v1798 = vmul.f32 %v1123, %v1787
        %v1799 = vmul.f32 %v1128, %v1787
        %v1800 = vadd.f32 %v1772, %v1788
        %v1801 = vadd.f32 %v1773, %v1789
        %v1802 = vadd.f32 %v1774, %v1790
        %v1803 = vadd.f32 %v1775, %v1791
        %v1804 = vadd.f32 %v1776, %v1792
        %v1805 = vadd.f32 %v1777, %v1793
        %v1806 = vadd.f32 %v1778, %v1794
        %v1807 = vadd.f32 %v1779, %v1795
        %v1808 = vadd.f32 %v1780, %v1796
        %v1809 = vadd.f32 %v1781, %v1797
        %v1810 = vadd.f32 %v1782, %v1798
        %v1811 = vadd.f32 %v1783, %v1799
        %v1812 = vlaneseq
        %v1813 = vshrl.u32 %v1812, 7
        %v1814 = vsub.s32 5, %v1813
        %v1815 = vrot.slane %v1679, %v1814
        %v1816 = vmul.f32 %v1133, %v1815
        %v1817 = vmul.f32 %v1138, %v1815
        %v1818 = vmul.f32 %v1143, %v1815
        %v1819 = vmul.f32 %v1148, %v1815
        %v1820 = vmul.f32 %v1153, %v1815
        %v1821 = vmul.f32 %v1158, %v1815
        %v1822 = vmul.f32 %v1163, %v1815
        %v1823 = vmul.f32 %v1168, %v1815
        %v1824 = vmul.f32 %v1173, %v1815
        %v1825 = vmul.f32 %v1178, %v1815
        %v1826 = vmul.f32 %v1183, %v1815
        %v1827 = vmul.f32 %v1188, %v1815
        %v1828 = vadd.f32 %v1800, %v1816
        %v1829 = vadd.f32 %v1801, %v1817
        %v1830 = vadd.f32 %v1802, %v1818
        %v1831 = vadd.f32 %v1803, %v1819
        %v1832 = vadd.f32 %v1804, %v1820
        %v1833 = vadd.f32 %v1805, %v1821
        %v1834 = vadd.f32 %v1806, %v1822
        %v1835 = vadd.f32 %v1807, %v1823
        %v1836 = vadd.f32 %v1808, %v1824
        %v1837 = vadd.f32 %v1809, %v1825
        %v1838 = vadd.f32 %v1810, %v1826
        %v1839 = vadd.f32 %v1811, %v1827
        %v1840 = vlaneseq
        %v1841 = vshrl.u32 %v1840, 7
        %v1842 = vsub.s32 6, %v1841
        %v1843 = vrot.slane %v1679, %v1842
        %v1844 = vmul.f32 %v1193, %v1843
        %v1845 = vmul.f32 %v1198, %v1843
        %v1846 = vmul.f32 %v1203, %v1843
        %v1847 = vmul.f32 %v1208, %v1843
        %v1848 = vmul.f32 %v1213, %v1843
        %v1849 = vmul.f32 %v1218, %v1843
        %v1850 = vmul.f32 %v1223, %v1843
        %v1851 = vmul.f32 %v1228, %v1843
        %v1852 = vmul.f32 %v1233, %v1843
        %v1853 = vmul.f32 %v1238, %v1843
        %v1854 = vmul.f32 %v1243, %v1843
        %v1855 = vmul.f32 %v1248, %v1843
        %v1856 = vadd.f32 %v1828, %v1844
        %v1857 = vadd.f32 %v1829, %v1845
        %v1858 = vadd.f32 %v1830, %v1846
        %v1859 = vadd.f32 %v1831, %v1847
        %v1860 = vadd.f32 %v1832, %v1848
        %v1861 = vadd.f32 %v1833, %v1849
        %v1862 = vadd.f32 %v1834, %v1850
        %v1863 = vadd.f32 %v1835, %v1851
        %v1864 = vadd.f32 %v1836, %v1852
        %v1865 = vadd.f32 %v1837, %v1853
        %v1866 = vadd.f32 %v1838, %v1854
        %v1867 = vadd.f32 %v1839, %v1855
        %v1868 = vlaneseq
        %v1869 = vshrl.u32 %v1868, 7
        %v1870 = vsub.s32 7, %v1869
        %v1871 = vrot.slane %v1679, %v1870
        %v1872 = vmul.f32 %v1253, %v1871
        %v1873 = vmul.f32 %v1258, %v1871
        %v1874 = vmul.f32 %v1263, %v1871
        %v1875 = vmul.f32 %v1268, %v1871
        %v1876 = vmul.f32 %v1273, %v1871
        %v1877 = vmul.f32 %v1278, %v1871
        %v1878 = vmul.f32 %v1283, %v1871
        %v1879 = vmul.f32 %v1288, %v1871
        %v1880 = vmul.f32 %v1293, %v1871
        %v1881 = vmul.f32 %v1298, %v1871
        %v1882 = vmul.f32 %v1303, %v1871
        %v1883 = vmul.f32 %v1308, %v1871
        %v1884 = vadd.f32 %v1856, %v1872
        %v1885 = vadd.f32 %v1857, %v1873
        %v1886 = vadd.f32 %v1858, %v1874
        %v1887 = vadd.f32 %v1859, %v1875
        %v1888 = vadd.f32 %v1860, %v1876
        %v1889 = vadd.f32 %v1861, %v1877
        %v1890 = vadd.f32 %v1862, %v1878
        %v1891 = vadd.f32 %v1863, %v1879
        %v1892 = vadd.f32 %v1864, %v1880
        %v1893 = vadd.f32 %v1865, %v1881
        %v1894 = vadd.f32 %v1866, %v1882
        %v1895 = vadd.f32 %v1867, %v1883
        %v1896 = vlaneseq
        %v1897 = vshrl.u32 %v1896, 7
        %v1898 = vsub.s32 0, %v1897
        %v1899 = vrot.slane %v1680, %v1898
        %v1900 = vmul.f32 %v1313, %v1899
        %v1901 = vmul.f32 %v1318, %v1899
        %v1902 = vmul.f32 %v1323, %v1899
        %v1903 = vmul.f32 %v1328, %v1899
        %v1904 = vmul.f32 %v1333, %v1899
        %v1905 = vmul.f32 %v1338, %v1899
        %v1906 = vmul.f32 %v1343, %v1899
        %v1907 = vmul.f32 %v1348, %v1899
        %v1908 = vmul.f32 %v1353, %v1899
        %v1909 = vmul.f32 %v1358, %v1899
        %v1910 = vmul.f32 %v1363, %v1899
        %v1911 = vmul.f32 %v1368, %v1899
        %v1912 = vadd.f32 %v1884, %v1900
        %v1913 = vadd.f32 %v1885, %v1901
        %v1914 = vadd.f32 %v1886, %v1902
        %v1915 = vadd.f32 %v1887, %v1903
        %v1916 = vadd.f32 %v1888, %v1904
        %v1917 = vadd.f32 %v1889, %v1905
        %v1918 = vadd.f32 %v1890, %v1906
        %v1919 = vadd.f32 %v1891, %v1907
        %v1920 = vadd.f32 %v1892, %v1908
        %v1921 = vadd.f32 %v1893, %v1909
        %v1922 = vadd.f32 %v1894, %v1910
        %v1923 = vadd.f32 %v1895, %v1911
        %v1924 = vlaneseq
        %v1925 = vshrl.u32 %v1924, 7
        %v1926 = vsub.s32 0, %v1925
        %v1927 = vrot.slane %v1683, %v1926
        %v1928 = vadd.f32 %v1912, %v1927
        %v1929 = vadd.f32 %v1913, %v1927
        %v1930 = vadd.f32 %v1914, %v1927
        %v1931 = vadd.f32 %v1915, %v1927
        %v1932 = vadd.f32 %v1916, %v1927
        %v1933 = vadd.f32 %v1917, %v1927
        %v1934 = vadd.f32 %v1918, %v1927
        %v1935 = vadd.f32 %v1919, %v1927
        %v1936 = vadd.f32 %v1920, %v1927
        %v1937 = vadd.f32 %v1921, %v1927
        %v1938 = vadd.f32 %v1922, %v1927
        %v1939 = vadd.f32 %v1923, %v1927
        %v1940 = vlaneseq
        %v1941 = vshrl.u32 %v1940, 7
        %v1942 = vsub.s32 1, %v1941
        %v1943 = vrot.slane %v1680, %v1942
        %v1944 = vmul.f32 %v1546, %v1943
        %v1945 = vmul.f32 %v1551, %v1943
        %v1946 = vmul.f32 %v1556, %v1943
        %v1947 = vlaneseq
        %v1948 = vshrl.u32 %v1947, 7
        %v1949 = vsub.s32 2, %v1948
        %v1950 = vrot.slane %v1680, %v1949
        %v1951 = vmul.f32 %v1561, %v1950
        %v1952 = vmul.f32 %v1566, %v1950
        %v1953 = vmul.f32 %v1571, %v1950
        %v1954 = vadd.f32 %v1944, %v1951
        %v1955 = vadd.f32 %v1945, %v1952
        %v1956 = vadd.f32 %v1946, %v1953
        %v1957 = vlaneseq
        %v1958 = vshrl.u32 %v1957, 7
        %v1959 = vsub.s32 3, %v1958
        %v1960 = vrot.slane %v1680, %v1959
        %v1961 = vmul.f32 %v1576, %v1960
        %v1962 = vmul.f32 %v1581, %v1960
        %v1963 = vmul.f32 %v1586, %v1960
        %v1964 = vadd.f32 %v1954, %v1961
        %v1965 = vadd.f32 %v1955, %v1962
        %v1966 = vadd.f32 %v1956, %v1963
        %v1967 = vlaneseq
        %v1968 = vshrl.u32 %v1967, 7
        %v1969 = vsub.s32 4, %v1968
        %v1970 = vrot.slane %v1680, %v1969
        %v1971 = vmul.f32 %v1591, %v1970
        %v1972 = vmul.f32 %v1596, %v1970
        %v1973 = vmul.f32 %v1601, %v1970
        %v1974 = vadd.f32 %v1964, %v1971
        %v1975 = vadd.f32 %v1965, %v1972
        %v1976 = vadd.f32 %v1966, %v1973
        %v1977 = vlaneseq
        %v1978 = vshrl.u32 %v1977, 7
        %v1979 = vsub.s32 5, %v1978
        %v1980 = vrot.slane %v1680, %v1979
        %v1981 = vmul.f32 %v1606, %v1980
        %v1982 = vmul.f32 %v1611, %v1980
        %v1983 = vmul.f32 %v1616, %v1980
        %v1984 = vadd.f32 %v1974, %v1981
        %v1985 = vadd.f32 %v1975, %v1982
        %v1986 = vadd.f32 %v1976, %v1983
        %v1987 = vlaneseq
        %v1988 = vshrl.u32 %v1987, 7
        %v1989 = vsub.s32 6, %v1988
        %v1990 = vrot.slane %v1680, %v1989
        %v1991 = vmul.f32 %v1621, %v1990
        %v1992 = vmul.f32 %v1626, %v1990
        %v1993 = vmul.f32 %v1631, %v1990
        %v1994 = vadd.f32 %v1984, %v1991
        %v1995 = vadd.f32 %v1985, %v1992
        %v1996 = vadd.f32 %v1986, %v1993
        %v1997 = vlaneseq
        %v1998 = vshrl.u32 %v1997, 7
        %v1999 = vsub.s32 7, %v1998
        %v2000 = vrot.slane %v1680, %v1999
        %v2001 = vmul.f32 %v1636, %v2000
        %v2002 = vmul.f32 %v1641, %v2000
        %v2003 = vmul.f32 %v1646, %v2000
        %v2004 = vadd.f32 %v1994, %v2001
        %v2005 = vadd.f32 %v1995, %v2002
        %v2006 = vadd.f32 %v1996, %v2003
        %v2007 = vlaneseq
        %v2008 = vshrl.u32 %v2007, 7
        %v2009 = vsub.s32 0, %v2008
        %v2010 = vrot.slane %v1681, %v2009
        %v2011 = vmul.f32 %v1651, %v2010
        %v2012 = vmul.f32 %v1656, %v2010
        %v2013 = vmul.f32 %v1661, %v2010
        %v2014 = vadd.f32 %v2004, %v2011
        %v2015 = vadd.f32 %v2005, %v2012
        %v2016 = vadd.f32 %v2006, %v2013
        %v2017 = vlaneseq
        %v2018 = vshrl.u32 %v2017, 7
        %v2019 = vsub.s32 1, %v2018
        %v2020 = vrot.slane %v1681, %v2019
        %v2021 = vmul.f32 %v1666, %v2020
        %v2022 = vmul.f32 %v1671, %v2020
        %v2023 = vmul.f32 %v1676, %v2020
        %v2024 = vadd.f32 %v2014, %v2021
        %v2025 = vadd.f32 %v2015, %v2022
        %v2026 = vadd.f32 %v2016, %v2023
        %v2027 = vlaneseq
        %v2028 = vshrl.u32 %v2027, 7
        %v2029 = vsub.s32 1, %v2028
        %v2030 = vrot.slane %v1683, %v2029
        %v2031 = vadd.f32 %v2024, %v2030
        %v2032 = vadd.f32 %v2025, %v2030
        %v2033 = vadd.f32 %v2026, %v2030
        %v2034 = vlaneseq
        %v2035 = vshrl.u32 %v2034, 7
        %v2036 = vsub.s32 2, %v2035
        %v2037 = vrot.slane %v1681, %v2036
        %v2038 = vmul.f32 %v1546, %v2037
        %v2039 = vmul.f32 %v1551, %v2037
        %v2040 = vmul.f32 %v1556, %v2037
        %v2041 = vlaneseq
        %v2042 = vshrl.u32 %v2041, 7
        %v2043 = vsub.s32 3, %v2042
        %v2044 = vrot.slane %v1681, %v2043
        %v2045 = vmul.f32 %v1561, %v2044
        %v2046 = vmul.f32 %v1566, %v2044
        %v2047 = vmul.f32 %v1571, %v2044
        %v2048 = vadd.f32 %v2038, %v2045
        %v2049 = vadd.f32 %v2039, %v2046
        %v2050 = vadd.f32 %v2040, %v2047
        %v2051 = vlaneseq
        %v2052 = vshrl.u32 %v2051, 7
        %v2053 = vsub.s32 4, %v2052
        %v2054 = vrot.slane %v1681, %v2053
        %v2055 = vmul.f32 %v1576, %v2054
        %v2056 = vmul.f32 %v1581, %v2054
        %v2057 = vmul.f32 %v1586, %v2054
        %v2058 = vadd.f32 %v2048, %v2055
        %v2059 = vadd.f32 %v2049, %v2056
        %v2060 = vadd.f32 %v2050, %v2057
        %v2061 = vlaneseq
        %v2062 = vshrl.u32 %v2061, 7
        %v2063 = vsub.s32 5, %v2062
        %v2064 = vrot.slane %v1681, %v2063
        %v2065 = vmul.f32 %v1591, %v2064
        %v2066 = vmul.f32 %v1596, %v2064
        %v2067 = vmul.f32 %v1601, %v2064
        %v2068 = vadd.f32 %v2058, %v2065
        %v2069 = vadd.f32 %v2059, %v2066
        %v2070 = vadd.f32 %v2060, %v2067
        %v2071 = vlaneseq
        %v2072 = vshrl.u32 %v2071, 7
        %v2073 = vsub.s32 6, %v2072
        %v2074 = vrot.slane %v1681, %v2073
        %v2075 = vmul.f32 %v1606, %v2074
        %v2076 = vmul.f32 %v1611, %v2074
        %v2077 = vmul.f32 %v1616, %v2074
        %v2078 = vadd.f32 %v2068, %v2075
        %v2079 = vadd.f32 %v2069, %v2076
        %v2080 = vadd.f32 %v2070, %v2077
        %v2081 = vlaneseq
        %v2082 = vshrl.u32 %v2081, 7
        %v2083 = vsub.s32 7, %v2082
        %v2084 = vrot.slane %v1681, %v2083
        %v2085 = vmul.f32 %v1621, %v2084
        %v2086 = vmul.f32 %v1626, %v2084
        %v2087 = vmul.f32 %v1631, %v2084
        %v2088 = vadd.f32 %v2078, %v2085
        %v2089 = vadd.f32 %v2079, %v2086
        %v2090 = vadd.f32 %v2080, %v2087
        %v2091 = vlaneseq
        %v2092 = vshrl.u32 %v2091, 7
        %v2093 = vsub.s32 0, %v2092
        %v2094 = vrot.slane %v1682, %v2093
        %v2095 = vmul.f32 %v1636, %v2094
        %v2096 = vmul.f32 %v1641, %v2094
        %v2097 = vmul.f32 %v1646, %v2094
        %v2098 = vadd.f32 %v2088, %v2095
        %v2099 = vadd.f32 %v2089, %v2096
        %v2100 = vadd.f32 %v2090, %v2097
        %v2101 = vlaneseq
        %v2102 = vshrl.u32 %v2101, 7
        %v2103 = vsub.s32 1, %v2102
        %v2104 = vrot.slane %v1682, %v2103
        %v2105 = vmul.f32 %v1651, %v2104
        %v2106 = vmul.f32 %v1656, %v2104
        %v2107 = vmul.f32 %v1661, %v2104
        %v2108 = vadd.f32 %v2098, %v2105
        %v2109 = vadd.f32 %v2099, %v2106
        %v2110 = vadd.f32 %v2100, %v2107
        %v2111 = vlaneseq
        %v2112 = vshrl.u32 %v2111, 7
        %v2113 = vsub.s32 2, %v2112
        %v2114 = vrot.slane %v1682, %v2113
        %v2115 = vmul.f32 %v1666, %v2114
        %v2116 = vmul.f32 %v1671, %v2114
        %v2117 = vmul.f32 %v1676, %v2114
        %v2118 = vadd.f32 %v2108, %v2115
        %v2119 = vadd.f32 %v2109, %v2116
        %v2120 = vadd.f32 %v2110, %v2117
        %v2121 = vlaneseq
        %v2122 = vshrl.u32 %v2121, 7
        %v2123 = vsub.s32 2, %v2122
        %v2124 = vrot.slane %v1683, %v2123
        %v2125 = vadd.f32 %v2118, %v2124
        %v2126 = vadd.f32 %v2119, %v2124
        %v2127 = vadd.f32 %v2120, %v2124
        %v2128 = vld [vmem:[%s5] sm:$0xff]
        %v2129 = vld [vmem:[%s5 + $0x8] sm:$0xff]
        %v2130 = vld [vmem:[%s5 + $0x10] sm:$0xff]
        %v2131 = vld [vmem:[%s5 + $0x18] sm:$0xff]
        %vm2132 = vcmask 261120
        %v2134 = vsel %vm2132, %v1928, 0
        %v2137 = vsel %vm2132, %v1929, 0
        %v2140 = vsel %vm2132, %v1930, 0
        %v2143 = vsel %vm2132, %v1931, 0
        %v2146 = vsel %vm2132, %v1932, 0
        %v2149 = vsel %vm2132, %v1933, 0
        %v2152 = vsel %vm2132, %v1934, 0
        %v2155 = vsel %vm2132, %v1935, 0
        %v2158 = vsel %vm2132, %v1936, 0
        %v2161 = vsel %vm2132, %v1937, 0
        %v2164 = vsel %vm2132, %v1938, 0
        %v2167 = vsel %vm2132, %v1939, 0
        %2169 = vmatprep.subr.mxu0 0.0
        %2170 = vmatpush1.msra.mxu0 %v2128
        %2171 = vmatprep.subr.mxu0 0.0
        %2172 = vmatpush1.msra.mxu0 %v2129
        %2173 = vmatprep.subr.mxu0 0.0
        %2174 = vmatpush1.msra.mxu0 %v2130
        %2175 = vmatprep.subr.mxu0 0.0
        %2176 = vmatpush1.msra.mxu0 %v2131
        %2177 = vmatprep.subr.mxu0 0.0
        %2178 = vmatpush1.msra.mxu0 0.0
        %2179 = vmatprep.subr.mxu0 0.0
        %2180 = vmatpush1.msra.mxu0 0.0
        %2181 = vmatprep.subr.mxu0 0.0
        %2182 = vmatpush1.msra.mxu0 0.0
        %2183 = vmatprep.subr.mxu0 0.0
        %2184 = vmatpush1.msra.mxu0 0.0
        %2185 = vmatprep.subr.mxu0 0.0
        %2186 = vmatpush1.msra.mxu0 0.0
        %2187 = vmatprep.subr.mxu0 0.0
        %2188 = vmatpush1.msra.mxu0 0.0
        %2189 = vmatprep.subr.mxu0 0.0
        %2190 = vmatpush1.msra.mxu0 0.0
        %2191 = vmatprep.subr.mxu0 0.0
        %2192 = vmatpush1.msra.mxu0 0.0
        %2193 = vmatprep.subr.mxu0 0.0
        %2194 = vmatpush1.msra.mxu0 0.0
        %2195 = vmatprep.subr.mxu0 0.0
        %2196 = vmatpush1.msra.mxu0 0.0
        %2197 = vmatprep.subr.mxu0 0.0
        %2198 = vmatpush1.msra.mxu0 0.0
        %2199 = vmatprep.subr.mxu0 0.0
        %2200 = vmatpush1.msra.mxu0 0.0
        %2201 = vmatprep.subr.mxu0 0.0
        %2202 = vmatpush1.msra.mxu0 0.0
        %2203 = vmatprep.subr.mxu0 0.0
        %2204 = vmatpush1.msra.mxu0 0.0
        %2205 = vmatprep.subr.mxu0 0.0
        %2206 = vmatpush1.msra.mxu0 0.0
        %2207 = vmatprep.subr.mxu0 0.0
        %2208 = vmatpush1.msra.mxu0 0.0
        %2209 = vmatprep.subr.mxu0 0.0
        %2210 = vmatpush1.msra.mxu0 0.0
        %2211 = vmatprep.subr.mxu0 0.0
        %2212 = vmatpush1.msra.mxu0 0.0
        %2213 = vmatprep.subr.mxu0 0.0
        %2214 = vmatpush1.msra.mxu0 0.0
        %2215 = vmatprep.subr.mxu0 0.0
        %2216 = vmatpush1.msra.mxu0 0.0
        %2217 = vmatprep.subr.mxu0 0.0
        %2218 = vmatpush1.msra.mxu0 0.0
        %2219 = vmatprep.subr.mxu0 0.0
        %2220 = vmatpush1.msra.mxu0 0.0
        %2221 = vmatprep.subr.mxu0 0.0
        %2222 = vmatpush1.msra.mxu0 0.0
        %2223 = vmatprep.subr.mxu0 0.0
        %2224 = vmatpush1.msra.mxu0 0.0
        %2225 = vmatprep.subr.mxu0 0.0
        %2226 = vmatpush1.msra.mxu0 0.0
        %2227 = vmatprep.subr.mxu0 0.0
        %2228 = vmatpush1.msra.mxu0 0.0
        %2229 = vmatprep.subr.mxu0 0.0
        %2230 = vmatpush1.msra.mxu0 0.0
        %2231 = vmatprep.subr.mxu0 0.0
        %2232 = vmatpush1.msra.mxu0 0.0
        %2233 = vmatprep.mubr.f32.mxu0 0.0
        %2234 = vmatmul.mubr.f32.gmra.mrb[0].mxu0 %v2134
        %v2235 = vpop.f32.mrb[0].mxu0
        %v2236 = vadd.f32 0.0, %v2235
        %v2237 = vpop.f32.mrb[0].mxu0
        %2238 = vmatprep.mubr.f32.mxu0 0.0
        %2239 = vmatmul.mubr.f32.gmra.mrb[0].mxu0 %v2137
        %v2240 = vpop.f32.mrb[0].mxu0
        %v2241 = vadd.f32 0.0, %v2240
        %v2242 = vpop.f32.mrb[0].mxu0
        %2243 = vmatprep.mubr.f32.mxu0 0.0
        %2244 = vmatmul.mubr.f32.gmra.mrb[0].mxu0 %v2140
        %v2245 = vpop.f32.mrb[0].mxu0
        %v2246 = vadd.f32 0.0, %v2245
        %v2247 = vpop.f32.mrb[0].mxu0
        %2248 = vmatprep.mubr.f32.mxu0 0.0
        %2249 = vmatmul.mubr.f32.gmra.mrb[0].mxu0 %v2143
        %v2250 = vpop.f32.mrb[0].mxu0
        %v2251 = vadd.f32 0.0, %v2250
        %v2252 = vpop.f32.mrb[0].mxu0
        %2253 = vmatprep.mubr.f32.mxu0 0.0
        %2254 = vmatmul.mubr.f32.gmra.mrb[0].mxu0 %v2146
        %v2255 = vpop.f32.mrb[0].mxu0
        %v2256 = vadd.f32 0.0, %v2255
        %v2257 = vpop.f32.mrb[0].mxu0
        %2258 = vmatprep.mubr.f32.mxu0 0.0
        %2259 = vmatmul.mubr.f32.gmra.mrb[0].mxu0 %v2149
        %v2260 = vpop.f32.mrb[0].mxu0
        %v2261 = vadd.f32 0.0, %v2260
        %v2262 = vpop.f32.mrb[0].mxu0
        %2263 = vmatprep.mubr.f32.mxu0 0.0
        %2264 = vmatmul.mubr.f32.gmra.mrb[0].mxu0 %v2152
        %v2265 = vpop.f32.mrb[0].mxu0
        %v2266 = vadd.f32 0.0, %v2265
        %v2267 = vpop.f32.mrb[0].mxu0
        %2268 = vmatprep.mubr.f32.mxu0 0.0
        %2269 = vmatmul.mubr.f32.gmra.mrb[0].mxu0 %v2155
        %v2270 = vpop.f32.mrb[0].mxu0
        %v2271 = vadd.f32 0.0, %v2270
        %v2272 = vpop.f32.mrb[0].mxu0
        %2273 = vmatprep.mubr.f32.mxu0 0.0
        %2274 = vmatmul.mubr.f32.gmra.mrb[0].mxu0 %v2158
        %v2275 = vpop.f32.mrb[0].mxu0
        %v2276 = vadd.f32 0.0, %v2275
        %v2277 = vpop.f32.mrb[0].mxu0
        %2278 = vmatprep.mubr.f32.mxu0 0.0
        %2279 = vmatmul.mubr.f32.gmra.mrb[0].mxu0 %v2161
        %v2280 = vpop.f32.mrb[0].mxu0
        %v2281 = vadd.f32 0.0, %v2280
        %v2282 = vpop.f32.mrb[0].mxu0
        %2283 = vmatprep.mubr.f32.mxu0 0.0
        %2284 = vmatmul.mubr.f32.gmra.mrb[0].mxu0 %v2164
        %v2285 = vpop.f32.mrb[0].mxu0
        %v2286 = vadd.f32 0.0, %v2285
        %v2287 = vpop.f32.mrb[0].mxu0
        %2288 = vmatprep.mubr.f32.mxu0 0.0
        %2289 = vmatmul.mubr.f32.gmra.mrb[0].mxu0 %v2167
        %v2290 = vpop.f32.mrb[0].mxu0
        %v2291 = vadd.f32 0.0, %v2290
        %v2292 = vpop.f32.mrb[0].mxu0
        %2293 = vdwg.mxu0
        %v2294 = vld [vmem:[%s5 + $0x20] sm:$0xff]
        %v2295 = vld [vmem:[%s5 + $0x28] sm:$0xff]
        %v2296 = vld [vmem:[%s5 + $0x30] sm:$0xff]
        %v2297 = vld [vmem:[%s5 + $0x38] sm:$0xff]
        %v2299 = vsel %vm2132, %v2031, 0
        %v2302 = vsel %vm2132, %v2032, 0
        %v2305 = vsel %vm2132, %v2033, 0
        %2307 = vmatprep.subr.mxu0 0.0
        %2308 = vmatpush1.msra.mxu0 %v2294
        %2309 = vmatprep.subr.mxu0 0.0
        %2310 = vmatpush1.msra.mxu0 %v2295
        %2311 = vmatprep.subr.mxu0 0.0
        %2312 = vmatpush1.msra.mxu0 %v2296
        %2313 = vmatprep.subr.mxu0 0.0
        %2314 = vmatpush1.msra.mxu0 %v2297
        %2315 = vmatprep.subr.mxu0 0.0
        %2316 = vmatpush1.msra.mxu0 0.0
        %2317 = vmatprep.subr.mxu0 0.0
        %2318 = vmatpush1.msra.mxu0 0.0
        %2319 = vmatprep.subr.mxu0 0.0
        %2320 = vmatpush1.msra.mxu0 0.0
        %2321 = vmatprep.subr.mxu0 0.0
        %2322 = vmatpush1.msra.mxu0 0.0
        %2323 = vmatprep.subr.mxu0 0.0
        %2324 = vmatpush1.msra.mxu0 0.0
        %2325 = vmatprep.subr.mxu0 0.0
        %2326 = vmatpush1.msra.mxu0 0.0
        %2327 = vmatprep.subr.mxu0 0.0
        %2328 = vmatpush1.msra.mxu0 0.0
        %2329 = vmatprep.subr.mxu0 0.0
        %2330 = vmatpush1.msra.mxu0 0.0
        %2331 = vmatprep.subr.mxu0 0.0
        %2332 = vmatpush1.msra.mxu0 0.0
        %2333 = vmatprep.subr.mxu0 0.0
        %2334 = vmatpush1.msra.mxu0 0.0
        %2335 = vmatprep.subr.mxu0 0.0
        %2336 = vmatpush1.msra.mxu0 0.0
        %2337 = vmatprep.subr.mxu0 0.0
        %2338 = vmatpush1.msra.mxu0 0.0
        %2339 = vmatprep.subr.mxu0 0.0
        %2340 = vmatpush1.msra.mxu0 0.0
        %2341 = vmatprep.subr.mxu0 0.0
        %2342 = vmatpush1.msra.mxu0 0.0
        %2343 = vmatprep.subr.mxu0 0.0
        %2344 = vmatpush1.msra.mxu0 0.0
        %2345 = vmatprep.subr.mxu0 0.0
        %2346 = vmatpush1.msra.mxu0 0.0
        %2347 = vmatprep.subr.mxu0 0.0
        %2348 = vmatpush1.msra.mxu0 0.0
        %2349 = vmatprep.subr.mxu0 0.0
        %2350 = vmatpush1.msra.mxu0 0.0
        %2351 = vmatprep.subr.mxu0 0.0
        %2352 = vmatpush1.msra.mxu0 0.0
        %2353 = vmatprep.subr.mxu0 0.0
        %2354 = vmatpush1.msra.mxu0 0.0
        %2355 = vmatprep.subr.mxu0 0.0
        %2356 = vmatpush1.msra.mxu0 0.0
        %2357 = vmatprep.subr.mxu0 0.0
        %2358 = vmatpush1.msra.mxu0 0.0
        %2359 = vmatprep.subr.mxu0 0.0
        %2360 = vmatpush1.msra.mxu0 0.0
        %2361 = vmatprep.subr.mxu0 0.0
        %2362 = vmatpush1.msra.mxu0 0.0
        %2363 = vmatprep.subr.mxu0 0.0
        %2364 = vmatpush1.msra.mxu0 0.0
        %2365 = vmatprep.subr.mxu0 0.0
        %2366 = vmatpush1.msra.mxu0 0.0
        %2367 = vmatprep.subr.mxu0 0.0
        %2368 = vmatpush1.msra.mxu0 0.0
        %2369 = vmatprep.subr.mxu0 0.0
        %2370 = vmatpush1.msra.mxu0 0.0
        %2371 = vmatprep.mubr.f32.mxu0 0.0
        %2372 = vmatmul.mubr.f32.gmra.mrb[0].mxu0 %v2299
        %v2373 = vpop.f32.mrb[0].mxu0
        %v2374 = vadd.f32 0.0, %v2373
        %v2375 = vpop.f32.mrb[0].mxu0
        %2376 = vmatprep.mubr.f32.mxu0 0.0
        %2377 = vmatmul.mubr.f32.gmra.mrb[0].mxu0 %v2302
        %v2378 = vpop.f32.mrb[0].mxu0
        %v2379 = vadd.f32 0.0, %v2378
        %v2380 = vpop.f32.mrb[0].mxu0
        %2381 = vmatprep.mubr.f32.mxu0 0.0
        %2382 = vmatmul.mubr.f32.gmra.mrb[0].mxu0 %v2305
        %v2383 = vpop.f32.mrb[0].mxu0
        %v2384 = vadd.f32 0.0, %v2383
        %v2385 = vpop.f32.mrb[0].mxu0
        %2386 = vdwg.mxu0
        %v2387 = vld [vmem:[%s5 + $0x40] sm:$0xff]
        %v2388 = vld [vmem:[%s5 + $0x48] sm:$0xff]
        %v2389 = vld [vmem:[%s5 + $0x50] sm:$0xff]
        %v2390 = vld [vmem:[%s5 + $0x58] sm:$0xff]
        %v2392 = vsel %vm2132, %v2125, 0
        %v2395 = vsel %vm2132, %v2126, 0
        %v2398 = vsel %vm2132, %v2127, 0
        %2400 = vmatprep.subr.mxu0 0.0
        %2401 = vmatpush1.msra.mxu0 %v2387
        %2402 = vmatprep.subr.mxu0 0.0
        %2403 = vmatpush1.msra.mxu0 %v2388
        %2404 = vmatprep.subr.mxu0 0.0
        %2405 = vmatpush1.msra.mxu0 %v2389
        %2406 = vmatprep.subr.mxu0 0.0
        %2407 = vmatpush1.msra.mxu0 %v2390
        %2408 = vmatprep.subr.mxu0 0.0
        %2409 = vmatpush1.msra.mxu0 0.0
        %2410 = vmatprep.subr.mxu0 0.0
        %2411 = vmatpush1.msra.mxu0 0.0
        %2412 = vmatprep.subr.mxu0 0.0
        %2413 = vmatpush1.msra.mxu0 0.0
        %2414 = vmatprep.subr.mxu0 0.0
        %2415 = vmatpush1.msra.mxu0 0.0
        %2416 = vmatprep.subr.mxu0 0.0
        %2417 = vmatpush1.msra.mxu0 0.0
        %2418 = vmatprep.subr.mxu0 0.0
        %2419 = vmatpush1.msra.mxu0 0.0
        %2420 = vmatprep.subr.mxu0 0.0
        %2421 = vmatpush1.msra.mxu0 0.0
        %2422 = vmatprep.subr.mxu0 0.0
        %2423 = vmatpush1.msra.mxu0 0.0
        %2424 = vmatprep.subr.mxu0 0.0
        %2425 = vmatpush1.msra.mxu0 0.0
        %2426 = vmatprep.subr.mxu0 0.0
        %2427 = vmatpush1.msra.mxu0 0.0
        %2428 = vmatprep.subr.mxu0 0.0
        %2429 = vmatpush1.msra.mxu0 0.0
        %2430 = vmatprep.subr.mxu0 0.0
        %2431 = vmatpush1.msra.mxu0 0.0
        %2432 = vmatprep.subr.mxu0 0.0
        %2433 = vmatpush1.msra.mxu0 0.0
        %2434 = vmatprep.subr.mxu0 0.0
        %2435 = vmatpush1.msra.mxu0 0.0
        %2436 = vmatprep.subr.mxu0 0.0
        %2437 = vmatpush1.msra.mxu0 0.0
        %2438 = vmatprep.subr.mxu0 0.0
        %2439 = vmatpush1.msra.mxu0 0.0
        %2440 = vmatprep.subr.mxu0 0.0
        %2441 = vmatpush1.msra.mxu0 0.0
        %2442 = vmatprep.subr.mxu0 0.0
        %2443 = vmatpush1.msra.mxu0 0.0
        %2444 = vmatprep.subr.mxu0 0.0
        %2445 = vmatpush1.msra.mxu0 0.0
        %2446 = vmatprep.subr.mxu0 0.0
        %2447 = vmatpush1.msra.mxu0 0.0
        %2448 = vmatprep.subr.mxu0 0.0
        %2449 = vmatpush1.msra.mxu0 0.0
        %2450 = vmatprep.subr.mxu0 0.0
        %2451 = vmatpush1.msra.mxu0 0.0
        %2452 = vmatprep.subr.mxu0 0.0
        %2453 = vmatpush1.msra.mxu0 0.0
        %2454 = vmatprep.subr.mxu0 0.0
        %2455 = vmatpush1.msra.mxu0 0.0
        %2456 = vmatprep.subr.mxu0 0.0
        %2457 = vmatpush1.msra.mxu0 0.0
        %2458 = vmatprep.subr.mxu0 0.0
        %2459 = vmatpush1.msra.mxu0 0.0
        %2460 = vmatprep.subr.mxu0 0.0
        %2461 = vmatpush1.msra.mxu0 0.0
        %2462 = vmatprep.subr.mxu0 0.0
        %2463 = vmatpush1.msra.mxu0 0.0
        %2464 = vmatprep.mubr.f32.mxu0 0.0
        %2465 = vmatmul.mubr.f32.gmra.mrb[0].mxu0 %v2392
        %v2466 = vpop.f32.mrb[0].mxu0
        %v2467 = vadd.f32 0.0, %v2466
        %v2468 = vpop.f32.mrb[0].mxu0
        %2469 = vmatprep.mubr.f32.mxu0 0.0
        %2470 = vmatmul.mubr.f32.gmra.mrb[0].mxu0 %v2395
        %v2471 = vpop.f32.mrb[0].mxu0
        %v2472 = vadd.f32 0.0, %v2471
        %v2473 = vpop.f32.mrb[0].mxu0
        %2474 = vmatprep.mubr.f32.mxu0 0.0
        %2475 = vmatmul.mubr.f32.gmra.mrb[0].mxu0 %v2398
        %v2476 = vpop.f32.mrb[0].mxu0
        %v2477 = vadd.f32 0.0, %v2476
        %v2478 = vpop.f32.mrb[0].mxu0
        %2479 = vdwg.mxu0
        %vm2480 = vcmask 64512
        %v2482 = vsel %vm2480, %v2236, 0
        %v2485 = vsel %vm2480, %v2241, 0
        %v2488 = vsel %vm2480, %v2246, 0
        %v2491 = vsel %vm2480, %v2251, 0
        %v2494 = vsel %vm2480, %v2374, 0
        %2496 = vmatprep.subr.mxu0 0.0
        %2497 = vmatpush1.xpose.msra.mxu0 %v2494
        %2498 = vmatprep.subr.mxu0 0.0
        %2499 = vmatpush1.xpose.msra.mxu0 0.0
        %2500 = vmatprep.subr.mxu0 0.0
        %2501 = vmatpush1.xpose.msra.mxu0 0.0
        %2502 = vmatprep.subr.mxu0 0.0
        %2503 = vmatpush1.xpose.msra.mxu0 0.0
        %2504 = vmatprep.subr.mxu0 0.0
        %2505 = vmatpush1.xpose.msra.mxu0 0.0
        %2506 = vmatprep.subr.mxu0 0.0
        %2507 = vmatpush1.xpose.msra.mxu0 0.0
        %2508 = vmatprep.subr.mxu0 0.0
        %2509 = vmatpush1.xpose.msra.mxu0 0.0
        %2510 = vmatprep.subr.mxu0 0.0
        %2511 = vmatpush1.xpose.msra.mxu0 0.0
        %2512 = vmatprep.subr.mxu0 0.0
        %2513 = vmatpush1.xpose.msra.mxu0 0.0
        %2514 = vmatprep.subr.mxu0 0.0
        %2515 = vmatpush1.xpose.msra.mxu0 0.0
        %2516 = vmatprep.subr.mxu0 0.0
        %2517 = vmatpush1.xpose.msra.mxu0 0.0
        %2518 = vmatprep.subr.mxu0 0.0
        %2519 = vmatpush1.xpose.msra.mxu0 0.0
        %2520 = vmatprep.subr.mxu0 0.0
        %2521 = vmatpush1.xpose.msra.mxu0 0.0
        %2522 = vmatprep.subr.mxu0 0.0
        %2523 = vmatpush1.xpose.msra.mxu0 0.0
        %2524 = vmatprep.subr.mxu0 0.0
        %2525 = vmatpush1.xpose.msra.mxu0 0.0
        %2526 = vmatprep.subr.mxu0 0.0
        %2527 = vmatpush1.xpose.msra.mxu0 0.0
        %2528 = vmatprep.subr.mxu0 0.0
        %2529 = vmatpush1.xpose.msra.mxu0 0.0
        %2530 = vmatprep.subr.mxu0 0.0
        %2531 = vmatpush1.xpose.msra.mxu0 0.0
        %2532 = vmatprep.subr.mxu0 0.0
        %2533 = vmatpush1.xpose.msra.mxu0 0.0
        %2534 = vmatprep.subr.mxu0 0.0
        %2535 = vmatpush1.xpose.msra.mxu0 0.0
        %2536 = vmatprep.subr.mxu0 0.0
        %2537 = vmatpush1.xpose.msra.mxu0 0.0
        %2538 = vmatprep.subr.mxu0 0.0
        %2539 = vmatpush1.xpose.msra.mxu0 0.0
        %2540 = vmatprep.subr.mxu0 0.0
        %2541 = vmatpush1.xpose.msra.mxu0 0.0
        %2542 = vmatprep.subr.mxu0 0.0
        %2543 = vmatpush1.xpose.msra.mxu0 0.0
        %2544 = vmatprep.subr.mxu0 0.0
        %2545 = vmatpush1.xpose.msra.mxu0 0.0
        %2546 = vmatprep.subr.mxu0 0.0
        %2547 = vmatpush1.xpose.msra.mxu0 0.0
        %2548 = vmatprep.subr.mxu0 0.0
        %2549 = vmatpush1.xpose.msra.mxu0 0.0
        %2550 = vmatprep.subr.mxu0 0.0
        %2551 = vmatpush1.xpose.msra.mxu0 0.0
        %2552 = vmatprep.subr.mxu0 0.0
        %2553 = vmatpush1.xpose.msra.mxu0 0.0
        %2554 = vmatprep.subr.mxu0 0.0
        %2555 = vmatpush1.xpose.msra.mxu0 0.0
        %2556 = vmatprep.subr.mxu0 0.0
        %2557 = vmatpush1.xpose.msra.mxu0 0.0
        %2558 = vmatprep.subr.mxu0 0.0
        %2559 = vmatpush1.xpose.msra.mxu0 0.0
        %2560 = vmatprep.mubr.f32.mxu0 0.0
        %2561 = vmatmul.mubr.f32.gmra.mrb[0].mxu0 %v2482
        %v2562 = vpop.f32.mrb[0].mxu0
        %v2563 = vadd.f32 0.0, %v2562
        %v2564 = vpop.f32.mrb[0].mxu0
        %2565 = vmatprep.mubr.f32.mxu0 0.0
        %2566 = vmatmul.mubr.f32.gmra.mrb[0].mxu0 %v2485
        %v2567 = vpop.f32.mrb[0].mxu0
        %v2568 = vadd.f32 0.0, %v2567
        %v2569 = vpop.f32.mrb[0].mxu0
        %2570 = vmatprep.mubr.f32.mxu0 0.0
        %2571 = vmatmul.mubr.f32.gmra.mrb[0].mxu0 %v2488
        %v2572 = vpop.f32.mrb[0].mxu0
        %v2573 = vadd.f32 0.0, %v2572
        %v2574 = vpop.f32.mrb[0].mxu0
        %2575 = vmatprep.mubr.f32.mxu0 0.0
        %2576 = vmatmul.mubr.f32.gmra.mrb[0].mxu0 %v2491
        %v2577 = vpop.f32.mrb[0].mxu0
        %v2578 = vadd.f32 0.0, %v2577
        %v2579 = vpop.f32.mrb[0].mxu0
        %2580 = vdwg.mxu0
        %v2581 = vmul.f32 %v2563, 0.17677669
        %v2582 = vmul.f32 %v2568, 0.17677669
        %v2583 = vmul.f32 %v2573, 0.17677669
        %v2584 = vmul.f32 %v2578, 0.17677669
        %v2585 = vsel %vm2480, %v2581, -inf
        %2586 = vmax.xlane.f32.xlu0 %v2585
        %v2587 = vpop.xlane.xlu0 %2586
        %v2588 = vsel %vm2480, %v2582, -inf
        %2589 = vmax.xlane.f32.xlu0 %v2588
        %v2590 = vpop.xlane.xlu0 %2589
        %v2591 = vsel %vm2480, %v2583, -inf
        %2592 = vmax.xlane.f32.xlu0 %v2591
        %v2593 = vpop.xlane.xlu0 %2592
        %v2594 = vsel %vm2480, %v2584, -inf
        %2595 = vmax.xlane.f32.xlu0 %v2594
        %v2596 = vpop.xlane.xlu0 %2595
        %v2597 = vsub.f32 %v2581, %v2587
        %v2598 = vsub.f32 %v2582, %v2590
        %v2599 = vsub.f32 %v2583, %v2593
        %v2600 = vsub.f32 %v2584, %v2596
        %v2601 = vmul.f32 %v2597, 1.442695
        %v2602 = vpow.pop %v2601
        %v2603 = vmul.f32 %v2598, 1.442695
        %v2604 = vpow.pop %v2603
        %v2605 = vmul.f32 %v2599, 1.442695
        %v2606 = vpow.pop %v2605
        %v2607 = vmul.f32 %v2600, 1.442695
        %v2608 = vpow.pop %v2607
        %v2609 = vsel %vm2480, %v2602, 0.0
        %2610 = vadd.xlane.f32.xlu0 %v2609
        %v2611 = vpop.xlane.xlu0 %2610
        %v2612 = vsel %vm2480, %v2604, 0.0
        %2613 = vadd.xlane.f32.xlu0 %v2612
        %v2614 = vpop.xlane.xlu0 %2613
        %v2615 = vsel %vm2480, %v2606, 0.0
        %2616 = vadd.xlane.f32.xlu0 %v2615
        %v2617 = vpop.xlane.xlu0 %2616
        %v2618 = vsel %vm2480, %v2608, 0.0
        %2619 = vadd.xlane.f32.xlu0 %v2618
        %v2620 = vpop.xlane.xlu0 %2619
        %v2621 = vrcp.pop %v2611
        %v2622 = vmul.f32 %v2602, %v2621
        %v2623 = vrcp.pop %v2614
        %v2624 = vmul.f32 %v2604, %v2623
        %v2625 = vrcp.pop %v2617
        %v2626 = vmul.f32 %v2606, %v2625
        %v2627 = vrcp.pop %v2620
        %v2628 = vmul.f32 %v2608, %v2627
        %v2630 = vsel %vm2480, %v2622, 0
        %v2633 = vsel %vm2480, %v2624, 0
        %v2636 = vsel %vm2480, %v2626, 0
        %v2639 = vsel %vm2480, %v2628, 0
        %2641 = vmatprep.subr.mxu0 0.0
        %2642 = vmatpush1.msra.mxu0 %v2467
        %2643 = vmatprep.subr.mxu0 0.0
        %2644 = vmatpush1.msra.mxu0 0.0
        %2645 = vmatprep.subr.mxu0 0.0
        %2646 = vmatpush1.msra.mxu0 0.0
        %2647 = vmatprep.subr.mxu0 0.0
        %2648 = vmatpush1.msra.mxu0 0.0
        %2649 = vmatprep.subr.mxu0 0.0
        %2650 = vmatpush1.msra.mxu0 0.0
        %2651 = vmatprep.subr.mxu0 0.0
        %2652 = vmatpush1.msra.mxu0 0.0
        %2653 = vmatprep.subr.mxu0 0.0
        %2654 = vmatpush1.msra.mxu0 0.0
        %2655 = vmatprep.subr.mxu0 0.0
        %2656 = vmatpush1.msra.mxu0 0.0
        %2657 = vmatprep.subr.mxu0 0.0
        %2658 = vmatpush1.msra.mxu0 0.0
        %2659 = vmatprep.subr.mxu0 0.0
        %2660 = vmatpush1.msra.mxu0 0.0
        %2661 = vmatprep.subr.mxu0 0.0
        %2662 = vmatpush1.msra.mxu0 0.0
        %2663 = vmatprep.subr.mxu0 0.0
        %2664 = vmatpush1.msra.mxu0 0.0
        %2665 = vmatprep.subr.mxu0 0.0
        %2666 = vmatpush1.msra.mxu0 0.0
        %2667 = vmatprep.subr.mxu0 0.0
        %2668 = vmatpush1.msra.mxu0 0.0
        %2669 = vmatprep.subr.mxu0 0.0
        %2670 = vmatpush1.msra.mxu0 0.0
        %2671 = vmatprep.subr.mxu0 0.0
        %2672 = vmatpush1.msra.mxu0 0.0
        %2673 = vmatprep.subr.mxu0 0.0
        %2674 = vmatpush1.msra.mxu0 0.0
        %2675 = vmatprep.subr.mxu0 0.0
        %2676 = vmatpush1.msra.mxu0 0.0
        %2677 = vmatprep.subr.mxu0 0.0
        %2678 = vmatpush1.msra.mxu0 0.0
        %2679 = vmatprep.subr.mxu0 0.0
        %2680 = vmatpush1.msra.mxu0 0.0
        %2681 = vmatprep.subr.mxu0 0.0
        %2682 = vmatpush1.msra.mxu0 0.0
        %2683 = vmatprep.subr.mxu0 0.0
        %2684 = vmatpush1.msra.mxu0 0.0
        %2685 = vmatprep.subr.mxu0 0.0
        %2686 = vmatpush1.msra.mxu0 0.0
        %2687 = vmatprep.subr.mxu0 0.0
        %2688 = vmatpush1.msra.mxu0 0.0
        %2689 = vmatprep.subr.mxu0 0.0
        %2690 = vmatpush1.msra.mxu0 0.0
        %2691 = vmatprep.subr.mxu0 0.0
        %2692 = vmatpush1.msra.mxu0 0.0
        %2693 = vmatprep.subr.mxu0 0.0
        %2694 = vmatpush1.msra.mxu0 0.0
        %2695 = vmatprep.subr.mxu0 0.0
        %2696 = vmatpush1.msra.mxu0 0.0
        %2697 = vmatprep.subr.mxu0 0.0
        %2698 = vmatpush1.msra.mxu0 0.0
        %2699 = vmatprep.subr.mxu0 0.0
        %2700 = vmatpush1.msra.mxu0 0.0
        %2701 = vmatprep.subr.mxu0 0.0
        %2702 = vmatpush1.msra.mxu0 0.0
        %2703 = vmatprep.subr.mxu0 0.0
        %2704 = vmatpush1.msra.mxu0 0.0
        %2705 = vmatprep.mubr.f32.mxu0 0.0
        %2706 = vmatmul.mubr.f32.gmra.mrb[0].mxu0 %v2630
        %v2707 = vpop.f32.mrb[0].mxu0
        %v2708 = vadd.f32 0.0, %v2707
        %v2709 = vpop.f32.mrb[0].mxu0
        %2710 = vmatprep.mubr.f32.mxu0 0.0
        %2711 = vmatmul.mubr.f32.gmra.mrb[0].mxu0 %v2633
        %v2712 = vpop.f32.mrb[0].mxu0
        %v2713 = vadd.f32 0.0, %v2712
        %v2714 = vpop.f32.mrb[0].mxu0
        %2715 = vmatprep.mubr.f32.mxu0 0.0
        %2716 = vmatmul.mubr.f32.gmra.mrb[0].mxu0 %v2636
        %v2717 = vpop.f32.mrb[0].mxu0
        %v2718 = vadd.f32 0.0, %v2717
        %v2719 = vpop.f32.mrb[0].mxu0
        %2720 = vmatprep.mubr.f32.mxu0 0.0
        %2721 = vmatmul.mubr.f32.gmra.mrb[0].mxu0 %v2639
        %v2722 = vpop.f32.mrb[0].mxu0
        %v2723 = vadd.f32 0.0, %v2722
        %v2724 = vpop.f32.mrb[0].mxu0
        %2725 = vdwg.mxu0
        %v2727 = vsel %vm2480, %v2256, 0
        %v2730 = vsel %vm2480, %v2261, 0
        %v2733 = vsel %vm2480, %v2266, 0
        %v2736 = vsel %vm2480, %v2271, 0
        %v2739 = vsel %vm2480, %v2276, 0
        %v2742 = vsel %vm2480, %v2281, 0
        %v2745 = vsel %vm2480, %v2286, 0
        %v2748 = vsel %vm2480, %v2291, 0
        %v2751 = vsel %vm2480, %v2379, 0
        %v2754 = vsel %vm2480, %v2384, 0
        %2756 = vmatprep.subr.mxu0 0.0
        %2757 = vmatpush1.xpose.msra.mxu0 %v2494
        %2758 = vmatprep.subr.mxu0 0.0
        %2759 = vmatpush1.xpose.msra.mxu0 %v2751
        %2760 = vmatprep.subr.mxu0 0.0
        %2761 = vmatpush1.xpose.msra.mxu0 %v2754
        %2762 = vmatprep.subr.mxu0 0.0
        %2763 = vmatpush1.xpose.msra.mxu0 0.0
        %2764 = vmatprep.subr.mxu0 0.0
        %2765 = vmatpush1.xpose.msra.mxu0 0.0
        %2766 = vmatprep.subr.mxu0 0.0
        %2767 = vmatpush1.xpose.msra.mxu0 0.0
        %2768 = vmatprep.subr.mxu0 0.0
        %2769 = vmatpush1.xpose.msra.mxu0 0.0
        %2770 = vmatprep.subr.mxu0 0.0
        %2771 = vmatpush1.xpose.msra.mxu0 0.0
        %2772 = vmatprep.subr.mxu0 0.0
        %2773 = vmatpush1.xpose.msra.mxu0 0.0
        %2774 = vmatprep.subr.mxu0 0.0
        %2775 = vmatpush1.xpose.msra.mxu0 0.0
        %2776 = vmatprep.subr.mxu0 0.0
        %2777 = vmatpush1.xpose.msra.mxu0 0.0
        %2778 = vmatprep.subr.mxu0 0.0
        %2779 = vmatpush1.xpose.msra.mxu0 0.0
        %2780 = vmatprep.subr.mxu0 0.0
        %2781 = vmatpush1.xpose.msra.mxu0 0.0
        %2782 = vmatprep.subr.mxu0 0.0
        %2783 = vmatpush1.xpose.msra.mxu0 0.0
        %2784 = vmatprep.subr.mxu0 0.0
        %2785 = vmatpush1.xpose.msra.mxu0 0.0
        %2786 = vmatprep.subr.mxu0 0.0
        %2787 = vmatpush1.xpose.msra.mxu0 0.0
        %2788 = vmatprep.subr.mxu0 0.0
        %2789 = vmatpush1.xpose.msra.mxu0 0.0
        %2790 = vmatprep.subr.mxu0 0.0
        %2791 = vmatpush1.xpose.msra.mxu0 0.0
        %2792 = vmatprep.subr.mxu0 0.0
        %2793 = vmatpush1.xpose.msra.mxu0 0.0
        %2794 = vmatprep.subr.mxu0 0.0
        %2795 = vmatpush1.xpose.msra.mxu0 0.0
        %2796 = vmatprep.subr.mxu0 0.0
        %2797 = vmatpush1.xpose.msra.mxu0 0.0
        %2798 = vmatprep.subr.mxu0 0.0
        %2799 = vmatpush1.xpose.msra.mxu0 0.0
        %2800 = vmatprep.subr.mxu0 0.0
        %2801 = vmatpush1.xpose.msra.mxu0 0.0
        %2802 = vmatprep.subr.mxu0 0.0
        %2803 = vmatpush1.xpose.msra.mxu0 0.0
        %2804 = vmatprep.subr.mxu0 0.0
        %2805 = vmatpush1.xpose.msra.mxu0 0.0
        %2806 = vmatprep.subr.mxu0 0.0
        %2807 = vmatpush1.xpose.msra.mxu0 0.0
        %2808 = vmatprep.subr.mxu0 0.0
        %2809 = vmatpush1.xpose.msra.mxu0 0.0
        %2810 = vmatprep.subr.mxu0 0.0
        %2811 = vmatpush1.xpose.msra.mxu0 0.0
        %2812 = vmatprep.subr.mxu0 0.0
        %2813 = vmatpush1.xpose.msra.mxu0 0.0
        %2814 = vmatprep.subr.mxu0 0.0
        %2815 = vmatpush1.xpose.msra.mxu0 0.0
        %2816 = vmatprep.subr.mxu0 0.0
        %2817 = vmatpush1.xpose.msra.mxu0 0.0
        %2818 = vmatprep.subr.mxu0 0.0
        %2819 = vmatpush1.xpose.msra.mxu0 0.0
        %2820 = vmatprep.mubr.f32.mxu0 0.0
        %2821 = vmatmul.mubr.f32.gmra.mrb[0].mxu0 %v2727
        %v2822 = vpop.f32.mrb[0].mxu0
        %v2823 = vadd.f32 0.0, %v2822
        %v2824 = vpop.f32.mrb[0].mxu0
        %2825 = vmatprep.mubr.f32.mxu0 0.0
        %2826 = vmatmul.mubr.f32.gmra.mrb[0].mxu0 %v2730
        %v2827 = vpop.f32.mrb[0].mxu0
        %v2828 = vadd.f32 0.0, %v2827
        %v2829 = vpop.f32.mrb[0].mxu0
        %2830 = vmatprep.mubr.f32.mxu0 0.0
        %2831 = vmatmul.mubr.f32.gmra.mrb[0].mxu0 %v2733
        %v2832 = vpop.f32.mrb[0].mxu0
        %v2833 = vadd.f32 0.0, %v2832
        %v2834 = vpop.f32.mrb[0].mxu0
        %2835 = vmatprep.mubr.f32.mxu0 0.0
        %2836 = vmatmul.mubr.f32.gmra.mrb[0].mxu0 %v2736
        %v2837 = vpop.f32.mrb[0].mxu0
        %v2838 = vadd.f32 0.0, %v2837
        %v2839 = vpop.f32.mrb[0].mxu0
        %2840 = vmatprep.mubr.f32.mxu0 0.0
        %2841 = vmatmul.mubr.f32.gmra.mrb[0].mxu0 %v2739
        %v2842 = vpop.f32.mrb[0].mxu0
        %v2843 = vadd.f32 0.0, %v2842
        %v2844 = vpop.f32.mrb[0].mxu0
        %2845 = vmatprep.mubr.f32.mxu0 0.0
        %2846 = vmatmul.mubr.f32.gmra.mrb[0].mxu0 %v2742
        %v2847 = vpop.f32.mrb[0].mxu0
        %v2848 = vadd.f32 0.0, %v2847
        %v2849 = vpop.f32.mrb[0].mxu0
        %2850 = vmatprep.mubr.f32.mxu0 0.0
        %2851 = vmatmul.mubr.f32.gmra.mrb[0].mxu0 %v2745
        %v2852 = vpop.f32.mrb[0].mxu0
        %v2853 = vadd.f32 0.0, %v2852
        %v2854 = vpop.f32.mrb[0].mxu0
        %2855 = vmatprep.mubr.f32.mxu0 0.0
        %2856 = vmatmul.mubr.f32.gmra.mrb[0].mxu0 %v2748
        %v2857 = vpop.f32.mrb[0].mxu0
        %v2858 = vadd.f32 0.0, %v2857
        %v2859 = vpop.f32.mrb[0].mxu0
        %2860 = vdwg.mxu0
        %v2861 = vmul.f32 %v2823, 0.17677669
        %v2862 = vmul.f32 %v2828, 0.17677669
        %v2863 = vmul.f32 %v2833, 0.17677669
        %v2864 = vmul.f32 %v2838, 0.17677669
        %v2865 = vmul.f32 %v2843, 0.17677669
        %v2866 = vmul.f32 %v2848, 0.17677669
        %v2867 = vmul.f32 %v2853, 0.17677669
        %v2868 = vmul.f32 %v2858, 0.17677669
        %vm2869 = vcmask 195584
        %v2870 = vsel %vm2869, %v2861, -inf
        %2871 = vmax.xlane.f32.xlu0 %v2870
        %v2872 = vpop.xlane.xlu0 %2871
        %v2873 = vsel %vm2869, %v2862, -inf
        %2874 = vmax.xlane.f32.xlu0 %v2873
        %v2875 = vpop.xlane.xlu0 %2874
        %v2876 = vsel %vm2869, %v2863, -inf
        %2877 = vmax.xlane.f32.xlu0 %v2876
        %v2878 = vpop.xlane.xlu0 %2877
        %v2879 = vsel %vm2869, %v2864, -inf
        %2880 = vmax.xlane.f32.xlu0 %v2879
        %v2881 = vpop.xlane.xlu0 %2880
        %v2882 = vsel %vm2869, %v2865, -inf
        %2883 = vmax.xlane.f32.xlu0 %v2882
        %v2884 = vpop.xlane.xlu0 %2883
        %v2885 = vsel %vm2869, %v2866, -inf
        %2886 = vmax.xlane.f32.xlu0 %v2885
        %v2887 = vpop.xlane.xlu0 %2886
        %v2888 = vsel %vm2869, %v2867, -inf
        %2889 = vmax.xlane.f32.xlu0 %v2888
        %v2890 = vpop.xlane.xlu0 %2889
        %v2891 = vsel %vm2869, %v2868, -inf
        %2892 = vmax.xlane.f32.xlu0 %v2891
        %v2893 = vpop.xlane.xlu0 %2892
        %v2894 = vsub.f32 %v2861, %v2872
        %v2895 = vsub.f32 %v2862, %v2875
        %v2896 = vsub.f32 %v2863, %v2878
        %v2897 = vsub.f32 %v2864, %v2881
        %v2898 = vsub.f32 %v2865, %v2884
        %v2899 = vsub.f32 %v2866, %v2887
        %v2900 = vsub.f32 %v2867, %v2890
        %v2901 = vsub.f32 %v2868, %v2893
        %v2902 = vmul.f32 %v2894, 1.442695
        %v2903 = vpow.pop %v2902
        %v2904 = vmul.f32 %v2895, 1.442695
        %v2905 = vpow.pop %v2904
        %v2906 = vmul.f32 %v2896, 1.442695
        %v2907 = vpow.pop %v2906
        %v2908 = vmul.f32 %v2897, 1.442695
        %v2909 = vpow.pop %v2908
        %v2910 = vmul.f32 %v2898, 1.442695
        %v2911 = vpow.pop %v2910
        %v2912 = vmul.f32 %v2899, 1.442695
        %v2913 = vpow.pop %v2912
        %v2914 = vmul.f32 %v2900, 1.442695
        %v2915 = vpow.pop %v2914
        %v2916 = vmul.f32 %v2901, 1.442695
        %v2917 = vpow.pop %v2916
        %v2918 = vsel %vm2869, %v2903, 0.0
        %2919 = vadd.xlane.f32.xlu0 %v2918
        %v2920 = vpop.xlane.xlu0 %2919
        %v2921 = vsel %vm2869, %v2905, 0.0
        %2922 = vadd.xlane.f32.xlu0 %v2921
        %v2923 = vpop.xlane.xlu0 %2922
        %v2924 = vsel %vm2869, %v2907, 0.0
        %2925 = vadd.xlane.f32.xlu0 %v2924
        %v2926 = vpop.xlane.xlu0 %2925
        %v2927 = vsel %vm2869, %v2909, 0.0
        %2928 = vadd.xlane.f32.xlu0 %v2927
        %v2929 = vpop.xlane.xlu0 %2928
        %v2930 = vsel %vm2869, %v2911, 0.0
        %2931 = vadd.xlane.f32.xlu0 %v2930
        %v2932 = vpop.xlane.xlu0 %2931
        %v2933 = vsel %vm2869, %v2913, 0.0
        %2934 = vadd.xlane.f32.xlu0 %v2933
        %v2935 = vpop.xlane.xlu0 %2934
        %v2936 = vsel %vm2869, %v2915, 0.0
        %2937 = vadd.xlane.f32.xlu0 %v2936
        %v2938 = vpop.xlane.xlu0 %2937
        %v2939 = vsel %vm2869, %v2917, 0.0
        %2940 = vadd.xlane.f32.xlu0 %v2939
        %v2941 = vpop.xlane.xlu0 %2940
        %v2942 = vrcp.pop %v2920
        %v2943 = vmul.f32 %v2903, %v2942
        %v2944 = vrcp.pop %v2923
        %v2945 = vmul.f32 %v2905, %v2944
        %v2946 = vrcp.pop %v2926
        %v2947 = vmul.f32 %v2907, %v2946
        %v2948 = vrcp.pop %v2929
        %v2949 = vmul.f32 %v2909, %v2948
        %v2950 = vrcp.pop %v2932
        %v2951 = vmul.f32 %v2911, %v2950
        %v2952 = vrcp.pop %v2935
        %v2953 = vmul.f32 %v2913, %v2952
        %v2954 = vrcp.pop %v2938
        %v2955 = vmul.f32 %v2915, %v2954
        %v2956 = vrcp.pop %v2941
        %v2957 = vmul.f32 %v2917, %v2956
        %v2959 = vsel %vm2869, %v2943, 0
        %v2962 = vsel %vm2869, %v2945, 0
        %v2965 = vsel %vm2869, %v2947, 0
        %v2968 = vsel %vm2869, %v2949, 0
        %v2971 = vsel %vm2869, %v2951, 0
        %v2974 = vsel %vm2869, %v2953, 0
        %v2977 = vsel %vm2869, %v2955, 0
        %v2980 = vsel %vm2869, %v2957, 0
        %2982 = vmatprep.subr.mxu0 0.0
        %2983 = vmatpush1.msra.mxu0 %v2467
        %2984 = vmatprep.subr.mxu0 0.0
        %2985 = vmatpush1.msra.mxu0 %v2472
        %2986 = vmatprep.subr.mxu0 0.0
        %2987 = vmatpush1.msra.mxu0 %v2477
        %2988 = vmatprep.subr.mxu0 0.0
        %2989 = vmatpush1.msra.mxu0 0.0
        %2990 = vmatprep.subr.mxu0 0.0
        %2991 = vmatpush1.msra.mxu0 0.0
        %2992 = vmatprep.subr.mxu0 0.0
        %2993 = vmatpush1.msra.mxu0 0.0
        %2994 = vmatprep.subr.mxu0 0.0
        %2995 = vmatpush1.msra.mxu0 0.0
        %2996 = vmatprep.subr.mxu0 0.0
        %2997 = vmatpush1.msra.mxu0 0.0
        %2998 = vmatprep.subr.mxu0 0.0
        %2999 = vmatpush1.msra.mxu0 0.0
        %3000 = vmatprep.subr.mxu0 0.0
        %3001 = vmatpush1.msra.mxu0 0.0
        %3002 = vmatprep.subr.mxu0 0.0
        %3003 = vmatpush1.msra.mxu0 0.0
        %3004 = vmatprep.subr.mxu0 0.0
        %3005 = vmatpush1.msra.mxu0 0.0
        %3006 = vmatprep.subr.mxu0 0.0
        %3007 = vmatpush1.msra.mxu0 0.0
        %3008 = vmatprep.subr.mxu0 0.0
        %3009 = vmatpush1.msra.mxu0 0.0
        %3010 = vmatprep.subr.mxu0 0.0
        %3011 = vmatpush1.msra.mxu0 0.0
        %3012 = vmatprep.subr.mxu0 0.0
        %3013 = vmatpush1.msra.mxu0 0.0
        %3014 = vmatprep.subr.mxu0 0.0
        %3015 = vmatpush1.msra.mxu0 0.0
        %3016 = vmatprep.subr.mxu0 0.0
        %3017 = vmatpush1.msra.mxu0 0.0
        %3018 = vmatprep.subr.mxu0 0.0
        %3019 = vmatpush1.msra.mxu0 0.0
        %3020 = vmatprep.subr.mxu0 0.0
        %3021 = vmatpush1.msra.mxu0 0.0
        %3022 = vmatprep.subr.mxu0 0.0
        %3023 = vmatpush1.msra.mxu0 0.0
        %3024 = vmatprep.subr.mxu0 0.0
        %3025 = vmatpush1.msra.mxu0 0.0
        %3026 = vmatprep.subr.mxu0 0.0
        %3027 = vmatpush1.msra.mxu0 0.0
        %3028 = vmatprep.subr.mxu0 0.0
        %3029 = vmatpush1.msra.mxu0 0.0
        %3030 = vmatprep.subr.mxu0 0.0
        %3031 = vmatpush1.msra.mxu0 0.0
        %3032 = vmatprep.subr.mxu0 0.0
        %3033 = vmatpush1.msra.mxu0 0.0
        %3034 = vmatprep.subr.mxu0 0.0
        %3035 = vmatpush1.msra.mxu0 0.0
        %3036 = vmatprep.subr.mxu0 0.0
        %3037 = vmatpush1.msra.mxu0 0.0
        %3038 = vmatprep.subr.mxu0 0.0
        %3039 = vmatpush1.msra.mxu0 0.0
        %3040 = vmatprep.subr.mxu0 0.0
        %3041 = vmatpush1.msra.mxu0 0.0
        %3042 = vmatprep.subr.mxu0 0.0
        %3043 = vmatpush1.msra.mxu0 0.0
        %3044 = vmatprep.subr.mxu0 0.0
        %3045 = vmatpush1.msra.mxu0 0.0
        %3046 = vmatprep.mubr.f32.mxu0 0.0
        %3047 = vmatmul.mubr.f32.gmra.mrb[0].mxu0 %v2959
        %v3048 = vpop.f32.mrb[0].mxu0
        %v3049 = vadd.f32 0.0, %v3048
        %v3050 = vpop.f32.mrb[0].mxu0
        %3051 = vmatprep.mubr.f32.mxu0 0.0
        %3052 = vmatmul.mubr.f32.gmra.mrb[0].mxu0 %v2962
        %v3053 = vpop.f32.mrb[0].mxu0
        %v3054 = vadd.f32 0.0, %v3053
        %v3055 = vpop.f32.mrb[0].mxu0
        %3056 = vmatprep.mubr.f32.mxu0 0.0
        %3057 = vmatmul.mubr.f32.gmra.mrb[0].mxu0 %v2965
        %v3058 = vpop.f32.mrb[0].mxu0
        %v3059 = vadd.f32 0.0, %v3058
        %v3060 = vpop.f32.mrb[0].mxu0
        %3061 = vmatprep.mubr.f32.mxu0 0.0
        %3062 = vmatmul.mubr.f32.gmra.mrb[0].mxu0 %v2968
        %v3063 = vpop.f32.mrb[0].mxu0
        %v3064 = vadd.f32 0.0, %v3063
        %v3065 = vpop.f32.mrb[0].mxu0
        %3066 = vmatprep.mubr.f32.mxu0 0.0
        %3067 = vmatmul.mubr.f32.gmra.mrb[0].mxu0 %v2971
        %v3068 = vpop.f32.mrb[0].mxu0
        %v3069 = vadd.f32 0.0, %v3068
        %v3070 = vpop.f32.mrb[0].mxu0
        %3071 = vmatprep.mubr.f32.mxu0 0.0
        %3072 = vmatmul.mubr.f32.gmra.mrb[0].mxu0 %v2974
        %v3073 = vpop.f32.mrb[0].mxu0
        %v3074 = vadd.f32 0.0, %v3073
        %v3075 = vpop.f32.mrb[0].mxu0
        %3076 = vmatprep.mubr.f32.mxu0 0.0
        %3077 = vmatmul.mubr.f32.gmra.mrb[0].mxu0 %v2977
        %v3078 = vpop.f32.mrb[0].mxu0
        %v3079 = vadd.f32 0.0, %v3078
        %v3080 = vpop.f32.mrb[0].mxu0
        %3081 = vmatprep.mubr.f32.mxu0 0.0
        %3082 = vmatmul.mubr.f32.gmra.mrb[0].mxu0 %v2980
        %v3083 = vpop.f32.mrb[0].mxu0
        %v3084 = vadd.f32 0.0, %v3083
        %v3085 = vpop.f32.mrb[0].mxu0
        %3086 = vdwg.mxu0
        %3087 = vrot.lane.b32.xlu0 %v2236, 120
        %v3088 = vpop.permute.xlu0 %3087
        %3089 = vrot.lane.b32.xlu0 %v2241, 120
        %v3090 = vpop.permute.xlu0 %3089
        %3091 = vrot.lane.b32.xlu0 %v2246, 120
        %v3092 = vpop.permute.xlu0 %3091
        %3093 = vrot.lane.b32.xlu0 %v2251, 120
        %v3094 = vpop.permute.xlu0 %3093
        %3095 = vrot.lane.b32.xlu0 %v2374, 120
        %v3096 = vpop.permute.xlu0 %3095
        %v3097 = vsel %vm2480, %v3088, 0
        %v3099 = vsel %vm2480, %v3090, 0
        %v3101 = vsel %vm2480, %v3092, 0
        %v3103 = vsel %vm2480, %v3094, 0
        %v3105 = vsel %vm2480, %v3096, 0
        %3107 = vmatprep.subr.mxu0 0.0
        %3108 = vmatpush1.xpose.msra.mxu0 %v3105
        %3109 = vmatprep.subr.mxu0 0.0
        %3110 = vmatpush1.xpose.msra.mxu0 0.0
        %3111 = vmatprep.subr.mxu0 0.0
        %3112 = vmatpush1.xpose.msra.mxu0 0.0
        %3113 = vmatprep.subr.mxu0 0.0
        %3114 = vmatpush1.xpose.msra.mxu0 0.0
        %3115 = vmatprep.subr.mxu0 0.0
        %3116 = vmatpush1.xpose.msra.mxu0 0.0
        %3117 = vmatprep.subr.mxu0 0.0
        %3118 = vmatpush1.xpose.msra.mxu0 0.0
        %3119 = vmatprep.subr.mxu0 0.0
        %3120 = vmatpush1.xpose.msra.mxu0 0.0
        %3121 = vmatprep.subr.mxu0 0.0
        %3122 = vmatpush1.xpose.msra.mxu0 0.0
        %3123 = vmatprep.subr.mxu0 0.0
        %3124 = vmatpush1.xpose.msra.mxu0 0.0
        %3125 = vmatprep.subr.mxu0 0.0
        %3126 = vmatpush1.xpose.msra.mxu0 0.0
        %3127 = vmatprep.subr.mxu0 0.0
        %3128 = vmatpush1.xpose.msra.mxu0 0.0
        %3129 = vmatprep.subr.mxu0 0.0
        %3130 = vmatpush1.xpose.msra.mxu0 0.0
        %3131 = vmatprep.subr.mxu0 0.0
        %3132 = vmatpush1.xpose.msra.mxu0 0.0
        %3133 = vmatprep.subr.mxu0 0.0
        %3134 = vmatpush1.xpose.msra.mxu0 0.0
        %3135 = vmatprep.subr.mxu0 0.0
        %3136 = vmatpush1.xpose.msra.mxu0 0.0
        %3137 = vmatprep.subr.mxu0 0.0
        %3138 = vmatpush1.xpose.msra.mxu0 0.0
        %3139 = vmatprep.subr.mxu0 0.0
        %3140 = vmatpush1.xpose.msra.mxu0 0.0
        %3141 = vmatprep.subr.mxu0 0.0
        %3142 = vmatpush1.xpose.msra.mxu0 0.0
        %3143 = vmatprep.subr.mxu0 0.0
        %3144 = vmatpush1.xpose.msra.mxu0 0.0
        %3145 = vmatprep.subr.mxu0 0.0
        %3146 = vmatpush1.xpose.msra.mxu0 0.0
        %3147 = vmatprep.subr.mxu0 0.0
        %3148 = vmatpush1.xpose.msra.mxu0 0.0
        %3149 = vmatprep.subr.mxu0 0.0
        %3150 = vmatpush1.xpose.msra.mxu0 0.0
        %3151 = vmatprep.subr.mxu0 0.0
        %3152 = vmatpush1.xpose.msra.mxu0 0.0
        %3153 = vmatprep.subr.mxu0 0.0
        %3154 = vmatpush1.xpose.msra.mxu0 0.0
        %3155 = vmatprep.subr.mxu0 0.0
        %3156 = vmatpush1.xpose.msra.mxu0 0.0
        %3157 = vmatprep.subr.mxu0 0.0
        %3158 = vmatpush1.xpose.msra.mxu0 0.0
        %3159 = vmatprep.subr.mxu0 0.0
        %3160 = vmatpush1.xpose.msra.mxu0 0.0
        %3161 = vmatprep.subr.mxu0 0.0
        %3162 = vmatpush1.xpose.msra.mxu0 0.0
        %3163 = vmatprep.subr.mxu0 0.0
        %3164 = vmatpush1.xpose.msra.mxu0 0.0
        %3165 = vmatprep.subr.mxu0 0.0
        %3166 = vmatpush1.xpose.msra.mxu0 0.0
        %3167 = vmatprep.subr.mxu0 0.0
        %3168 = vmatpush1.xpose.msra.mxu0 0.0
        %3169 = vmatprep.subr.mxu0 0.0
        %3170 = vmatpush1.xpose.msra.mxu0 0.0
        %3171 = vmatprep.mubr.f32.mxu0 0.0
        %3172 = vmatmul.mubr.f32.gmra.mrb[0].mxu0 %v3097
        %v3173 = vpop.f32.mrb[0].mxu0
        %v3174 = vadd.f32 0.0, %v3173
        %v3175 = vpop.f32.mrb[0].mxu0
        %3176 = vmatprep.mubr.f32.mxu0 0.0
        %3177 = vmatmul.mubr.f32.gmra.mrb[0].mxu0 %v3099
        %v3178 = vpop.f32.mrb[0].mxu0
        %v3179 = vadd.f32 0.0, %v3178
        %v3180 = vpop.f32.mrb[0].mxu0
        %3181 = vmatprep.mubr.f32.mxu0 0.0
        %3182 = vmatmul.mubr.f32.gmra.mrb[0].mxu0 %v3101
        %v3183 = vpop.f32.mrb[0].mxu0
        %v3184 = vadd.f32 0.0, %v3183
        %v3185 = vpop.f32.mrb[0].mxu0
        %3186 = vmatprep.mubr.f32.mxu0 0.0
        %3187 = vmatmul.mubr.f32.gmra.mrb[0].mxu0 %v3103
        %v3188 = vpop.f32.mrb[0].mxu0
        %v3189 = vadd.f32 0.0, %v3188
        %v3190 = vpop.f32.mrb[0].mxu0
        %3191 = vdwg.mxu0
        %v3192 = vmul.f32 %v3174, 0.17677669
        %v3193 = vmul.f32 %v3179, 0.17677669
        %v3194 = vmul.f32 %v3184, 0.17677669
        %v3195 = vmul.f32 %v3189, 0.17677669
        %v3196 = vsel %vm2480, %v3192, -inf
        %3197 = vmax.xlane.f32.xlu0 %v3196
        %v3198 = vpop.xlane.xlu0 %3197
        %v3199 = vsel %vm2480, %v3193, -inf
        %3200 = vmax.xlane.f32.xlu0 %v3199
        %v3201 = vpop.xlane.xlu0 %3200
        %v3202 = vsel %vm2480, %v3194, -inf
        %3203 = vmax.xlane.f32.xlu0 %v3202
        %v3204 = vpop.xlane.xlu0 %3203
        %v3205 = vsel %vm2480, %v3195, -inf
        %3206 = vmax.xlane.f32.xlu0 %v3205
        %v3207 = vpop.xlane.xlu0 %3206
        %v3208 = vsub.f32 %v3192, %v3198
        %v3209 = vsub.f32 %v3193, %v3201
        %v3210 = vsub.f32 %v3194, %v3204
        %v3211 = vsub.f32 %v3195, %v3207
        %v3212 = vmul.f32 %v3208, 1.442695
        %v3213 = vpow.pop %v3212
        %v3214 = vmul.f32 %v3209, 1.442695
        %v3215 = vpow.pop %v3214
        %v3216 = vmul.f32 %v3210, 1.442695
        %v3217 = vpow.pop %v3216
        %v3218 = vmul.f32 %v3211, 1.442695
        %v3219 = vpow.pop %v3218
        %v3220 = vsel %vm2480, %v3213, 0.0
        %3221 = vadd.xlane.f32.xlu0 %v3220
        %v3222 = vpop.xlane.xlu0 %3221
        %v3223 = vsel %vm2480, %v3215, 0.0
        %3224 = vadd.xlane.f32.xlu0 %v3223
        %v3225 = vpop.xlane.xlu0 %3224
        %v3226 = vsel %vm2480, %v3217, 0.0
        %3227 = vadd.xlane.f32.xlu0 %v3226
        %v3228 = vpop.xlane.xlu0 %3227
        %v3229 = vsel %vm2480, %v3219, 0.0
        %3230 = vadd.xlane.f32.xlu0 %v3229
        %v3231 = vpop.xlane.xlu0 %3230
        %v3232 = vrcp.pop %v3222
        %v3233 = vmul.f32 %v3213, %v3232
        %v3234 = vrcp.pop %v3225
        %v3235 = vmul.f32 %v3215, %v3234
        %v3236 = vrcp.pop %v3228
        %v3237 = vmul.f32 %v3217, %v3236
        %v3238 = vrcp.pop %v3231
        %v3239 = vmul.f32 %v3219, %v3238
        %3241 = vrot.lane.b32.xlu0 %v2467, 120
        %v3242 = vpop.permute.xlu0 %3241
        %v3245 = vsel %vm2480, %v3233, 0
        %v3248 = vsel %vm2480, %v3235, 0
        %v3251 = vsel %vm2480, %v3237, 0
        %v3254 = vsel %vm2480, %v3239, 0
        %3256 = vmatprep.subr.mxu0 0.0
        %3257 = vmatpush1.msra.mxu0 %v3242
        %3258 = vmatprep.subr.mxu0 0.0
        %3259 = vmatpush1.msra.mxu0 0.0
        %3260 = vmatprep.subr.mxu0 0.0
        %3261 = vmatpush1.msra.mxu0 0.0
        %3262 = vmatprep.subr.mxu0 0.0
        %3263 = vmatpush1.msra.mxu0 0.0
        %3264 = vmatprep.subr.mxu0 0.0
        %3265 = vmatpush1.msra.mxu0 0.0
        %3266 = vmatprep.subr.mxu0 0.0
        %3267 = vmatpush1.msra.mxu0 0.0
        %3268 = vmatprep.subr.mxu0 0.0
        %3269 = vmatpush1.msra.mxu0 0.0
        %3270 = vmatprep.subr.mxu0 0.0
        %3271 = vmatpush1.msra.mxu0 0.0
        %3272 = vmatprep.subr.mxu0 0.0
        %3273 = vmatpush1.msra.mxu0 0.0
        %3274 = vmatprep.subr.mxu0 0.0
        %3275 = vmatpush1.msra.mxu0 0.0
        %3276 = vmatprep.subr.mxu0 0.0
        %3277 = vmatpush1.msra.mxu0 0.0
        %3278 = vmatprep.subr.mxu0 0.0
        %3279 = vmatpush1.msra.mxu0 0.0
        %3280 = vmatprep.subr.mxu0 0.0
        %3281 = vmatpush1.msra.mxu0 0.0
        %3282 = vmatprep.subr.mxu0 0.0
        %3283 = vmatpush1.msra.mxu0 0.0
        %3284 = vmatprep.subr.mxu0 0.0
        %3285 = vmatpush1.msra.mxu0 0.0
        %3286 = vmatprep.subr.mxu0 0.0
        %3287 = vmatpush1.msra.mxu0 0.0
        %3288 = vmatprep.subr.mxu0 0.0
        %3289 = vmatpush1.msra.mxu0 0.0
        %3290 = vmatprep.subr.mxu0 0.0
        %3291 = vmatpush1.msra.mxu0 0.0
        %3292 = vmatprep.subr.mxu0 0.0
        %3293 = vmatpush1.msra.mxu0 0.0
        %3294 = vmatprep.subr.mxu0 0.0
        %3295 = vmatpush1.msra.mxu0 0.0
        %3296 = vmatprep.subr.mxu0 0.0
        %3297 = vmatpush1.msra.mxu0 0.0
        %3298 = vmatprep.subr.mxu0 0.0
        %3299 = vmatpush1.msra.mxu0 0.0
        %3300 = vmatprep.subr.mxu0 0.0
        %3301 = vmatpush1.msra.mxu0 0.0
        %3302 = vmatprep.subr.mxu0 0.0
        %3303 = vmatpush1.msra.mxu0 0.0
        %3304 = vmatprep.subr.mxu0 0.0
        %3305 = vmatpush1.msra.mxu0 0.0
        %3306 = vmatprep.subr.mxu0 0.0
        %3307 = vmatpush1.msra.mxu0 0.0
        %3308 = vmatprep.subr.mxu0 0.0
        %3309 = vmatpush1.msra.mxu0 0.0
        %3310 = vmatprep.subr.mxu0 0.0
        %3311 = vmatpush1.msra.mxu0 0.0
        %3312 = vmatprep.subr.mxu0 0.0
        %3313 = vmatpush1.msra.mxu0 0.0
        %3314 = vmatprep.subr.mxu0 0.0
        %3315 = vmatpush1.msra.mxu0 0.0
        %3316 = vmatprep.subr.mxu0 0.0
        %3317 = vmatpush1.msra.mxu0 0.0
        %3318 = vmatprep.subr.mxu0 0.0
        %3319 = vmatpush1.msra.mxu0 0.0
        %3320 = vmatprep.mubr.f32.mxu0 0.0
        %3321 = vmatmul.mubr.f32.gmra.mrb[0].mxu0 %v3245
        %v3322 = vpop.f32.mrb[0].mxu0
        %v3323 = vadd.f32 0.0, %v3322
        %v3324 = vpop.f32.mrb[0].mxu0
        %3325 = vmatprep.mubr.f32.mxu0 0.0
        %3326 = vmatmul.mubr.f32.gmra.mrb[0].mxu0 %v3248
        %v3327 = vpop.f32.mrb[0].mxu0
        %v3328 = vadd.f32 0.0, %v3327
        %v3329 = vpop.f32.mrb[0].mxu0
        %3330 = vmatprep.mubr.f32.mxu0 0.0
        %3331 = vmatmul.mubr.f32.gmra.mrb[0].mxu0 %v3251
        %v3332 = vpop.f32.mrb[0].mxu0
        %v3333 = vadd.f32 0.0, %v3332
        %v3334 = vpop.f32.mrb[0].mxu0
        %3335 = vmatprep.mubr.f32.mxu0 0.0
        %3336 = vmatmul.mubr.f32.gmra.mrb[0].mxu0 %v3254
        %v3337 = vpop.f32.mrb[0].mxu0
        %v3338 = vadd.f32 0.0, %v3337
        %v3339 = vpop.f32.mrb[0].mxu0
        %3340 = vdwg.mxu0
        %3341 = vrot.lane.b32.xlu0 %v2256, 120
        %v3342 = vpop.permute.xlu0 %3341
        %3343 = vrot.lane.b32.xlu0 %v2261, 120
        %v3344 = vpop.permute.xlu0 %3343
        %3345 = vrot.lane.b32.xlu0 %v2266, 120
        %v3346 = vpop.permute.xlu0 %3345
        %3347 = vrot.lane.b32.xlu0 %v2271, 120
        %v3348 = vpop.permute.xlu0 %3347
        %3349 = vrot.lane.b32.xlu0 %v2276, 120
        %v3350 = vpop.permute.xlu0 %3349
        %3351 = vrot.lane.b32.xlu0 %v2281, 120
        %v3352 = vpop.permute.xlu0 %3351
        %3353 = vrot.lane.b32.xlu0 %v2286, 120
        %v3354 = vpop.permute.xlu0 %3353
        %3355 = vrot.lane.b32.xlu0 %v2291, 120
        %v3356 = vpop.permute.xlu0 %3355
        %3357 = vrot.lane.b32.xlu0 %v2379, 120
        %v3358 = vpop.permute.xlu0 %3357
        %3359 = vrot.lane.b32.xlu0 %v2384, 120
        %v3360 = vpop.permute.xlu0 %3359
        %v3361 = vsel %vm2480, %v3342, 0
        %v3363 = vsel %vm2480, %v3344, 0
        %v3365 = vsel %vm2480, %v3346, 0
        %v3367 = vsel %vm2480, %v3348, 0
        %v3369 = vsel %vm2480, %v3350, 0
        %v3371 = vsel %vm2480, %v3352, 0
        %v3373 = vsel %vm2480, %v3354, 0
        %v3375 = vsel %vm2480, %v3356, 0
        %v3377 = vsel %vm2480, %v3358, 0
        %v3379 = vsel %vm2480, %v3360, 0
        %3381 = vmatprep.subr.mxu0 0.0
        %3382 = vmatpush1.xpose.msra.mxu0 %v3105
        %3383 = vmatprep.subr.mxu0 0.0
        %3384 = vmatpush1.xpose.msra.mxu0 %v3377
        %3385 = vmatprep.subr.mxu0 0.0
        %3386 = vmatpush1.xpose.msra.mxu0 %v3379
        %3387 = vmatprep.subr.mxu0 0.0
        %3388 = vmatpush1.xpose.msra.mxu0 0.0
        %3389 = vmatprep.subr.mxu0 0.0
        %3390 = vmatpush1.xpose.msra.mxu0 0.0
        %3391 = vmatprep.subr.mxu0 0.0
        %3392 = vmatpush1.xpose.msra.mxu0 0.0
        %3393 = vmatprep.subr.mxu0 0.0
        %3394 = vmatpush1.xpose.msra.mxu0 0.0
        %3395 = vmatprep.subr.mxu0 0.0
        %3396 = vmatpush1.xpose.msra.mxu0 0.0
        %3397 = vmatprep.subr.mxu0 0.0
        %3398 = vmatpush1.xpose.msra.mxu0 0.0
        %3399 = vmatprep.subr.mxu0 0.0
        %3400 = vmatpush1.xpose.msra.mxu0 0.0
        %3401 = vmatprep.subr.mxu0 0.0
        %3402 = vmatpush1.xpose.msra.mxu0 0.0
        %3403 = vmatprep.subr.mxu0 0.0
        %3404 = vmatpush1.xpose.msra.mxu0 0.0
        %3405 = vmatprep.subr.mxu0 0.0
        %3406 = vmatpush1.xpose.msra.mxu0 0.0
        %3407 = vmatprep.subr.mxu0 0.0
        %3408 = vmatpush1.xpose.msra.mxu0 0.0
        %3409 = vmatprep.subr.mxu0 0.0
        %3410 = vmatpush1.xpose.msra.mxu0 0.0
        %3411 = vmatprep.subr.mxu0 0.0
        %3412 = vmatpush1.xpose.msra.mxu0 0.0
        %3413 = vmatprep.subr.mxu0 0.0
        %3414 = vmatpush1.xpose.msra.mxu0 0.0
        %3415 = vmatprep.subr.mxu0 0.0
        %3416 = vmatpush1.xpose.msra.mxu0 0.0
        %3417 = vmatprep.subr.mxu0 0.0
        %3418 = vmatpush1.xpose.msra.mxu0 0.0
        %3419 = vmatprep.subr.mxu0 0.0
        %3420 = vmatpush1.xpose.msra.mxu0 0.0
        %3421 = vmatprep.subr.mxu0 0.0
        %3422 = vmatpush1.xpose.msra.mxu0 0.0
        %3423 = vmatprep.subr.mxu0 0.0
        %3424 = vmatpush1.xpose.msra.mxu0 0.0
        %3425 = vmatprep.subr.mxu0 0.0
        %3426 = vmatpush1.xpose.msra.mxu0 0.0
        %3427 = vmatprep.subr.mxu0 0.0
        %3428 = vmatpush1.xpose.msra.mxu0 0.0
        %3429 = vmatprep.subr.mxu0 0.0
        %3430 = vmatpush1.xpose.msra.mxu0 0.0
        %3431 = vmatprep.subr.mxu0 0.0
        %3432 = vmatpush1.xpose.msra.mxu0 0.0
        %3433 = vmatprep.subr.mxu0 0.0
        %3434 = vmatpush1.xpose.msra.mxu0 0.0
        %3435 = vmatprep.subr.mxu0 0.0
        %3436 = vmatpush1.xpose.msra.mxu0 0.0
        %3437 = vmatprep.subr.mxu0 0.0
        %3438 = vmatpush1.xpose.msra.mxu0 0.0
        %3439 = vmatprep.subr.mxu0 0.0
        %3440 = vmatpush1.xpose.msra.mxu0 0.0
        %3441 = vmatprep.subr.mxu0 0.0
        %3442 = vmatpush1.xpose.msra.mxu0 0.0
        %3443 = vmatprep.subr.mxu0 0.0
        %3444 = vmatpush1.xpose.msra.mxu0 0.0
        %3445 = vmatprep.mubr.f32.mxu0 0.0
        %3446 = vmatmul.mubr.f32.gmra.mrb[0].mxu0 %v3361
        %v3447 = vpop.f32.mrb[0].mxu0
        %v3448 = vadd.f32 0.0, %v3447
        %v3449 = vpop.f32.mrb[0].mxu0
        %3450 = vmatprep.mubr.f32.mxu0 0.0
        %3451 = vmatmul.mubr.f32.gmra.mrb[0].mxu0 %v3363
        %v3452 = vpop.f32.mrb[0].mxu0
        %v3453 = vadd.f32 0.0, %v3452
        %v3454 = vpop.f32.mrb[0].mxu0
        %3455 = vmatprep.mubr.f32.mxu0 0.0
        %3456 = vmatmul.mubr.f32.gmra.mrb[0].mxu0 %v3365
        %v3457 = vpop.f32.mrb[0].mxu0
        %v3458 = vadd.f32 0.0, %v3457
        %v3459 = vpop.f32.mrb[0].mxu0
        %3460 = vmatprep.mubr.f32.mxu0 0.0
        %3461 = vmatmul.mubr.f32.gmra.mrb[0].mxu0 %v3367
        %v3462 = vpop.f32.mrb[0].mxu0
        %v3463 = vadd.f32 0.0, %v3462
        %v3464 = vpop.f32.mrb[0].mxu0
        %3465 = vmatprep.mubr.f32.mxu0 0.0
        %3466 = vmatmul.mubr.f32.gmra.mrb[0].mxu0 %v3369
        %v3467 = vpop.f32.mrb[0].mxu0
        %v3468 = vadd.f32 0.0, %v3467
        %v3469 = vpop.f32.mrb[0].mxu0
        %3470 = vmatprep.mubr.f32.mxu0 0.0
        %3471 = vmatmul.mubr.f32.gmra.mrb[0].mxu0 %v3371
        %v3472 = vpop.f32.mrb[0].mxu0
        %v3473 = vadd.f32 0.0, %v3472
        %v3474 = vpop.f32.mrb[0].mxu0
        %3475 = vmatprep.mubr.f32.mxu0 0.0
        %3476 = vmatmul.mubr.f32.gmra.mrb[0].mxu0 %v3373
        %v3477 = vpop.f32.mrb[0].mxu0
        %v3478 = vadd.f32 0.0, %v3477
        %v3479 = vpop.f32.mrb[0].mxu0
        %3480 = vmatprep.mubr.f32.mxu0 0.0
        %3481 = vmatmul.mubr.f32.gmra.mrb[0].mxu0 %v3375
        %v3482 = vpop.f32.mrb[0].mxu0
        %v3483 = vadd.f32 0.0, %v3482
        %v3484 = vpop.f32.mrb[0].mxu0
        %3485 = vdwg.mxu0
        %v3486 = vmul.f32 %v3448, 0.17677669
        %v3487 = vmul.f32 %v3453, 0.17677669
        %v3488 = vmul.f32 %v3458, 0.17677669
        %v3489 = vmul.f32 %v3463, 0.17677669
        %v3490 = vmul.f32 %v3468, 0.17677669
        %v3491 = vmul.f32 %v3473, 0.17677669
        %v3492 = vmul.f32 %v3478, 0.17677669
        %v3493 = vmul.f32 %v3483, 0.17677669
        %v3494 = vsel %vm2869, %v3486, -inf
        %3495 = vmax.xlane.f32.xlu0 %v3494
        %v3496 = vpop.xlane.xlu0 %3495
        %v3497 = vsel %vm2869, %v3487, -inf
        %3498 = vmax.xlane.f32.xlu0 %v3497
        %v3499 = vpop.xlane.xlu0 %3498
        %v3500 = vsel %vm2869, %v3488, -inf
        %3501 = vmax.xlane.f32.xlu0 %v3500
        %v3502 = vpop.xlane.xlu0 %3501
        %v3503 = vsel %vm2869, %v3489, -inf
        %3504 = vmax.xlane.f32.xlu0 %v3503
        %v3505 = vpop.xlane.xlu0 %3504
        %v3506 = vsel %vm2869, %v3490, -inf
        %3507 = vmax.xlane.f32.xlu0 %v3506
        %v3508 = vpop.xlane.xlu0 %3507
        %v3509 = vsel %vm2869, %v3491, -inf
        %3510 = vmax.xlane.f32.xlu0 %v3509
        %v3511 = vpop.xlane.xlu0 %3510
        %v3512 = vsel %vm2869, %v3492, -inf
        %3513 = vmax.xlane.f32.xlu0 %v3512
        %v3514 = vpop.xlane.xlu0 %3513
        %v3515 = vsel %vm2869, %v3493, -inf
        %3516 = vmax.xlane.f32.xlu0 %v3515
        %v3517 = vpop.xlane.xlu0 %3516
        %v3518 = vsub.f32 %v3486, %v3496
        %v3519 = vsub.f32 %v3487, %v3499
        %v3520 = vsub.f32 %v3488, %v3502
        %v3521 = vsub.f32 %v3489, %v3505
        %v3522 = vsub.f32 %v3490, %v3508
        %v3523 = vsub.f32 %v3491, %v3511
        %v3524 = vsub.f32 %v3492, %v3514
        %v3525 = vsub.f32 %v3493, %v3517
        %v3526 = vmul.f32 %v3518, 1.442695
        %v3527 = vpow.pop %v3526
        %v3528 = vmul.f32 %v3519, 1.442695
        %v3529 = vpow.pop %v3528
        %v3530 = vmul.f32 %v3520, 1.442695
        %v3531 = vpow.pop %v3530
        %v3532 = vmul.f32 %v3521, 1.442695
        %v3533 = vpow.pop %v3532
        %v3534 = vmul.f32 %v3522, 1.442695
        %v3535 = vpow.pop %v3534
        %v3536 = vmul.f32 %v3523, 1.442695
        %v3537 = vpow.pop %v3536
        %v3538 = vmul.f32 %v3524, 1.442695
        %v3539 = vpow.pop %v3538
        %v3540 = vmul.f32 %v3525, 1.442695
        %v3541 = vpow.pop %v3540
        %v3542 = vsel %vm2869, %v3527, 0.0
        %3543 = vadd.xlane.f32.xlu0 %v3542
        %v3544 = vpop.xlane.xlu0 %3543
        %v3545 = vsel %vm2869, %v3529, 0.0
        %3546 = vadd.xlane.f32.xlu0 %v3545
        %v3547 = vpop.xlane.xlu0 %3546
        %v3548 = vsel %vm2869, %v3531, 0.0
        %3549 = vadd.xlane.f32.xlu0 %v3548
        %v3550 = vpop.xlane.xlu0 %3549
        %v3551 = vsel %vm2869, %v3533, 0.0
        %3552 = vadd.xlane.f32.xlu0 %v3551
        %v3553 = vpop.xlane.xlu0 %3552
        %v3554 = vsel %vm2869, %v3535, 0.0
        %3555 = vadd.xlane.f32.xlu0 %v3554
        %v3556 = vpop.xlane.xlu0 %3555
        %v3557 = vsel %vm2869, %v3537, 0.0
        %3558 = vadd.xlane.f32.xlu0 %v3557
        %v3559 = vpop.xlane.xlu0 %3558
        %v3560 = vsel %vm2869, %v3539, 0.0
        %3561 = vadd.xlane.f32.xlu0 %v3560
        %v3562 = vpop.xlane.xlu0 %3561
        %v3563 = vsel %vm2869, %v3541, 0.0
        %3564 = vadd.xlane.f32.xlu0 %v3563
        %v3565 = vpop.xlane.xlu0 %3564
        %v3566 = vrcp.pop %v3544
        %v3567 = vmul.f32 %v3527, %v3566
        %v3568 = vrcp.pop %v3547
        %v3569 = vmul.f32 %v3529, %v3568
        %v3570 = vrcp.pop %v3550
        %v3571 = vmul.f32 %v3531, %v3570
        %v3572 = vrcp.pop %v3553
        %v3573 = vmul.f32 %v3533, %v3572
        %v3574 = vrcp.pop %v3556
        %v3575 = vmul.f32 %v3535, %v3574
        %v3576 = vrcp.pop %v3559
        %v3577 = vmul.f32 %v3537, %v3576
        %v3578 = vrcp.pop %v3562
        %v3579 = vmul.f32 %v3539, %v3578
        %v3580 = vrcp.pop %v3565
        %v3581 = vmul.f32 %v3541, %v3580
        %3584 = vrot.lane.b32.xlu0 %v2472, 120
        %v3585 = vpop.permute.xlu0 %3584
        %3586 = vrot.lane.b32.xlu0 %v2477, 120
        %v3587 = vpop.permute.xlu0 %3586
        %v3591 = vsel %vm2869, %v3567, 0
        %v3594 = vsel %vm2869, %v3569, 0
        %v3597 = vsel %vm2869, %v3571, 0
        %v3600 = vsel %vm2869, %v3573, 0
        %v3603 = vsel %vm2869, %v3575, 0
        %v3606 = vsel %vm2869, %v3577, 0
        %v3609 = vsel %vm2869, %v3579, 0
        %v3612 = vsel %vm2869, %v3581, 0
        %3614 = vmatprep.subr.mxu0 0.0
        %3615 = vmatpush1.msra.mxu0 %v3242
        %3616 = vmatprep.subr.mxu0 0.0
        %3617 = vmatpush1.msra.mxu0 %v3585
        %3618 = vmatprep.subr.mxu0 0.0
        %3619 = vmatpush1.msra.mxu0 %v3587
        %3620 = vmatprep.subr.mxu0 0.0
        %3621 = vmatpush1.msra.mxu0 0.0
        %3622 = vmatprep.subr.mxu0 0.0
        %3623 = vmatpush1.msra.mxu0 0.0
        %3624 = vmatprep.subr.mxu0 0.0
        %3625 = vmatpush1.msra.mxu0 0.0
        %3626 = vmatprep.subr.mxu0 0.0
        %3627 = vmatpush1.msra.mxu0 0.0
        %3628 = vmatprep.subr.mxu0 0.0
        %3629 = vmatpush1.msra.mxu0 0.0
        %3630 = vmatprep.subr.mxu0 0.0
        %3631 = vmatpush1.msra.mxu0 0.0
        %3632 = vmatprep.subr.mxu0 0.0
        %3633 = vmatpush1.msra.mxu0 0.0
        %3634 = vmatprep.subr.mxu0 0.0
        %3635 = vmatpush1.msra.mxu0 0.0
        %3636 = vmatprep.subr.mxu0 0.0
        %3637 = vmatpush1.msra.mxu0 0.0
        %3638 = vmatprep.subr.mxu0 0.0
        %3639 = vmatpush1.msra.mxu0 0.0
        %3640 = vmatprep.subr.mxu0 0.0
        %3641 = vmatpush1.msra.mxu0 0.0
        %3642 = vmatprep.subr.mxu0 0.0
        %3643 = vmatpush1.msra.mxu0 0.0
        %3644 = vmatprep.subr.mxu0 0.0
        %3645 = vmatpush1.msra.mxu0 0.0
        %3646 = vmatprep.subr.mxu0 0.0
        %3647 = vmatpush1.msra.mxu0 0.0
        %3648 = vmatprep.subr.mxu0 0.0
        %3649 = vmatpush1.msra.mxu0 0.0
        %3650 = vmatprep.subr.mxu0 0.0
        %3651 = vmatpush1.msra.mxu0 0.0
        %3652 = vmatprep.subr.mxu0 0.0
        %3653 = vmatpush1.msra.mxu0 0.0
        %3654 = vmatprep.subr.mxu0 0.0
        %3655 = vmatpush1.msra.mxu0 0.0
        %3656 = vmatprep.subr.mxu0 0.0
        %3657 = vmatpush1.msra.mxu0 0.0
        %3658 = vmatprep.subr.mxu0 0.0
        %3659 = vmatpush1.msra.mxu0 0.0
        %3660 = vmatprep.subr.mxu0 0.0
        %3661 = vmatpush1.msra.mxu0 0.0
        %3662 = vmatprep.subr.mxu0 0.0
        %3663 = vmatpush1.msra.mxu0 0.0
        %3664 = vmatprep.subr.mxu0 0.0
        %3665 = vmatpush1.msra.mxu0 0.0
        %3666 = vmatprep.subr.mxu0 0.0
        %3667 = vmatpush1.msra.mxu0 0.0
        %3668 = vmatprep.subr.mxu0 0.0
        %3669 = vmatpush1.msra.mxu0 0.0
        %3670 = vmatprep.subr.mxu0 0.0
        %3671 = vmatpush1.msra.mxu0 0.0
        %3672 = vmatprep.subr.mxu0 0.0
        %3673 = vmatpush1.msra.mxu0 0.0
        %3674 = vmatprep.subr.mxu0 0.0
        %3675 = vmatpush1.msra.mxu0 0.0
        %3676 = vmatprep.subr.mxu0 0.0
        %3677 = vmatpush1.msra.mxu0 0.0
        %3678 = vmatprep.mubr.f32.mxu0 0.0
        %3679 = vmatmul.mubr.f32.gmra.mrb[0].mxu0 %v3591
        %v3680 = vpop.f32.mrb[0].mxu0
        %v3681 = vadd.f32 0.0, %v3680
        %v3682 = vpop.f32.mrb[0].mxu0
        %3683 = vmatprep.mubr.f32.mxu0 0.0
        %3684 = vmatmul.mubr.f32.gmra.mrb[0].mxu0 %v3594
        %v3685 = vpop.f32.mrb[0].mxu0
        %v3686 = vadd.f32 0.0, %v3685
        %v3687 = vpop.f32.mrb[0].mxu0
        %3688 = vmatprep.mubr.f32.mxu0 0.0
        %3689 = vmatmul.mubr.f32.gmra.mrb[0].mxu0 %v3597
        %v3690 = vpop.f32.mrb[0].mxu0
        %v3691 = vadd.f32 0.0, %v3690
        %v3692 = vpop.f32.mrb[0].mxu0
        %3693 = vmatprep.mubr.f32.mxu0 0.0
        %3694 = vmatmul.mubr.f32.gmra.mrb[0].mxu0 %v3600
        %v3695 = vpop.f32.mrb[0].mxu0
        %v3696 = vadd.f32 0.0, %v3695
        %v3697 = vpop.f32.mrb[0].mxu0
        %3698 = vmatprep.mubr.f32.mxu0 0.0
        %3699 = vmatmul.mubr.f32.gmra.mrb[0].mxu0 %v3603
        %v3700 = vpop.f32.mrb[0].mxu0
        %v3701 = vadd.f32 0.0, %v3700
        %v3702 = vpop.f32.mrb[0].mxu0
        %3703 = vmatprep.mubr.f32.mxu0 0.0
        %3704 = vmatmul.mubr.f32.gmra.mrb[0].mxu0 %v3606
        %v3705 = vpop.f32.mrb[0].mxu0
        %v3706 = vadd.f32 0.0, %v3705
        %v3707 = vpop.f32.mrb[0].mxu0
        %3708 = vmatprep.mubr.f32.mxu0 0.0
        %3709 = vmatmul.mubr.f32.gmra.mrb[0].mxu0 %v3609
        %v3710 = vpop.f32.mrb[0].mxu0
        %v3711 = vadd.f32 0.0, %v3710
        %v3712 = vpop.f32.mrb[0].mxu0
        %3713 = vmatprep.mubr.f32.mxu0 0.0
        %3714 = vmatmul.mubr.f32.gmra.mrb[0].mxu0 %v3612
        %v3715 = vpop.f32.mrb[0].mxu0
        %v3716 = vadd.f32 0.0, %v3715
        %v3717 = vpop.f32.mrb[0].mxu0
        %3718 = vdwg.mxu0
        %3719 = vrot.lane.b32.xlu0 %v2236, 112
        %v3720 = vpop.permute.xlu0 %3719
        %3721 = vrot.lane.b32.xlu0 %v2241, 112
        %v3722 = vpop.permute.xlu0 %3721
        %3723 = vrot.lane.b32.xlu0 %v2246, 112
        %v3724 = vpop.permute.xlu0 %3723
        %3725 = vrot.lane.b32.xlu0 %v2251, 112
        %v3726 = vpop.permute.xlu0 %3725
        %3727 = vrot.lane.b32.xlu0 %v2374, 112
        %v3728 = vpop.permute.xlu0 %3727
        %v3729 = vsel %vm2480, %v3720, 0
        %v3731 = vsel %vm2480, %v3722, 0
        %v3733 = vsel %vm2480, %v3724, 0
        %v3735 = vsel %vm2480, %v3726, 0
        %v3737 = vsel %vm2480, %v3728, 0
        %3739 = vmatprep.subr.mxu0 0.0
        %3740 = vmatpush1.xpose.msra.mxu0 %v3737
        %3741 = vmatprep.subr.mxu0 0.0
        %3742 = vmatpush1.xpose.msra.mxu0 0.0
        %3743 = vmatprep.subr.mxu0 0.0
        %3744 = vmatpush1.xpose.msra.mxu0 0.0
        %3745 = vmatprep.subr.mxu0 0.0
        %3746 = vmatpush1.xpose.msra.mxu0 0.0
        %3747 = vmatprep.subr.mxu0 0.0
        %3748 = vmatpush1.xpose.msra.mxu0 0.0
        %3749 = vmatprep.subr.mxu0 0.0
        %3750 = vmatpush1.xpose.msra.mxu0 0.0
        %3751 = vmatprep.subr.mxu0 0.0
        %3752 = vmatpush1.xpose.msra.mxu0 0.0
        %3753 = vmatprep.subr.mxu0 0.0
        %3754 = vmatpush1.xpose.msra.mxu0 0.0
        %3755 = vmatprep.subr.mxu0 0.0
        %3756 = vmatpush1.xpose.msra.mxu0 0.0
        %3757 = vmatprep.subr.mxu0 0.0
        %3758 = vmatpush1.xpose.msra.mxu0 0.0
        %3759 = vmatprep.subr.mxu0 0.0
        %3760 = vmatpush1.xpose.msra.mxu0 0.0
        %3761 = vmatprep.subr.mxu0 0.0
        %3762 = vmatpush1.xpose.msra.mxu0 0.0
        %3763 = vmatprep.subr.mxu0 0.0
        %3764 = vmatpush1.xpose.msra.mxu0 0.0
        %3765 = vmatprep.subr.mxu0 0.0
        %3766 = vmatpush1.xpose.msra.mxu0 0.0
        %3767 = vmatprep.subr.mxu0 0.0
        %3768 = vmatpush1.xpose.msra.mxu0 0.0
        %3769 = vmatprep.subr.mxu0 0.0
        %3770 = vmatpush1.xpose.msra.mxu0 0.0
        %3771 = vmatprep.subr.mxu0 0.0
        %3772 = vmatpush1.xpose.msra.mxu0 0.0
        %3773 = vmatprep.subr.mxu0 0.0
        %3774 = vmatpush1.xpose.msra.mxu0 0.0
        %3775 = vmatprep.subr.mxu0 0.0
        %3776 = vmatpush1.xpose.msra.mxu0 0.0
        %3777 = vmatprep.subr.mxu0 0.0
        %3778 = vmatpush1.xpose.msra.mxu0 0.0
        %3779 = vmatprep.subr.mxu0 0.0
        %3780 = vmatpush1.xpose.msra.mxu0 0.0
        %3781 = vmatprep.subr.mxu0 0.0
        %3782 = vmatpush1.xpose.msra.mxu0 0.0
        %3783 = vmatprep.subr.mxu0 0.0
        %3784 = vmatpush1.xpose.msra.mxu0 0.0
        %3785 = vmatprep.subr.mxu0 0.0
        %3786 = vmatpush1.xpose.msra.mxu0 0.0
        %3787 = vmatprep.subr.mxu0 0.0
        %3788 = vmatpush1.xpose.msra.mxu0 0.0
        %3789 = vmatprep.subr.mxu0 0.0
        %3790 = vmatpush1.xpose.msra.mxu0 0.0
        %3791 = vmatprep.subr.mxu0 0.0
        %3792 = vmatpush1.xpose.msra.mxu0 0.0
        %3793 = vmatprep.subr.mxu0 0.0
        %3794 = vmatpush1.xpose.msra.mxu0 0.0
        %3795 = vmatprep.subr.mxu0 0.0
        %3796 = vmatpush1.xpose.msra.mxu0 0.0
        %3797 = vmatprep.subr.mxu0 0.0
        %3798 = vmatpush1.xpose.msra.mxu0 0.0
        %3799 = vmatprep.subr.mxu0 0.0
        %3800 = vmatpush1.xpose.msra.mxu0 0.0
        %3801 = vmatprep.subr.mxu0 0.0
        %3802 = vmatpush1.xpose.msra.mxu0 0.0
        %3803 = vmatprep.mubr.f32.mxu0 0.0
        %3804 = vmatmul.mubr.f32.gmra.mrb[0].mxu0 %v3729
        %v3805 = vpop.f32.mrb[0].mxu0
        %v3806 = vadd.f32 0.0, %v3805
        %v3807 = vpop.f32.mrb[0].mxu0
        %3808 = vmatprep.mubr.f32.mxu0 0.0
        %3809 = vmatmul.mubr.f32.gmra.mrb[0].mxu0 %v3731
        %v3810 = vpop.f32.mrb[0].mxu0
        %v3811 = vadd.f32 0.0, %v3810
        %v3812 = vpop.f32.mrb[0].mxu0
        %3813 = vmatprep.mubr.f32.mxu0 0.0
        %3814 = vmatmul.mubr.f32.gmra.mrb[0].mxu0 %v3733
        %v3815 = vpop.f32.mrb[0].mxu0
        %v3816 = vadd.f32 0.0, %v3815
        %v3817 = vpop.f32.mrb[0].mxu0
        %3818 = vmatprep.mubr.f32.mxu0 0.0
        %3819 = vmatmul.mubr.f32.gmra.mrb[0].mxu0 %v3735
        %v3820 = vpop.f32.mrb[0].mxu0
        %v3821 = vadd.f32 0.0, %v3820
        %v3822 = vpop.f32.mrb[0].mxu0
        %3823 = vdwg.mxu0
        %v3824 = vmul.f32 %v3806, 0.17677669
        %v3825 = vmul.f32 %v3811, 0.17677669
        %v3826 = vmul.f32 %v3816, 0.17677669
        %v3827 = vmul.f32 %v3821, 0.17677669
        %v3828 = vsel %vm2480, %v3824, -inf
        %3829 = vmax.xlane.f32.xlu0 %v3828
        %v3830 = vpop.xlane.xlu0 %3829
        %v3831 = vsel %vm2480, %v3825, -inf
        %3832 = vmax.xlane.f32.xlu0 %v3831
        %v3833 = vpop.xlane.xlu0 %3832
        %v3834 = vsel %vm2480, %v3826, -inf
        %3835 = vmax.xlane.f32.xlu0 %v3834
        %v3836 = vpop.xlane.xlu0 %3835
        %v3837 = vsel %vm2480, %v3827, -inf
        %3838 = vmax.xlane.f32.xlu0 %v3837
        %v3839 = vpop.xlane.xlu0 %3838
        %v3840 = vsub.f32 %v3824, %v3830
        %v3841 = vsub.f32 %v3825, %v3833
        %v3842 = vsub.f32 %v3826, %v3836
        %v3843 = vsub.f32 %v3827, %v3839
        %v3844 = vmul.f32 %v3840, 1.442695
        %v3845 = vpow.pop %v3844
        %v3846 = vmul.f32 %v3841, 1.442695
        %v3847 = vpow.pop %v3846
        %v3848 = vmul.f32 %v3842, 1.442695
        %v3849 = vpow.pop %v3848
        %v3850 = vmul.f32 %v3843, 1.442695
        %v3851 = vpow.pop %v3850
        %v3852 = vsel %vm2480, %v3845, 0.0
        %3853 = vadd.xlane.f32.xlu0 %v3852
        %v3854 = vpop.xlane.xlu0 %3853
        %v3855 = vsel %vm2480, %v3847, 0.0
        %3856 = vadd.xlane.f32.xlu0 %v3855
        %v3857 = vpop.xlane.xlu0 %3856
        %v3858 = vsel %vm2480, %v3849, 0.0
        %3859 = vadd.xlane.f32.xlu0 %v3858
        %v3860 = vpop.xlane.xlu0 %3859
        %v3861 = vsel %vm2480, %v3851, 0.0
        %3862 = vadd.xlane.f32.xlu0 %v3861
        %v3863 = vpop.xlane.xlu0 %3862
        %v3864 = vrcp.pop %v3854
        %v3865 = vmul.f32 %v3845, %v3864
        %v3866 = vrcp.pop %v3857
        %v3867 = vmul.f32 %v3847, %v3866
        %v3868 = vrcp.pop %v3860
        %v3869 = vmul.f32 %v3849, %v3868
        %v3870 = vrcp.pop %v3863
        %v3871 = vmul.f32 %v3851, %v3870
        %3872 = vrot.lane.b32.xlu0 %v2467, 112
        %v3873 = vpop.permute.xlu0 %3872
        %v3876 = vsel %vm2480, %v3865, 0
        %v3879 = vsel %vm2480, %v3867, 0
        %v3882 = vsel %vm2480, %v3869, 0
        %v3885 = vsel %vm2480, %v3871, 0
        %3887 = vmatprep.subr.mxu0 0.0
        %3888 = vmatpush1.msra.mxu0 %v3873
        %3889 = vmatprep.subr.mxu0 0.0
        %3890 = vmatpush1.msra.mxu0 0.0
        %3891 = vmatprep.subr.mxu0 0.0
        %3892 = vmatpush1.msra.mxu0 0.0
        %3893 = vmatprep.subr.mxu0 0.0
        %3894 = vmatpush1.msra.mxu0 0.0
        %3895 = vmatprep.subr.mxu0 0.0
        %3896 = vmatpush1.msra.mxu0 0.0
        %3897 = vmatprep.subr.mxu0 0.0
        %3898 = vmatpush1.msra.mxu0 0.0
        %3899 = vmatprep.subr.mxu0 0.0
        %3900 = vmatpush1.msra.mxu0 0.0
        %3901 = vmatprep.subr.mxu0 0.0
        %3902 = vmatpush1.msra.mxu0 0.0
        %3903 = vmatprep.subr.mxu0 0.0
        %3904 = vmatpush1.msra.mxu0 0.0
        %3905 = vmatprep.subr.mxu0 0.0
        %3906 = vmatpush1.msra.mxu0 0.0
        %3907 = vmatprep.subr.mxu0 0.0
        %3908 = vmatpush1.msra.mxu0 0.0
        %3909 = vmatprep.subr.mxu0 0.0
        %3910 = vmatpush1.msra.mxu0 0.0
        %3911 = vmatprep.subr.mxu0 0.0
        %3912 = vmatpush1.msra.mxu0 0.0
        %3913 = vmatprep.subr.mxu0 0.0
        %3914 = vmatpush1.msra.mxu0 0.0
        %3915 = vmatprep.subr.mxu0 0.0
        %3916 = vmatpush1.msra.mxu0 0.0
        %3917 = vmatprep.subr.mxu0 0.0
        %3918 = vmatpush1.msra.mxu0 0.0
        %3919 = vmatprep.subr.mxu0 0.0
        %3920 = vmatpush1.msra.mxu0 0.0
        %3921 = vmatprep.subr.mxu0 0.0
        %3922 = vmatpush1.msra.mxu0 0.0
        %3923 = vmatprep.subr.mxu0 0.0
        %3924 = vmatpush1.msra.mxu0 0.0
        %3925 = vmatprep.subr.mxu0 0.0
        %3926 = vmatpush1.msra.mxu0 0.0
        %3927 = vmatprep.subr.mxu0 0.0
        %3928 = vmatpush1.msra.mxu0 0.0
        %3929 = vmatprep.subr.mxu0 0.0
        %3930 = vmatpush1.msra.mxu0 0.0
        %3931 = vmatprep.subr.mxu0 0.0
        %3932 = vmatpush1.msra.mxu0 0.0
        %3933 = vmatprep.subr.mxu0 0.0
        %3934 = vmatpush1.msra.mxu0 0.0
        %3935 = vmatprep.subr.mxu0 0.0
        %3936 = vmatpush1.msra.mxu0 0.0
        %3937 = vmatprep.subr.mxu0 0.0
        %3938 = vmatpush1.msra.mxu0 0.0
        %3939 = vmatprep.subr.mxu0 0.0
        %3940 = vmatpush1.msra.mxu0 0.0
        %3941 = vmatprep.subr.mxu0 0.0
        %3942 = vmatpush1.msra.mxu0 0.0
        %3943 = vmatprep.subr.mxu0 0.0
        %3944 = vmatpush1.msra.mxu0 0.0
        %3945 = vmatprep.subr.mxu0 0.0
        %3946 = vmatpush1.msra.mxu0 0.0
        %3947 = vmatprep.subr.mxu0 0.0
        %3948 = vmatpush1.msra.mxu0 0.0
        %3949 = vmatprep.subr.mxu0 0.0
        %3950 = vmatpush1.msra.mxu0 0.0
        %3951 = vmatprep.mubr.f32.mxu0 0.0
        %3952 = vmatmul.mubr.f32.gmra.mrb[0].mxu0 %v3876
        %v3953 = vpop.f32.mrb[0].mxu0
        %v3954 = vadd.f32 0.0, %v3953
        %v3955 = vpop.f32.mrb[0].mxu0
        %3956 = vmatprep.mubr.f32.mxu0 0.0
        %3957 = vmatmul.mubr.f32.gmra.mrb[0].mxu0 %v3879
        %v3958 = vpop.f32.mrb[0].mxu0
        %v3959 = vadd.f32 0.0, %v3958
        %v3960 = vpop.f32.mrb[0].mxu0
        %3961 = vmatprep.mubr.f32.mxu0 0.0
        %3962 = vmatmul.mubr.f32.gmra.mrb[0].mxu0 %v3882
        %v3963 = vpop.f32.mrb[0].mxu0
        %v3964 = vadd.f32 0.0, %v3963
        %v3965 = vpop.f32.mrb[0].mxu0
        %3966 = vmatprep.mubr.f32.mxu0 0.0
        %3967 = vmatmul.mubr.f32.gmra.mrb[0].mxu0 %v3885
        %v3968 = vpop.f32.mrb[0].mxu0
        %v3969 = vadd.f32 0.0, %v3968
        %v3970 = vpop.f32.mrb[0].mxu0
        %3971 = vdwg.mxu0
        %3972 = vrot.lane.b32.xlu0 %v2256, 112
        %v3973 = vpop.permute.xlu0 %3972
        %3974 = vrot.lane.b32.xlu0 %v2261, 112
        %v3975 = vpop.permute.xlu0 %3974
        %3976 = vrot.lane.b32.xlu0 %v2266, 112
        %v3977 = vpop.permute.xlu0 %3976
        %3978 = vrot.lane.b32.xlu0 %v2271, 112
        %v3979 = vpop.permute.xlu0 %3978
        %3980 = vrot.lane.b32.xlu0 %v2276, 112
        %v3981 = vpop.permute.xlu0 %3980
        %3982 = vrot.lane.b32.xlu0 %v2281, 112
        %v3983 = vpop.permute.xlu0 %3982
        %3984 = vrot.lane.b32.xlu0 %v2286, 112
        %v3985 = vpop.permute.xlu0 %3984
        %3986 = vrot.lane.b32.xlu0 %v2291, 112
        %v3987 = vpop.permute.xlu0 %3986
        %3988 = vrot.lane.b32.xlu0 %v2379, 112
        %v3989 = vpop.permute.xlu0 %3988
        %3990 = vrot.lane.b32.xlu0 %v2384, 112
        %v3991 = vpop.permute.xlu0 %3990
        %v3992 = vsel %vm2480, %v3973, 0
        %v3994 = vsel %vm2480, %v3975, 0
        %v3996 = vsel %vm2480, %v3977, 0
        %v3998 = vsel %vm2480, %v3979, 0
        %v4000 = vsel %vm2480, %v3981, 0
        %v4002 = vsel %vm2480, %v3983, 0
        %v4004 = vsel %vm2480, %v3985, 0
        %v4006 = vsel %vm2480, %v3987, 0
        %v4008 = vsel %vm2480, %v3989, 0
        %v4010 = vsel %vm2480, %v3991, 0
        %4012 = vmatprep.subr.mxu0 0.0
        %4013 = vmatpush1.xpose.msra.mxu0 %v3737
        %4014 = vmatprep.subr.mxu0 0.0
        %4015 = vmatpush1.xpose.msra.mxu0 %v4008
        %4016 = vmatprep.subr.mxu0 0.0
        %4017 = vmatpush1.xpose.msra.mxu0 %v4010
        %4018 = vmatprep.subr.mxu0 0.0
        %4019 = vmatpush1.xpose.msra.mxu0 0.0
        %4020 = vmatprep.subr.mxu0 0.0
        %4021 = vmatpush1.xpose.msra.mxu0 0.0
        %4022 = vmatprep.subr.mxu0 0.0
        %4023 = vmatpush1.xpose.msra.mxu0 0.0
        %4024 = vmatprep.subr.mxu0 0.0
        %4025 = vmatpush1.xpose.msra.mxu0 0.0
        %4026 = vmatprep.subr.mxu0 0.0
        %4027 = vmatpush1.xpose.msra.mxu0 0.0
        %4028 = vmatprep.subr.mxu0 0.0
        %4029 = vmatpush1.xpose.msra.mxu0 0.0
        %4030 = vmatprep.subr.mxu0 0.0
        %4031 = vmatpush1.xpose.msra.mxu0 0.0
        %4032 = vmatprep.subr.mxu0 0.0
        %4033 = vmatpush1.xpose.msra.mxu0 0.0
        %4034 = vmatprep.subr.mxu0 0.0
        %4035 = vmatpush1.xpose.msra.mxu0 0.0
        %4036 = vmatprep.subr.mxu0 0.0
        %4037 = vmatpush1.xpose.msra.mxu0 0.0
        %4038 = vmatprep.subr.mxu0 0.0
        %4039 = vmatpush1.xpose.msra.mxu0 0.0
        %4040 = vmatprep.subr.mxu0 0.0
        %4041 = vmatpush1.xpose.msra.mxu0 0.0
        %4042 = vmatprep.subr.mxu0 0.0
        %4043 = vmatpush1.xpose.msra.mxu0 0.0
        %4044 = vmatprep.subr.mxu0 0.0
        %4045 = vmatpush1.xpose.msra.mxu0 0.0
        %4046 = vmatprep.subr.mxu0 0.0
        %4047 = vmatpush1.xpose.msra.mxu0 0.0
        %4048 = vmatprep.subr.mxu0 0.0
        %4049 = vmatpush1.xpose.msra.mxu0 0.0
        %4050 = vmatprep.subr.mxu0 0.0
        %4051 = vmatpush1.xpose.msra.mxu0 0.0
        %4052 = vmatprep.subr.mxu0 0.0
        %4053 = vmatpush1.xpose.msra.mxu0 0.0
        %4054 = vmatprep.subr.mxu0 0.0
        %4055 = vmatpush1.xpose.msra.mxu0 0.0
        %4056 = vmatprep.subr.mxu0 0.0
        %4057 = vmatpush1.xpose.msra.mxu0 0.0
        %4058 = vmatprep.subr.mxu0 0.0
        %4059 = vmatpush1.xpose.msra.mxu0 0.0
        %4060 = vmatprep.subr.mxu0 0.0
        %4061 = vmatpush1.xpose.msra.mxu0 0.0
        %4062 = vmatprep.subr.mxu0 0.0
        %4063 = vmatpush1.xpose.msra.mxu0 0.0
        %4064 = vmatprep.subr.mxu0 0.0
        %4065 = vmatpush1.xpose.msra.mxu0 0.0
        %4066 = vmatprep.subr.mxu0 0.0
        %4067 = vmatpush1.xpose.msra.mxu0 0.0
        %4068 = vmatprep.subr.mxu0 0.0
        %4069 = vmatpush1.xpose.msra.mxu0 0.0
        %4070 = vmatprep.subr.mxu0 0.0
        %4071 = vmatpush1.xpose.msra.mxu0 0.0
        %4072 = vmatprep.subr.mxu0 0.0
        %4073 = vmatpush1.xpose.msra.mxu0 0.0
        %4074 = vmatprep.subr.mxu0 0.0
        %4075 = vmatpush1.xpose.msra.mxu0 0.0
        %4076 = vmatprep.mubr.f32.mxu0 0.0
        %4077 = vmatmul.mubr.f32.gmra.mrb[0].mxu0 %v3992
        %v4078 = vpop.f32.mrb[0].mxu0
        %v4079 = vadd.f32 0.0, %v4078
        %v4080 = vpop.f32.mrb[0].mxu0
        %4081 = vmatprep.mubr.f32.mxu0 0.0
        %4082 = vmatmul.mubr.f32.gmra.mrb[0].mxu0 %v3994
        %v4083 = vpop.f32.mrb[0].mxu0
        %v4084 = vadd.f32 0.0, %v4083
        %v4085 = vpop.f32.mrb[0].mxu0
        %4086 = vmatprep.mubr.f32.mxu0 0.0
        %4087 = vmatmul.mubr.f32.gmra.mrb[0].mxu0 %v3996
        %v4088 = vpop.f32.mrb[0].mxu0
        %v4089 = vadd.f32 0.0, %v4088
        %v4090 = vpop.f32.mrb[0].mxu0
        %4091 = vmatprep.mubr.f32.mxu0 0.0
        %4092 = vmatmul.mubr.f32.gmra.mrb[0].mxu0 %v3998
        %v4093 = vpop.f32.mrb[0].mxu0
        %v4094 = vadd.f32 0.0, %v4093
        %v4095 = vpop.f32.mrb[0].mxu0
        %4096 = vmatprep.mubr.f32.mxu0 0.0
        %4097 = vmatmul.mubr.f32.gmra.mrb[0].mxu0 %v4000
        %v4098 = vpop.f32.mrb[0].mxu0
        %v4099 = vadd.f32 0.0, %v4098
        %v4100 = vpop.f32.mrb[0].mxu0
        %4101 = vmatprep.mubr.f32.mxu0 0.0
        %4102 = vmatmul.mubr.f32.gmra.mrb[0].mxu0 %v4002
        %v4103 = vpop.f32.mrb[0].mxu0
        %v4104 = vadd.f32 0.0, %v4103
        %v4105 = vpop.f32.mrb[0].mxu0
        %4106 = vmatprep.mubr.f32.mxu0 0.0
        %4107 = vmatmul.mubr.f32.gmra.mrb[0].mxu0 %v4004
        %v4108 = vpop.f32.mrb[0].mxu0
        %v4109 = vadd.f32 0.0, %v4108
        %v4110 = vpop.f32.mrb[0].mxu0
        %4111 = vmatprep.mubr.f32.mxu0 0.0
        %4112 = vmatmul.mubr.f32.gmra.mrb[0].mxu0 %v4006
        %v4113 = vpop.f32.mrb[0].mxu0
        %v4114 = vadd.f32 0.0, %v4113
        %v4115 = vpop.f32.mrb[0].mxu0
        %4116 = vdwg.mxu0
        %v4117 = vmul.f32 %v4079, 0.17677669
        %v4118 = vmul.f32 %v4084, 0.17677669
        %v4119 = vmul.f32 %v4089, 0.17677669
        %v4120 = vmul.f32 %v4094, 0.17677669
        %v4121 = vmul.f32 %v4099, 0.17677669
        %v4122 = vmul.f32 %v4104, 0.17677669
        %v4123 = vmul.f32 %v4109, 0.17677669
        %v4124 = vmul.f32 %v4114, 0.17677669
        %v4125 = vsel %vm2869, %v4117, -inf
        %4126 = vmax.xlane.f32.xlu0 %v4125
        %v4127 = vpop.xlane.xlu0 %4126
        %v4128 = vsel %vm2869, %v4118, -inf
        %4129 = vmax.xlane.f32.xlu0 %v4128
        %v4130 = vpop.xlane.xlu0 %4129
        %v4131 = vsel %vm2869, %v4119, -inf
        %4132 = vmax.xlane.f32.xlu0 %v4131
        %v4133 = vpop.xlane.xlu0 %4132
        %v4134 = vsel %vm2869, %v4120, -inf
        %4135 = vmax.xlane.f32.xlu0 %v4134
        %v4136 = vpop.xlane.xlu0 %4135
        %v4137 = vsel %vm2869, %v4121, -inf
        %4138 = vmax.xlane.f32.xlu0 %v4137
        %v4139 = vpop.xlane.xlu0 %4138
        %v4140 = vsel %vm2869, %v4122, -inf
        %4141 = vmax.xlane.f32.xlu0 %v4140
        %v4142 = vpop.xlane.xlu0 %4141
        %v4143 = vsel %vm2869, %v4123, -inf
        %4144 = vmax.xlane.f32.xlu0 %v4143
        %v4145 = vpop.xlane.xlu0 %4144
        %v4146 = vsel %vm2869, %v4124, -inf
        %4147 = vmax.xlane.f32.xlu0 %v4146
        %v4148 = vpop.xlane.xlu0 %4147
        %v4149 = vsub.f32 %v4117, %v4127
        %v4150 = vsub.f32 %v4118, %v4130
        %v4151 = vsub.f32 %v4119, %v4133
        %v4152 = vsub.f32 %v4120, %v4136
        %v4153 = vsub.f32 %v4121, %v4139
        %v4154 = vsub.f32 %v4122, %v4142
        %v4155 = vsub.f32 %v4123, %v4145
        %v4156 = vsub.f32 %v4124, %v4148
        %v4157 = vmul.f32 %v4149, 1.442695
        %v4158 = vpow.pop %v4157
        %v4159 = vmul.f32 %v4150, 1.442695
        %v4160 = vpow.pop %v4159
        %v4161 = vmul.f32 %v4151, 1.442695
        %v4162 = vpow.pop %v4161
        %v4163 = vmul.f32 %v4152, 1.442695
        %v4164 = vpow.pop %v4163
        %v4165 = vmul.f32 %v4153, 1.442695
        %v4166 = vpow.pop %v4165
        %v4167 = vmul.f32 %v4154, 1.442695
        %v4168 = vpow.pop %v4167
        %v4169 = vmul.f32 %v4155, 1.442695
        %v4170 = vpow.pop %v4169
        %v4171 = vmul.f32 %v4156, 1.442695
        %v4172 = vpow.pop %v4171
        %v4173 = vsel %vm2869, %v4158, 0.0
        %4174 = vadd.xlane.f32.xlu0 %v4173
        %v4175 = vpop.xlane.xlu0 %4174
        %v4176 = vsel %vm2869, %v4160, 0.0
        %4177 = vadd.xlane.f32.xlu0 %v4176
        %v4178 = vpop.xlane.xlu0 %4177
        %v4179 = vsel %vm2869, %v4162, 0.0
        %4180 = vadd.xlane.f32.xlu0 %v4179
        %v4181 = vpop.xlane.xlu0 %4180
        %v4182 = vsel %vm2869, %v4164, 0.0
        %4183 = vadd.xlane.f32.xlu0 %v4182
        %v4184 = vpop.xlane.xlu0 %4183
        %v4185 = vsel %vm2869, %v4166, 0.0
        %4186 = vadd.xlane.f32.xlu0 %v4185
        %v4187 = vpop.xlane.xlu0 %4186
        %v4188 = vsel %vm2869, %v4168, 0.0
        %4189 = vadd.xlane.f32.xlu0 %v4188
        %v4190 = vpop.xlane.xlu0 %4189
        %v4191 = vsel %vm2869, %v4170, 0.0
        %4192 = vadd.xlane.f32.xlu0 %v4191
        %v4193 = vpop.xlane.xlu0 %4192
        %v4194 = vsel %vm2869, %v4172, 0.0
        %4195 = vadd.xlane.f32.xlu0 %v4194
        %v4196 = vpop.xlane.xlu0 %4195
        %v4197 = vrcp.pop %v4175
        %v4198 = vmul.f32 %v4158, %v4197
        %v4199 = vrcp.pop %v4178
        %v4200 = vmul.f32 %v4160, %v4199
        %v4201 = vrcp.pop %v4181
        %v4202 = vmul.f32 %v4162, %v4201
        %v4203 = vrcp.pop %v4184
        %v4204 = vmul.f32 %v4164, %v4203
        %v4205 = vrcp.pop %v4187
        %v4206 = vmul.f32 %v4166, %v4205
        %v4207 = vrcp.pop %v4190
        %v4208 = vmul.f32 %v4168, %v4207
        %v4209 = vrcp.pop %v4193
        %v4210 = vmul.f32 %v4170, %v4209
        %v4211 = vrcp.pop %v4196
        %v4212 = vmul.f32 %v4172, %v4211
        %4213 = vrot.lane.b32.xlu0 %v2472, 112
        %v4214 = vpop.permute.xlu0 %4213
        %4215 = vrot.lane.b32.xlu0 %v2477, 112
        %v4216 = vpop.permute.xlu0 %4215
        %v4220 = vsel %vm2869, %v4198, 0
        %v4223 = vsel %vm2869, %v4200, 0
        %v4226 = vsel %vm2869, %v4202, 0
        %v4229 = vsel %vm2869, %v4204, 0
        %v4232 = vsel %vm2869, %v4206, 0
        %v4235 = vsel %vm2869, %v4208, 0
        %v4238 = vsel %vm2869, %v4210, 0
        %v4241 = vsel %vm2869, %v4212, 0
        %4243 = vmatprep.subr.mxu0 0.0
        %4244 = vmatpush1.msra.mxu0 %v3873
        %4245 = vmatprep.subr.mxu0 0.0
        %4246 = vmatpush1.msra.mxu0 %v4214
        %4247 = vmatprep.subr.mxu0 0.0
        %4248 = vmatpush1.msra.mxu0 %v4216
        %4249 = vmatprep.subr.mxu0 0.0
        %4250 = vmatpush1.msra.mxu0 0.0
        %4251 = vmatprep.subr.mxu0 0.0
        %4252 = vmatpush1.msra.mxu0 0.0
        %4253 = vmatprep.subr.mxu0 0.0
        %4254 = vmatpush1.msra.mxu0 0.0
        %4255 = vmatprep.subr.mxu0 0.0
        %4256 = vmatpush1.msra.mxu0 0.0
        %4257 = vmatprep.subr.mxu0 0.0
        %4258 = vmatpush1.msra.mxu0 0.0
        %4259 = vmatprep.subr.mxu0 0.0
        %4260 = vmatpush1.msra.mxu0 0.0
        %4261 = vmatprep.subr.mxu0 0.0
        %4262 = vmatpush1.msra.mxu0 0.0
        %4263 = vmatprep.subr.mxu0 0.0
        %4264 = vmatpush1.msra.mxu0 0.0
        %4265 = vmatprep.subr.mxu0 0.0
        %4266 = vmatpush1.msra.mxu0 0.0
        %4267 = vmatprep.subr.mxu0 0.0
        %4268 = vmatpush1.msra.mxu0 0.0
        %4269 = vmatprep.subr.mxu0 0.0
        %4270 = vmatpush1.msra.mxu0 0.0
        %4271 = vmatprep.subr.mxu0 0.0
        %4272 = vmatpush1.msra.mxu0 0.0
        %4273 = vmatprep.subr.mxu0 0.0
        %4274 = vmatpush1.msra.mxu0 0.0
        %4275 = vmatprep.subr.mxu0 0.0
        %4276 = vmatpush1.msra.mxu0 0.0
        %4277 = vmatprep.subr.mxu0 0.0
        %4278 = vmatpush1.msra.mxu0 0.0
        %4279 = vmatprep.subr.mxu0 0.0
        %4280 = vmatpush1.msra.mxu0 0.0
        %4281 = vmatprep.subr.mxu0 0.0
        %4282 = vmatpush1.msra.mxu0 0.0
        %4283 = vmatprep.subr.mxu0 0.0
        %4284 = vmatpush1.msra.mxu0 0.0
        %4285 = vmatprep.subr.mxu0 0.0
        %4286 = vmatpush1.msra.mxu0 0.0
        %4287 = vmatprep.subr.mxu0 0.0
        %4288 = vmatpush1.msra.mxu0 0.0
        %4289 = vmatprep.subr.mxu0 0.0
        %4290 = vmatpush1.msra.mxu0 0.0
        %4291 = vmatprep.subr.mxu0 0.0
        %4292 = vmatpush1.msra.mxu0 0.0
        %4293 = vmatprep.subr.mxu0 0.0
        %4294 = vmatpush1.msra.mxu0 0.0
        %4295 = vmatprep.subr.mxu0 0.0
        %4296 = vmatpush1.msra.mxu0 0.0
        %4297 = vmatprep.subr.mxu0 0.0
        %4298 = vmatpush1.msra.mxu0 0.0
        %4299 = vmatprep.subr.mxu0 0.0
        %4300 = vmatpush1.msra.mxu0 0.0
        %4301 = vmatprep.subr.mxu0 0.0
        %4302 = vmatpush1.msra.mxu0 0.0
        %4303 = vmatprep.subr.mxu0 0.0
        %4304 = vmatpush1.msra.mxu0 0.0
        %4305 = vmatprep.subr.mxu0 0.0
        %4306 = vmatpush1.msra.mxu0 0.0
        %4307 = vmatprep.mubr.f32.mxu0 0.0
        %4308 = vmatmul.mubr.f32.gmra.mrb[0].mxu0 %v4220
        %v4309 = vpop.f32.mrb[0].mxu0
        %v4310 = vadd.f32 0.0, %v4309
        %v4311 = vpop.f32.mrb[0].mxu0
        %4312 = vmatprep.mubr.f32.mxu0 0.0
        %4313 = vmatmul.mubr.f32.gmra.mrb[0].mxu0 %v4223
        %v4314 = vpop.f32.mrb[0].mxu0
        %v4315 = vadd.f32 0.0, %v4314
        %v4316 = vpop.f32.mrb[0].mxu0
        %4317 = vmatprep.mubr.f32.mxu0 0.0
        %4318 = vmatmul.mubr.f32.gmra.mrb[0].mxu0 %v4226
        %v4319 = vpop.f32.mrb[0].mxu0
        %v4320 = vadd.f32 0.0, %v4319
        %v4321 = vpop.f32.mrb[0].mxu0
        %4322 = vmatprep.mubr.f32.mxu0 0.0
        %4323 = vmatmul.mubr.f32.gmra.mrb[0].mxu0 %v4229
        %v4324 = vpop.f32.mrb[0].mxu0
        %v4325 = vadd.f32 0.0, %v4324
        %v4326 = vpop.f32.mrb[0].mxu0
        %4327 = vmatprep.mubr.f32.mxu0 0.0
        %4328 = vmatmul.mubr.f32.gmra.mrb[0].mxu0 %v4232
        %v4329 = vpop.f32.mrb[0].mxu0
        %v4330 = vadd.f32 0.0, %v4329
        %v4331 = vpop.f32.mrb[0].mxu0
        %4332 = vmatprep.mubr.f32.mxu0 0.0
        %4333 = vmatmul.mubr.f32.gmra.mrb[0].mxu0 %v4235
        %v4334 = vpop.f32.mrb[0].mxu0
        %v4335 = vadd.f32 0.0, %v4334
        %v4336 = vpop.f32.mrb[0].mxu0
        %4337 = vmatprep.mubr.f32.mxu0 0.0
        %4338 = vmatmul.mubr.f32.gmra.mrb[0].mxu0 %v4238
        %v4339 = vpop.f32.mrb[0].mxu0
        %v4340 = vadd.f32 0.0, %v4339
        %v4341 = vpop.f32.mrb[0].mxu0
        %4342 = vmatprep.mubr.f32.mxu0 0.0
        %4343 = vmatmul.mubr.f32.gmra.mrb[0].mxu0 %v4241
        %v4344 = vpop.f32.mrb[0].mxu0
        %v4345 = vadd.f32 0.0, %v4344
        %v4346 = vpop.f32.mrb[0].mxu0
        %4347 = vdwg.mxu0
        %4348 = vrot.lane.b32.xlu0 %v2236, 104
        %v4349 = vpop.permute.xlu0 %4348
        %4350 = vrot.lane.b32.xlu0 %v2241, 104
        %v4351 = vpop.permute.xlu0 %4350
        %4352 = vrot.lane.b32.xlu0 %v2246, 104
        %v4353 = vpop.permute.xlu0 %4352
        %4354 = vrot.lane.b32.xlu0 %v2251, 104
        %v4355 = vpop.permute.xlu0 %4354
        %4356 = vrot.lane.b32.xlu0 %v2374, 104
        %v4357 = vpop.permute.xlu0 %4356
        %v4358 = vsel %vm2480, %v4349, 0
        %v4360 = vsel %vm2480, %v4351, 0
        %v4362 = vsel %vm2480, %v4353, 0
        %v4364 = vsel %vm2480, %v4355, 0
        %v4366 = vsel %vm2480, %v4357, 0
        %4368 = vmatprep.subr.mxu0 0.0
        %4369 = vmatpush1.xpose.msra.mxu0 %v4366
        %4370 = vmatprep.subr.mxu0 0.0
        %4371 = vmatpush1.xpose.msra.mxu0 0.0
        %4372 = vmatprep.subr.mxu0 0.0
        %4373 = vmatpush1.xpose.msra.mxu0 0.0
        %4374 = vmatprep.subr.mxu0 0.0
        %4375 = vmatpush1.xpose.msra.mxu0 0.0
        %4376 = vmatprep.subr.mxu0 0.0
        %4377 = vmatpush1.xpose.msra.mxu0 0.0
        %4378 = vmatprep.subr.mxu0 0.0
        %4379 = vmatpush1.xpose.msra.mxu0 0.0
        %4380 = vmatprep.subr.mxu0 0.0
        %4381 = vmatpush1.xpose.msra.mxu0 0.0
        %4382 = vmatprep.subr.mxu0 0.0
        %4383 = vmatpush1.xpose.msra.mxu0 0.0
        %4384 = vmatprep.subr.mxu0 0.0
        %4385 = vmatpush1.xpose.msra.mxu0 0.0
        %4386 = vmatprep.subr.mxu0 0.0
        %4387 = vmatpush1.xpose.msra.mxu0 0.0
        %4388 = vmatprep.subr.mxu0 0.0
        %4389 = vmatpush1.xpose.msra.mxu0 0.0
        %4390 = vmatprep.subr.mxu0 0.0
        %4391 = vmatpush1.xpose.msra.mxu0 0.0
        %4392 = vmatprep.subr.mxu0 0.0
        %4393 = vmatpush1.xpose.msra.mxu0 0.0
        %4394 = vmatprep.subr.mxu0 0.0
        %4395 = vmatpush1.xpose.msra.mxu0 0.0
        %4396 = vmatprep.subr.mxu0 0.0
        %4397 = vmatpush1.xpose.msra.mxu0 0.0
        %4398 = vmatprep.subr.mxu0 0.0
        %4399 = vmatpush1.xpose.msra.mxu0 0.0
        %4400 = vmatprep.subr.mxu0 0.0
        %4401 = vmatpush1.xpose.msra.mxu0 0.0
        %4402 = vmatprep.subr.mxu0 0.0
        %4403 = vmatpush1.xpose.msra.mxu0 0.0
        %4404 = vmatprep.subr.mxu0 0.0
        %4405 = vmatpush1.xpose.msra.mxu0 0.0
        %4406 = vmatprep.subr.mxu0 0.0
        %4407 = vmatpush1.xpose.msra.mxu0 0.0
        %4408 = vmatprep.subr.mxu0 0.0
        %4409 = vmatpush1.xpose.msra.mxu0 0.0
        %4410 = vmatprep.subr.mxu0 0.0
        %4411 = vmatpush1.xpose.msra.mxu0 0.0
        %4412 = vmatprep.subr.mxu0 0.0
        %4413 = vmatpush1.xpose.msra.mxu0 0.0
        %4414 = vmatprep.subr.mxu0 0.0
        %4415 = vmatpush1.xpose.msra.mxu0 0.0
        %4416 = vmatprep.subr.mxu0 0.0
        %4417 = vmatpush1.xpose.msra.mxu0 0.0
        %4418 = vmatprep.subr.mxu0 0.0
        %4419 = vmatpush1.xpose.msra.mxu0 0.0
        %4420 = vmatprep.subr.mxu0 0.0
        %4421 = vmatpush1.xpose.msra.mxu0 0.0
        %4422 = vmatprep.subr.mxu0 0.0
        %4423 = vmatpush1.xpose.msra.mxu0 0.0
        %4424 = vmatprep.subr.mxu0 0.0
        %4425 = vmatpush1.xpose.msra.mxu0 0.0
        %4426 = vmatprep.subr.mxu0 0.0
        %4427 = vmatpush1.xpose.msra.mxu0 0.0
        %4428 = vmatprep.subr.mxu0 0.0
        %4429 = vmatpush1.xpose.msra.mxu0 0.0
        %4430 = vmatprep.subr.mxu0 0.0
        %4431 = vmatpush1.xpose.msra.mxu0 0.0
        %4432 = vmatprep.mubr.f32.mxu0 0.0
        %4433 = vmatmul.mubr.f32.gmra.mrb[0].mxu0 %v4358
        %v4434 = vpop.f32.mrb[0].mxu0
        %v4435 = vadd.f32 0.0, %v4434
        %v4436 = vpop.f32.mrb[0].mxu0
        %4437 = vmatprep.mubr.f32.mxu0 0.0
        %4438 = vmatmul.mubr.f32.gmra.mrb[0].mxu0 %v4360
        %v4439 = vpop.f32.mrb[0].mxu0
        %v4440 = vadd.f32 0.0, %v4439
        %v4441 = vpop.f32.mrb[0].mxu0
        %4442 = vmatprep.mubr.f32.mxu0 0.0
        %4443 = vmatmul.mubr.f32.gmra.mrb[0].mxu0 %v4362
        %v4444 = vpop.f32.mrb[0].mxu0
        %v4445 = vadd.f32 0.0, %v4444
        %v4446 = vpop.f32.mrb[0].mxu0
        %4447 = vmatprep.mubr.f32.mxu0 0.0
        %4448 = vmatmul.mubr.f32.gmra.mrb[0].mxu0 %v4364
        %v4449 = vpop.f32.mrb[0].mxu0
        %v4450 = vadd.f32 0.0, %v4449
        %v4451 = vpop.f32.mrb[0].mxu0
        %4452 = vdwg.mxu0
        %v4453 = vmul.f32 %v4435, 0.17677669
        %v4454 = vmul.f32 %v4440, 0.17677669
        %v4455 = vmul.f32 %v4445, 0.17677669
        %v4456 = vmul.f32 %v4450, 0.17677669
        %v4457 = vsel %vm2480, %v4453, -inf
        %4458 = vmax.xlane.f32.xlu0 %v4457
        %v4459 = vpop.xlane.xlu0 %4458
        %v4460 = vsel %vm2480, %v4454, -inf
        %4461 = vmax.xlane.f32.xlu0 %v4460
        %v4462 = vpop.xlane.xlu0 %4461
        %v4463 = vsel %vm2480, %v4455, -inf
        %4464 = vmax.xlane.f32.xlu0 %v4463
        %v4465 = vpop.xlane.xlu0 %4464
        %v4466 = vsel %vm2480, %v4456, -inf
        %4467 = vmax.xlane.f32.xlu0 %v4466
        %v4468 = vpop.xlane.xlu0 %4467
        %v4469 = vsub.f32 %v4453, %v4459
        %v4470 = vsub.f32 %v4454, %v4462
        %v4471 = vsub.f32 %v4455, %v4465
        %v4472 = vsub.f32 %v4456, %v4468
        %v4473 = vmul.f32 %v4469, 1.442695
        %v4474 = vpow.pop %v4473
        %v4475 = vmul.f32 %v4470, 1.442695
        %v4476 = vpow.pop %v4475
        %v4477 = vmul.f32 %v4471, 1.442695
        %v4478 = vpow.pop %v4477
        %v4479 = vmul.f32 %v4472, 1.442695
        %v4480 = vpow.pop %v4479
        %v4481 = vsel %vm2480, %v4474, 0.0
        %4482 = vadd.xlane.f32.xlu0 %v4481
        %v4483 = vpop.xlane.xlu0 %4482
        %v4484 = vsel %vm2480, %v4476, 0.0
        %4485 = vadd.xlane.f32.xlu0 %v4484
        %v4486 = vpop.xlane.xlu0 %4485
        %v4487 = vsel %vm2480, %v4478, 0.0
        %4488 = vadd.xlane.f32.xlu0 %v4487
        %v4489 = vpop.xlane.xlu0 %4488
        %v4490 = vsel %vm2480, %v4480, 0.0
        %4491 = vadd.xlane.f32.xlu0 %v4490
        %v4492 = vpop.xlane.xlu0 %4491
        %v4493 = vrcp.pop %v4483
        %v4494 = vmul.f32 %v4474, %v4493
        %v4495 = vrcp.pop %v4486
        %v4496 = vmul.f32 %v4476, %v4495
        %v4497 = vrcp.pop %v4489
        %v4498 = vmul.f32 %v4478, %v4497
        %v4499 = vrcp.pop %v4492
        %v4500 = vmul.f32 %v4480, %v4499
        %4501 = vrot.lane.b32.xlu0 %v2467, 104
        %v4502 = vpop.permute.xlu0 %4501
        %v4505 = vsel %vm2480, %v4494, 0
        %v4508 = vsel %vm2480, %v4496, 0
        %v4511 = vsel %vm2480, %v4498, 0
        %v4514 = vsel %vm2480, %v4500, 0
        %4516 = vmatprep.subr.mxu0 0.0
        %4517 = vmatpush1.msra.mxu0 %v4502
        %4518 = vmatprep.subr.mxu0 0.0
        %4519 = vmatpush1.msra.mxu0 0.0
        %4520 = vmatprep.subr.mxu0 0.0
        %4521 = vmatpush1.msra.mxu0 0.0
        %4522 = vmatprep.subr.mxu0 0.0
        %4523 = vmatpush1.msra.mxu0 0.0
        %4524 = vmatprep.subr.mxu0 0.0
        %4525 = vmatpush1.msra.mxu0 0.0
        %4526 = vmatprep.subr.mxu0 0.0
        %4527 = vmatpush1.msra.mxu0 0.0
        %4528 = vmatprep.subr.mxu0 0.0
        %4529 = vmatpush1.msra.mxu0 0.0
        %4530 = vmatprep.subr.mxu0 0.0
        %4531 = vmatpush1.msra.mxu0 0.0
        %4532 = vmatprep.subr.mxu0 0.0
        %4533 = vmatpush1.msra.mxu0 0.0
        %4534 = vmatprep.subr.mxu0 0.0
        %4535 = vmatpush1.msra.mxu0 0.0
        %4536 = vmatprep.subr.mxu0 0.0
        %4537 = vmatpush1.msra.mxu0 0.0
        %4538 = vmatprep.subr.mxu0 0.0
        %4539 = vmatpush1.msra.mxu0 0.0
        %4540 = vmatprep.subr.mxu0 0.0
        %4541 = vmatpush1.msra.mxu0 0.0
        %4542 = vmatprep.subr.mxu0 0.0
        %4543 = vmatpush1.msra.mxu0 0.0
        %4544 = vmatprep.subr.mxu0 0.0
        %4545 = vmatpush1.msra.mxu0 0.0
        %4546 = vmatprep.subr.mxu0 0.0
        %4547 = vmatpush1.msra.mxu0 0.0
        %4548 = vmatprep.subr.mxu0 0.0
        %4549 = vmatpush1.msra.mxu0 0.0
        %4550 = vmatprep.subr.mxu0 0.0
        %4551 = vmatpush1.msra.mxu0 0.0
        %4552 = vmatprep.subr.mxu0 0.0
        %4553 = vmatpush1.msra.mxu0 0.0
        %4554 = vmatprep.subr.mxu0 0.0
        %4555 = vmatpush1.msra.mxu0 0.0
        %4556 = vmatprep.subr.mxu0 0.0
        %4557 = vmatpush1.msra.mxu0 0.0
        %4558 = vmatprep.subr.mxu0 0.0
        %4559 = vmatpush1.msra.mxu0 0.0
        %4560 = vmatprep.subr.mxu0 0.0
        %4561 = vmatpush1.msra.mxu0 0.0
        %4562 = vmatprep.subr.mxu0 0.0
        %4563 = vmatpush1.msra.mxu0 0.0
        %4564 = vmatprep.subr.mxu0 0.0
        %4565 = vmatpush1.msra.mxu0 0.0
        %4566 = vmatprep.subr.mxu0 0.0
        %4567 = vmatpush1.msra.mxu0 0.0
        %4568 = vmatprep.subr.mxu0 0.0
        %4569 = vmatpush1.msra.mxu0 0.0
        %4570 = vmatprep.subr.mxu0 0.0
        %4571 = vmatpush1.msra.mxu0 0.0
        %4572 = vmatprep.subr.mxu0 0.0
        %4573 = vmatpush1.msra.mxu0 0.0
        %4574 = vmatprep.subr.mxu0 0.0
        %4575 = vmatpush1.msra.mxu0 0.0
        %4576 = vmatprep.subr.mxu0 0.0
        %4577 = vmatpush1.msra.mxu0 0.0
        %4578 = vmatprep.subr.mxu0 0.0
        %4579 = vmatpush1.msra.mxu0 0.0
        %4580 = vmatprep.mubr.f32.mxu0 0.0
        %4581 = vmatmul.mubr.f32.gmra.mrb[0].mxu0 %v4505
        %v4582 = vpop.f32.mrb[0].mxu0
        %v4583 = vadd.f32 0.0, %v4582
        %v4584 = vpop.f32.mrb[0].mxu0
        %4585 = vmatprep.mubr.f32.mxu0 0.0
        %4586 = vmatmul.mubr.f32.gmra.mrb[0].mxu0 %v4508
        %v4587 = vpop.f32.mrb[0].mxu0
        %v4588 = vadd.f32 0.0, %v4587
        %v4589 = vpop.f32.mrb[0].mxu0
        %4590 = vmatprep.mubr.f32.mxu0 0.0
        %4591 = vmatmul.mubr.f32.gmra.mrb[0].mxu0 %v4511
        %v4592 = vpop.f32.mrb[0].mxu0
        %v4593 = vadd.f32 0.0, %v4592
        %v4594 = vpop.f32.mrb[0].mxu0
        %4595 = vmatprep.mubr.f32.mxu0 0.0
        %4596 = vmatmul.mubr.f32.gmra.mrb[0].mxu0 %v4514
        %v4597 = vpop.f32.mrb[0].mxu0
        %v4598 = vadd.f32 0.0, %v4597
        %v4599 = vpop.f32.mrb[0].mxu0
        %4600 = vdwg.mxu0
        %4601 = vrot.lane.b32.xlu0 %v2256, 104
        %v4602 = vpop.permute.xlu0 %4601
        %4603 = vrot.lane.b32.xlu0 %v2261, 104
        %v4604 = vpop.permute.xlu0 %4603
        %4605 = vrot.lane.b32.xlu0 %v2266, 104
        %v4606 = vpop.permute.xlu0 %4605
        %4607 = vrot.lane.b32.xlu0 %v2271, 104
        %v4608 = vpop.permute.xlu0 %4607
        %4609 = vrot.lane.b32.xlu0 %v2276, 104
        %v4610 = vpop.permute.xlu0 %4609
        %4611 = vrot.lane.b32.xlu0 %v2281, 104
        %v4612 = vpop.permute.xlu0 %4611
        %4613 = vrot.lane.b32.xlu0 %v2286, 104
        %v4614 = vpop.permute.xlu0 %4613
        %4615 = vrot.lane.b32.xlu0 %v2291, 104
        %v4616 = vpop.permute.xlu0 %4615
        %4617 = vrot.lane.b32.xlu0 %v2379, 104
        %v4618 = vpop.permute.xlu0 %4617
        %4619 = vrot.lane.b32.xlu0 %v2384, 104
        %v4620 = vpop.permute.xlu0 %4619
        %v4621 = vsel %vm2480, %v4602, 0
        %v4623 = vsel %vm2480, %v4604, 0
        %v4625 = vsel %vm2480, %v4606, 0
        %v4627 = vsel %vm2480, %v4608, 0
        %v4629 = vsel %vm2480, %v4610, 0
        %v4631 = vsel %vm2480, %v4612, 0
        %v4633 = vsel %vm2480, %v4614, 0
        %v4635 = vsel %vm2480, %v4616, 0
        %v4637 = vsel %vm2480, %v4618, 0
        %v4639 = vsel %vm2480, %v4620, 0
        %4641 = vmatprep.subr.mxu0 0.0
        %4642 = vmatpush1.xpose.msra.mxu0 %v4366
        %4643 = vmatprep.subr.mxu0 0.0
        %4644 = vmatpush1.xpose.msra.mxu0 %v4637
        %4645 = vmatprep.subr.mxu0 0.0
        %4646 = vmatpush1.xpose.msra.mxu0 %v4639
        %4647 = vmatprep.subr.mxu0 0.0
        %4648 = vmatpush1.xpose.msra.mxu0 0.0
        %4649 = vmatprep.subr.mxu0 0.0
        %4650 = vmatpush1.xpose.msra.mxu0 0.0
        %4651 = vmatprep.subr.mxu0 0.0
        %4652 = vmatpush1.xpose.msra.mxu0 0.0
        %4653 = vmatprep.subr.mxu0 0.0
        %4654 = vmatpush1.xpose.msra.mxu0 0.0
        %4655 = vmatprep.subr.mxu0 0.0
        %4656 = vmatpush1.xpose.msra.mxu0 0.0
        %4657 = vmatprep.subr.mxu0 0.0
        %4658 = vmatpush1.xpose.msra.mxu0 0.0
        %4659 = vmatprep.subr.mxu0 0.0
        %4660 = vmatpush1.xpose.msra.mxu0 0.0
        %4661 = vmatprep.subr.mxu0 0.0
        %4662 = vmatpush1.xpose.msra.mxu0 0.0
        %4663 = vmatprep.subr.mxu0 0.0
        %4664 = vmatpush1.xpose.msra.mxu0 0.0
        %4665 = vmatprep.subr.mxu0 0.0
        %4666 = vmatpush1.xpose.msra.mxu0 0.0
        %4667 = vmatprep.subr.mxu0 0.0
        %4668 = vmatpush1.xpose.msra.mxu0 0.0
        %4669 = vmatprep.subr.mxu0 0.0
        %4670 = vmatpush1.xpose.msra.mxu0 0.0
        %4671 = vmatprep.subr.mxu0 0.0
        %4672 = vmatpush1.xpose.msra.mxu0 0.0
        %4673 = vmatprep.subr.mxu0 0.0
        %4674 = vmatpush1.xpose.msra.mxu0 0.0
        %4675 = vmatprep.subr.mxu0 0.0
        %4676 = vmatpush1.xpose.msra.mxu0 0.0
        %4677 = vmatprep.subr.mxu0 0.0
        %4678 = vmatpush1.xpose.msra.mxu0 0.0
        %4679 = vmatprep.subr.mxu0 0.0
        %4680 = vmatpush1.xpose.msra.mxu0 0.0
        %4681 = vmatprep.subr.mxu0 0.0
        %4682 = vmatpush1.xpose.msra.mxu0 0.0
        %4683 = vmatprep.subr.mxu0 0.0
        %4684 = vmatpush1.xpose.msra.mxu0 0.0
        %4685 = vmatprep.subr.mxu0 0.0
        %4686 = vmatpush1.xpose.msra.mxu0 0.0
        %4687 = vmatprep.subr.mxu0 0.0
        %4688 = vmatpush1.xpose.msra.mxu0 0.0
        %4689 = vmatprep.subr.mxu0 0.0
        %4690 = vmatpush1.xpose.msra.mxu0 0.0
        %4691 = vmatprep.subr.mxu0 0.0
        %4692 = vmatpush1.xpose.msra.mxu0 0.0
        %4693 = vmatprep.subr.mxu0 0.0
        %4694 = vmatpush1.xpose.msra.mxu0 0.0
        %4695 = vmatprep.subr.mxu0 0.0
        %4696 = vmatpush1.xpose.msra.mxu0 0.0
        %4697 = vmatprep.subr.mxu0 0.0
        %4698 = vmatpush1.xpose.msra.mxu0 0.0
        %4699 = vmatprep.subr.mxu0 0.0
        %4700 = vmatpush1.xpose.msra.mxu0 0.0
        %4701 = vmatprep.subr.mxu0 0.0
        %4702 = vmatpush1.xpose.msra.mxu0 0.0
        %4703 = vmatprep.subr.mxu0 0.0
        %4704 = vmatpush1.xpose.msra.mxu0 0.0
        %4705 = vmatprep.mubr.f32.mxu0 0.0
        %4706 = vmatmul.mubr.f32.gmra.mrb[0].mxu0 %v4621
        %v4707 = vpop.f32.mrb[0].mxu0
        %v4708 = vadd.f32 0.0, %v4707
        %v4709 = vpop.f32.mrb[0].mxu0
        %4710 = vmatprep.mubr.f32.mxu0 0.0
        %4711 = vmatmul.mubr.f32.gmra.mrb[0].mxu0 %v4623
        %v4712 = vpop.f32.mrb[0].mxu0
        %v4713 = vadd.f32 0.0, %v4712
        %v4714 = vpop.f32.mrb[0].mxu0
        %4715 = vmatprep.mubr.f32.mxu0 0.0
        %4716 = vmatmul.mubr.f32.gmra.mrb[0].mxu0 %v4625
        %v4717 = vpop.f32.mrb[0].mxu0
        %v4718 = vadd.f32 0.0, %v4717
        %v4719 = vpop.f32.mrb[0].mxu0
        %4720 = vmatprep.mubr.f32.mxu0 0.0
        %4721 = vmatmul.mubr.f32.gmra.mrb[0].mxu0 %v4627
        %v4722 = vpop.f32.mrb[0].mxu0
        %v4723 = vadd.f32 0.0, %v4722
        %v4724 = vpop.f32.mrb[0].mxu0
        %4725 = vmatprep.mubr.f32.mxu0 0.0
        %4726 = vmatmul.mubr.f32.gmra.mrb[0].mxu0 %v4629
        %v4727 = vpop.f32.mrb[0].mxu0
        %v4728 = vadd.f32 0.0, %v4727
        %v4729 = vpop.f32.mrb[0].mxu0
        %4730 = vmatprep.mubr.f32.mxu0 0.0
        %4731 = vmatmul.mubr.f32.gmra.mrb[0].mxu0 %v4631
        %v4732 = vpop.f32.mrb[0].mxu0
        %v4733 = vadd.f32 0.0, %v4732
        %v4734 = vpop.f32.mrb[0].mxu0
        %4735 = vmatprep.mubr.f32.mxu0 0.0
        %4736 = vmatmul.mubr.f32.gmra.mrb[0].mxu0 %v4633
        %v4737 = vpop.f32.mrb[0].mxu0
        %v4738 = vadd.f32 0.0, %v4737
        %v4739 = vpop.f32.mrb[0].mxu0
        %4740 = vmatprep.mubr.f32.mxu0 0.0
        %4741 = vmatmul.mubr.f32.gmra.mrb[0].mxu0 %v4635
        %v4742 = vpop.f32.mrb[0].mxu0
        %v4743 = vadd.f32 0.0, %v4742
        %v4744 = vpop.f32.mrb[0].mxu0
        %4745 = vdwg.mxu0
        %v4746 = vmul.f32 %v4708, 0.17677669
        %v4747 = vmul.f32 %v4713, 0.17677669
        %v4748 = vmul.f32 %v4718, 0.17677669
        %v4749 = vmul.f32 %v4723, 0.17677669
        %v4750 = vmul.f32 %v4728, 0.17677669
        %v4751 = vmul.f32 %v4733, 0.17677669
        %v4752 = vmul.f32 %v4738, 0.17677669
        %v4753 = vmul.f32 %v4743, 0.17677669
        %v4754 = vsel %vm2869, %v4746, -inf
        %4755 = vmax.xlane.f32.xlu0 %v4754
        %v4756 = vpop.xlane.xlu0 %4755
        %v4757 = vsel %vm2869, %v4747, -inf
        %4758 = vmax.xlane.f32.xlu0 %v4757
        %v4759 = vpop.xlane.xlu0 %4758
        %v4760 = vsel %vm2869, %v4748, -inf
        %4761 = vmax.xlane.f32.xlu0 %v4760
        %v4762 = vpop.xlane.xlu0 %4761
        %v4763 = vsel %vm2869, %v4749, -inf
        %4764 = vmax.xlane.f32.xlu0 %v4763
        %v4765 = vpop.xlane.xlu0 %4764
        %v4766 = vsel %vm2869, %v4750, -inf
        %4767 = vmax.xlane.f32.xlu0 %v4766
        %v4768 = vpop.xlane.xlu0 %4767
        %v4769 = vsel %vm2869, %v4751, -inf
        %4770 = vmax.xlane.f32.xlu0 %v4769
        %v4771 = vpop.xlane.xlu0 %4770
        %v4772 = vsel %vm2869, %v4752, -inf
        %4773 = vmax.xlane.f32.xlu0 %v4772
        %v4774 = vpop.xlane.xlu0 %4773
        %v4775 = vsel %vm2869, %v4753, -inf
        %4776 = vmax.xlane.f32.xlu0 %v4775
        %v4777 = vpop.xlane.xlu0 %4776
        %v4778 = vsub.f32 %v4746, %v4756
        %v4779 = vsub.f32 %v4747, %v4759
        %v4780 = vsub.f32 %v4748, %v4762
        %v4781 = vsub.f32 %v4749, %v4765
        %v4782 = vsub.f32 %v4750, %v4768
        %v4783 = vsub.f32 %v4751, %v4771
        %v4784 = vsub.f32 %v4752, %v4774
        %v4785 = vsub.f32 %v4753, %v4777
        %v4786 = vmul.f32 %v4778, 1.442695
        %v4787 = vpow.pop %v4786
        %v4788 = vmul.f32 %v4779, 1.442695
        %v4789 = vpow.pop %v4788
        %v4790 = vmul.f32 %v4780, 1.442695
        %v4791 = vpow.pop %v4790
        %v4792 = vmul.f32 %v4781, 1.442695
        %v4793 = vpow.pop %v4792
        %v4794 = vmul.f32 %v4782, 1.442695
        %v4795 = vpow.pop %v4794
        %v4796 = vmul.f32 %v4783, 1.442695
        %v4797 = vpow.pop %v4796
        %v4798 = vmul.f32 %v4784, 1.442695
        %v4799 = vpow.pop %v4798
        %v4800 = vmul.f32 %v4785, 1.442695
        %v4801 = vpow.pop %v4800
        %v4802 = vsel %vm2869, %v4787, 0.0
        %4803 = vadd.xlane.f32.xlu0 %v4802
        %v4804 = vpop.xlane.xlu0 %4803
        %v4805 = vsel %vm2869, %v4789, 0.0
        %4806 = vadd.xlane.f32.xlu0 %v4805
        %v4807 = vpop.xlane.xlu0 %4806
        %v4808 = vsel %vm2869, %v4791, 0.0
        %4809 = vadd.xlane.f32.xlu0 %v4808
        %v4810 = vpop.xlane.xlu0 %4809
        %v4811 = vsel %vm2869, %v4793, 0.0
        %4812 = vadd.xlane.f32.xlu0 %v4811
        %v4813 = vpop.xlane.xlu0 %4812
        %v4814 = vsel %vm2869, %v4795, 0.0
        %4815 = vadd.xlane.f32.xlu0 %v4814
        %v4816 = vpop.xlane.xlu0 %4815
        %v4817 = vsel %vm2869, %v4797, 0.0
        %4818 = vadd.xlane.f32.xlu0 %v4817
        %v4819 = vpop.xlane.xlu0 %4818
        %v4820 = vsel %vm2869, %v4799, 0.0
        %4821 = vadd.xlane.f32.xlu0 %v4820
        %v4822 = vpop.xlane.xlu0 %4821
        %v4823 = vsel %vm2869, %v4801, 0.0
        %4824 = vadd.xlane.f32.xlu0 %v4823
        %v4825 = vpop.xlane.xlu0 %4824
        %v4826 = vrcp.pop %v4804
        %v4827 = vmul.f32 %v4787, %v4826
        %v4828 = vrcp.pop %v4807
        %v4829 = vmul.f32 %v4789, %v4828
        %v4830 = vrcp.pop %v4810
        %v4831 = vmul.f32 %v4791, %v4830
        %v4832 = vrcp.pop %v4813
        %v4833 = vmul.f32 %v4793, %v4832
        %v4834 = vrcp.pop %v4816
        %v4835 = vmul.f32 %v4795, %v4834
        %v4836 = vrcp.pop %v4819
        %v4837 = vmul.f32 %v4797, %v4836
        %v4838 = vrcp.pop %v4822
        %v4839 = vmul.f32 %v4799, %v4838
        %v4840 = vrcp.pop %v4825
        %v4841 = vmul.f32 %v4801, %v4840
        %4842 = vrot.lane.b32.xlu0 %v2472, 104
        %v4843 = vpop.permute.xlu0 %4842
        %4844 = vrot.lane.b32.xlu0 %v2477, 104
        %v4845 = vpop.permute.xlu0 %4844
        %v4849 = vsel %vm2869, %v4827, 0
        %v4852 = vsel %vm2869, %v4829, 0
        %v4855 = vsel %vm2869, %v4831, 0
        %v4858 = vsel %vm2869, %v4833, 0
        %v4861 = vsel %vm2869, %v4835, 0
        %v4864 = vsel %vm2869, %v4837, 0
        %v4867 = vsel %vm2869, %v4839, 0
        %v4870 = vsel %vm2869, %v4841, 0
        %4872 = vmatprep.subr.mxu0 0.0
        %4873 = vmatpush1.msra.mxu0 %v4502
        %4874 = vmatprep.subr.mxu0 0.0
        %4875 = vmatpush1.msra.mxu0 %v4843
        %4876 = vmatprep.subr.mxu0 0.0
        %4877 = vmatpush1.msra.mxu0 %v4845
        %4878 = vmatprep.subr.mxu0 0.0
        %4879 = vmatpush1.msra.mxu0 0.0
        %4880 = vmatprep.subr.mxu0 0.0
        %4881 = vmatpush1.msra.mxu0 0.0
        %4882 = vmatprep.subr.mxu0 0.0
        %4883 = vmatpush1.msra.mxu0 0.0
        %4884 = vmatprep.subr.mxu0 0.0
        %4885 = vmatpush1.msra.mxu0 0.0
        %4886 = vmatprep.subr.mxu0 0.0
        %4887 = vmatpush1.msra.mxu0 0.0
        %4888 = vmatprep.subr.mxu0 0.0
        %4889 = vmatpush1.msra.mxu0 0.0
        %4890 = vmatprep.subr.mxu0 0.0
        %4891 = vmatpush1.msra.mxu0 0.0
        %4892 = vmatprep.subr.mxu0 0.0
        %4893 = vmatpush1.msra.mxu0 0.0
        %4894 = vmatprep.subr.mxu0 0.0
        %4895 = vmatpush1.msra.mxu0 0.0
        %4896 = vmatprep.subr.mxu0 0.0
        %4897 = vmatpush1.msra.mxu0 0.0
        %4898 = vmatprep.subr.mxu0 0.0
        %4899 = vmatpush1.msra.mxu0 0.0
        %4900 = vmatprep.subr.mxu0 0.0
        %4901 = vmatpush1.msra.mxu0 0.0
        %4902 = vmatprep.subr.mxu0 0.0
        %4903 = vmatpush1.msra.mxu0 0.0
        %4904 = vmatprep.subr.mxu0 0.0
        %4905 = vmatpush1.msra.mxu0 0.0
        %4906 = vmatprep.subr.mxu0 0.0
        %4907 = vmatpush1.msra.mxu0 0.0
        %4908 = vmatprep.subr.mxu0 0.0
        %4909 = vmatpush1.msra.mxu0 0.0
        %4910 = vmatprep.subr.mxu0 0.0
        %4911 = vmatpush1.msra.mxu0 0.0
        %4912 = vmatprep.subr.mxu0 0.0
        %4913 = vmatpush1.msra.mxu0 0.0
        %4914 = vmatprep.subr.mxu0 0.0
        %4915 = vmatpush1.msra.mxu0 0.0
        %4916 = vmatprep.subr.mxu0 0.0
        %4917 = vmatpush1.msra.mxu0 0.0
        %4918 = vmatprep.subr.mxu0 0.0
        %4919 = vmatpush1.msra.mxu0 0.0
        %4920 = vmatprep.subr.mxu0 0.0
        %4921 = vmatpush1.msra.mxu0 0.0
        %4922 = vmatprep.subr.mxu0 0.0
        %4923 = vmatpush1.msra.mxu0 0.0
        %4924 = vmatprep.subr.mxu0 0.0
        %4925 = vmatpush1.msra.mxu0 0.0
        %4926 = vmatprep.subr.mxu0 0.0
        %4927 = vmatpush1.msra.mxu0 0.0
        %4928 = vmatprep.subr.mxu0 0.0
        %4929 = vmatpush1.msra.mxu0 0.0
        %4930 = vmatprep.subr.mxu0 0.0
        %4931 = vmatpush1.msra.mxu0 0.0
        %4932 = vmatprep.subr.mxu0 0.0
        %4933 = vmatpush1.msra.mxu0 0.0
        %4934 = vmatprep.subr.mxu0 0.0
        %4935 = vmatpush1.msra.mxu0 0.0
        %4936 = vmatprep.mubr.f32.mxu0 0.0
        %4937 = vmatmul.mubr.f32.gmra.mrb[0].mxu0 %v4849
        %v4938 = vpop.f32.mrb[0].mxu0
        %v4939 = vadd.f32 0.0, %v4938
        %v4940 = vpop.f32.mrb[0].mxu0
        %4941 = vmatprep.mubr.f32.mxu0 0.0
        %4942 = vmatmul.mubr.f32.gmra.mrb[0].mxu0 %v4852
        %v4943 = vpop.f32.mrb[0].mxu0
        %v4944 = vadd.f32 0.0, %v4943
        %v4945 = vpop.f32.mrb[0].mxu0
        %4946 = vmatprep.mubr.f32.mxu0 0.0
        %4947 = vmatmul.mubr.f32.gmra.mrb[0].mxu0 %v4855
        %v4948 = vpop.f32.mrb[0].mxu0
        %v4949 = vadd.f32 0.0, %v4948
        %v4950 = vpop.f32.mrb[0].mxu0
        %4951 = vmatprep.mubr.f32.mxu0 0.0
        %4952 = vmatmul.mubr.f32.gmra.mrb[0].mxu0 %v4858
        %v4953 = vpop.f32.mrb[0].mxu0
        %v4954 = vadd.f32 0.0, %v4953
        %v4955 = vpop.f32.mrb[0].mxu0
        %4956 = vmatprep.mubr.f32.mxu0 0.0
        %4957 = vmatmul.mubr.f32.gmra.mrb[0].mxu0 %v4861
        %v4958 = vpop.f32.mrb[0].mxu0
        %v4959 = vadd.f32 0.0, %v4958
        %v4960 = vpop.f32.mrb[0].mxu0
        %4961 = vmatprep.mubr.f32.mxu0 0.0
        %4962 = vmatmul.mubr.f32.gmra.mrb[0].mxu0 %v4864
        %v4963 = vpop.f32.mrb[0].mxu0
        %v4964 = vadd.f32 0.0, %v4963
        %v4965 = vpop.f32.mrb[0].mxu0
        %4966 = vmatprep.mubr.f32.mxu0 0.0
        %4967 = vmatmul.mubr.f32.gmra.mrb[0].mxu0 %v4867
        %v4968 = vpop.f32.mrb[0].mxu0
        %v4969 = vadd.f32 0.0, %v4968
        %v4970 = vpop.f32.mrb[0].mxu0
        %4971 = vmatprep.mubr.f32.mxu0 0.0
        %4972 = vmatmul.mubr.f32.gmra.mrb[0].mxu0 %v4870
        %v4973 = vpop.f32.mrb[0].mxu0
        %v4974 = vadd.f32 0.0, %v4973
        %v4975 = vpop.f32.mrb[0].mxu0
        %4976 = vdwg.mxu0
        %4989 = vrot.lane.b32.xlu0 %v3323, 8
        %v4990 = vpop.permute.xlu0 %4989
        %4991 = vrot.lane.b32.xlu0 %v3328, 8
        %v4992 = vpop.permute.xlu0 %4991
        %4993 = vrot.lane.b32.xlu0 %v3333, 8
        %v4994 = vpop.permute.xlu0 %4993
        %4995 = vrot.lane.b32.xlu0 %v3338, 8
        %v4996 = vpop.permute.xlu0 %4995
        %4997 = vrot.lane.b32.xlu0 %v3681, 8
        %v4998 = vpop.permute.xlu0 %4997
        %4999 = vrot.lane.b32.xlu0 %v3686, 8
        %v5000 = vpop.permute.xlu0 %4999
        %5001 = vrot.lane.b32.xlu0 %v3691, 8
        %v5002 = vpop.permute.xlu0 %5001
        %5003 = vrot.lane.b32.xlu0 %v3696, 8
        %v5004 = vpop.permute.xlu0 %5003
        %5005 = vrot.lane.b32.xlu0 %v3701, 8
        %v5006 = vpop.permute.xlu0 %5005
        %5007 = vrot.lane.b32.xlu0 %v3706, 8
        %v5008 = vpop.permute.xlu0 %5007
        %5009 = vrot.lane.b32.xlu0 %v3711, 8
        %v5010 = vpop.permute.xlu0 %5009
        %5011 = vrot.lane.b32.xlu0 %v3716, 8
        %v5012 = vpop.permute.xlu0 %5011
        %5037 = vrot.lane.b32.xlu0 %v3954, 16
        %v5038 = vpop.permute.xlu0 %5037
        %5039 = vrot.lane.b32.xlu0 %v3959, 16
        %v5040 = vpop.permute.xlu0 %5039
        %5041 = vrot.lane.b32.xlu0 %v3964, 16
        %v5042 = vpop.permute.xlu0 %5041
        %5043 = vrot.lane.b32.xlu0 %v3969, 16
        %v5044 = vpop.permute.xlu0 %5043
        %5045 = vrot.lane.b32.xlu0 %v4310, 16
        %v5046 = vpop.permute.xlu0 %5045
        %5047 = vrot.lane.b32.xlu0 %v4315, 16
        %v5048 = vpop.permute.xlu0 %5047
        %5049 = vrot.lane.b32.xlu0 %v4320, 16
        %v5050 = vpop.permute.xlu0 %5049
        %5051 = vrot.lane.b32.xlu0 %v4325, 16
        %v5052 = vpop.permute.xlu0 %5051
        %5053 = vrot.lane.b32.xlu0 %v4330, 16
        %v5054 = vpop.permute.xlu0 %5053
        %5055 = vrot.lane.b32.xlu0 %v4335, 16
        %v5056 = vpop.permute.xlu0 %5055
        %5057 = vrot.lane.b32.xlu0 %v4340, 16
        %v5058 = vpop.permute.xlu0 %5057
        %5059 = vrot.lane.b32.xlu0 %v4345, 16
        %v5060 = vpop.permute.xlu0 %5059
        %5085 = vrot.lane.b32.xlu0 %v4583, 24
        %v5086 = vpop.permute.xlu0 %5085
        %5087 = vrot.lane.b32.xlu0 %v4588, 24
        %v5088 = vpop.permute.xlu0 %5087
        %5089 = vrot.lane.b32.xlu0 %v4593, 24
        %v5090 = vpop.permute.xlu0 %5089
        %5091 = vrot.lane.b32.xlu0 %v4598, 24
        %v5092 = vpop.permute.xlu0 %5091
        %5093 = vrot.lane.b32.xlu0 %v4939, 24
        %v5094 = vpop.permute.xlu0 %5093
        %5095 = vrot.lane.b32.xlu0 %v4944, 24
        %v5096 = vpop.permute.xlu0 %5095
        %5097 = vrot.lane.b32.xlu0 %v4949, 24
        %v5098 = vpop.permute.xlu0 %5097
        %5099 = vrot.lane.b32.xlu0 %v4954, 24
        %v5100 = vpop.permute.xlu0 %5099
        %5101 = vrot.lane.b32.xlu0 %v4959, 24
        %v5102 = vpop.permute.xlu0 %5101
        %5103 = vrot.lane.b32.xlu0 %v4964, 24
        %v5104 = vpop.permute.xlu0 %5103
        %5105 = vrot.lane.b32.xlu0 %v4969, 24
        %v5106 = vpop.permute.xlu0 %5105
        %5107 = vrot.lane.b32.xlu0 %v4974, 24
        %v5108 = vpop.permute.xlu0 %5107
        %v5121 = vsel %vm2480, %v2708, %v4990
        %v5122 = vsel %vm2480, %v2713, %v4992
        %v5123 = vsel %vm2480, %v2718, %v4994
        %v5124 = vsel %vm2480, %v2723, %v4996
        %v5125 = vsel %vm2480, %v3049, %v4998
        %v5126 = vsel %vm2480, %v3054, %v5000
        %v5127 = vsel %vm2480, %v3059, %v5002
        %v5128 = vsel %vm2480, %v3064, %v5004
        %v5129 = vsel %vm2480, %v3069, %v5006
        %v5130 = vsel %vm2480, %v3074, %v5008
        %v5131 = vsel %vm2480, %v3079, %v5010
        %v5132 = vsel %vm2480, %v3084, %v5012
        %vm5133 = vcmask 130048
        %v5134 = vsel %vm5133, %v5121, %v5038
        %v5135 = vsel %vm5133, %v5122, %v5040
        %v5136 = vsel %vm5133, %v5123, %v5042
        %v5137 = vsel %vm5133, %v5124, %v5044
        %v5138 = vsel %vm5133, %v5125, %v5046
        %v5139 = vsel %vm5133, %v5126, %v5048
        %v5140 = vsel %vm5133, %v5127, %v5050
        %v5141 = vsel %vm5133, %v5128, %v5052
        %v5142 = vsel %vm5133, %v5129, %v5054
        %v5143 = vsel %vm5133, %v5130, %v5056
        %v5144 = vsel %vm5133, %v5131, %v5058
        %v5145 = vsel %vm5133, %v5132, %v5060
        %v5146 = vsel %vm2869, %v5134, %v5086
        %v5147 = vsel %vm2869, %v5135, %v5088
        %v5148 = vsel %vm2869, %v5136, %v5090
        %v5149 = vsel %vm2869, %v5137, %v5092
        %v5150 = vsel %vm2869, %v5138, %v5094
        %v5151 = vsel %vm2869, %v5139, %v5096
        %v5152 = vsel %vm2869, %v5140, %v5098
        %v5153 = vsel %vm2869, %v5141, %v5100
        %v5154 = vsel %vm2869, %v5142, %v5102
        %v5155 = vsel %vm2869, %v5143, %v5104
        %v5156 = vsel %vm2869, %v5144, %v5106
        %v5157 = vsel %vm2869, %v5145, %v5108
        %v5158 = vld [vmem:[%s6] sm:$0xff]
        %v5159 = vld [vmem:[%s6 + $0x8] sm:$0xff]
        %v5160 = vld [vmem:[%s6 + $0x10] sm:$0xff]
        %v5161 = vld [vmem:[%s6 + $0x18] sm:$0xff]
        %v5162 = vld [vmem:[%s7] sm:$0x1]
        %v5164 = vlaneseq
        %v5165 = vshrl.u32 %v5164, 7
        %v5166 = vsub.s32 0, %v5165
        %v5167 = vrot.slane %v5162, %v5166
        %v5170 = vsel %vm2132, %v5146, 0
        %v5173 = vsel %vm2132, %v5147, 0
        %v5176 = vsel %vm2132, %v5148, 0
        %v5179 = vsel %vm2132, %v5149, 0
        %v5182 = vsel %vm2132, %v5150, 0
        %v5185 = vsel %vm2132, %v5151, 0
        %v5188 = vsel %vm2132, %v5152, 0
        %v5191 = vsel %vm2132, %v5153, 0
        %v5194 = vsel %vm2132, %v5154, 0
        %v5197 = vsel %vm2132, %v5155, 0
        %v5200 = vsel %vm2132, %v5156, 0
        %v5203 = vsel %vm2132, %v5157, 0
        %5205 = vmatprep.subr.mxu0 0.0
        %5206 = vmatpush1.msra.mxu0 %v5158
        %5207 = vmatprep.subr.mxu0 0.0
        %5208 = vmatpush1.msra.mxu0 %v5159
        %5209 = vmatprep.subr.mxu0 0.0
        %5210 = vmatpush1.msra.mxu0 %v5160
        %5211 = vmatprep.subr.mxu0 0.0
        %5212 = vmatpush1.msra.mxu0 %v5161
        %5213 = vmatprep.subr.mxu0 0.0
        %5214 = vmatpush1.msra.mxu0 0.0
        %5215 = vmatprep.subr.mxu0 0.0
        %5216 = vmatpush1.msra.mxu0 0.0
        %5217 = vmatprep.subr.mxu0 0.0
        %5218 = vmatpush1.msra.mxu0 0.0
        %5219 = vmatprep.subr.mxu0 0.0
        %5220 = vmatpush1.msra.mxu0 0.0
        %5221 = vmatprep.subr.mxu0 0.0
        %5222 = vmatpush1.msra.mxu0 0.0
        %5223 = vmatprep.subr.mxu0 0.0
        %5224 = vmatpush1.msra.mxu0 0.0
        %5225 = vmatprep.subr.mxu0 0.0
        %5226 = vmatpush1.msra.mxu0 0.0
        %5227 = vmatprep.subr.mxu0 0.0
        %5228 = vmatpush1.msra.mxu0 0.0
        %5229 = vmatprep.subr.mxu0 0.0
        %5230 = vmatpush1.msra.mxu0 0.0
        %5231 = vmatprep.subr.mxu0 0.0
        %5232 = vmatpush1.msra.mxu0 0.0
        %5233 = vmatprep.subr.mxu0 0.0
        %5234 = vmatpush1.msra.mxu0 0.0
        %5235 = vmatprep.subr.mxu0 0.0
        %5236 = vmatpush1.msra.mxu0 0.0
        %5237 = vmatprep.subr.mxu0 0.0
        %5238 = vmatpush1.msra.mxu0 0.0
        %5239 = vmatprep.subr.mxu0 0.0
        %5240 = vmatpush1.msra.mxu0 0.0
        %5241 = vmatprep.subr.mxu0 0.0
        %5242 = vmatpush1.msra.mxu0 0.0
        %5243 = vmatprep.subr.mxu0 0.0
        %5244 = vmatpush1.msra.mxu0 0.0
        %5245 = vmatprep.subr.mxu0 0.0
        %5246 = vmatpush1.msra.mxu0 0.0
        %5247 = vmatprep.subr.mxu0 0.0
        %5248 = vmatpush1.msra.mxu0 0.0
        %5249 = vmatprep.subr.mxu0 0.0
        %5250 = vmatpush1.msra.mxu0 0.0
        %5251 = vmatprep.subr.mxu0 0.0
        %5252 = vmatpush1.msra.mxu0 0.0
        %5253 = vmatprep.subr.mxu0 0.0
        %5254 = vmatpush1.msra.mxu0 0.0
        %5255 = vmatprep.subr.mxu0 0.0
        %5256 = vmatpush1.msra.mxu0 0.0
        %5257 = vmatprep.subr.mxu0 0.0
        %5258 = vmatpush1.msra.mxu0 0.0
        %5259 = vmatprep.subr.mxu0 0.0
        %5260 = vmatpush1.msra.mxu0 0.0
        %5261 = vmatprep.subr.mxu0 0.0
        %5262 = vmatpush1.msra.mxu0 0.0
        %5263 = vmatprep.subr.mxu0 0.0
        %5264 = vmatpush1.msra.mxu0 0.0
        %5265 = vmatprep.subr.mxu0 0.0
        %5266 = vmatpush1.msra.mxu0 0.0
        %5267 = vmatprep.subr.mxu0 0.0
        %5268 = vmatpush1.msra.mxu0 0.0
        %5269 = vmatprep.mubr.f32.mxu0 0.0
        %5270 = vmatmul.mubr.f32.gmra.mrb[0].mxu0 %v5170
        %v5271 = vpop.f32.mrb[0].mxu0
        %v5272 = vadd.f32 %v5167, %v5271
        %v5273 = vpop.f32.mrb[0].mxu0
        %5274 = vmatprep.mubr.f32.mxu0 0.0
        %5275 = vmatmul.mubr.f32.gmra.mrb[0].mxu0 %v5173
        %v5276 = vpop.f32.mrb[0].mxu0
        %v5277 = vadd.f32 %v5167, %v5276
        %v5278 = vpop.f32.mrb[0].mxu0
        %5279 = vmatprep.mubr.f32.mxu0 0.0
        %5280 = vmatmul.mubr.f32.gmra.mrb[0].mxu0 %v5176
        %v5281 = vpop.f32.mrb[0].mxu0
        %v5282 = vadd.f32 %v5167, %v5281
        %v5283 = vpop.f32.mrb[0].mxu0
        %5284 = vmatprep.mubr.f32.mxu0 0.0
        %5285 = vmatmul.mubr.f32.gmra.mrb[0].mxu0 %v5179
        %v5286 = vpop.f32.mrb[0].mxu0
        %v5287 = vadd.f32 %v5167, %v5286
        %v5288 = vpop.f32.mrb[0].mxu0
        %5289 = vmatprep.mubr.f32.mxu0 0.0
        %5290 = vmatmul.mubr.f32.gmra.mrb[0].mxu0 %v5182
        %v5291 = vpop.f32.mrb[0].mxu0
        %v5292 = vadd.f32 %v5167, %v5291
        %v5293 = vpop.f32.mrb[0].mxu0
        %5294 = vmatprep.mubr.f32.mxu0 0.0
        %5295 = vmatmul.mubr.f32.gmra.mrb[0].mxu0 %v5185
        %v5296 = vpop.f32.mrb[0].mxu0
        %v5297 = vadd.f32 %v5167, %v5296
        %v5298 = vpop.f32.mrb[0].mxu0
        %5299 = vmatprep.mubr.f32.mxu0 0.0
        %5300 = vmatmul.mubr.f32.gmra.mrb[0].mxu0 %v5188
        %v5301 = vpop.f32.mrb[0].mxu0
        %v5302 = vadd.f32 %v5167, %v5301
        %v5303 = vpop.f32.mrb[0].mxu0
        %5304 = vmatprep.mubr.f32.mxu0 0.0
        %5305 = vmatmul.mubr.f32.gmra.mrb[0].mxu0 %v5191
        %v5306 = vpop.f32.mrb[0].mxu0
        %v5307 = vadd.f32 %v5167, %v5306
        %v5308 = vpop.f32.mrb[0].mxu0
        %5309 = vmatprep.mubr.f32.mxu0 0.0
        %5310 = vmatmul.mubr.f32.gmra.mrb[0].mxu0 %v5194
        %v5311 = vpop.f32.mrb[0].mxu0
        %v5312 = vadd.f32 %v5167, %v5311
        %v5313 = vpop.f32.mrb[0].mxu0
        %5314 = vmatprep.mubr.f32.mxu0 0.0
        %5315 = vmatmul.mubr.f32.gmra.mrb[0].mxu0 %v5197
        %v5316 = vpop.f32.mrb[0].mxu0
        %v5317 = vadd.f32 %v5167, %v5316
        %v5318 = vpop.f32.mrb[0].mxu0
        %5319 = vmatprep.mubr.f32.mxu0 0.0
        %5320 = vmatmul.mubr.f32.gmra.mrb[0].mxu0 %v5200
        %v5321 = vpop.f32.mrb[0].mxu0
        %v5322 = vadd.f32 %v5167, %v5321
        %v5323 = vpop.f32.mrb[0].mxu0
        %5324 = vmatprep.mubr.f32.mxu0 0.0
        %5325 = vmatmul.mubr.f32.gmra.mrb[0].mxu0 %v5203
        %v5326 = vpop.f32.mrb[0].mxu0
        %v5327 = vadd.f32 %v5167, %v5326
        %v5328 = vpop.f32.mrb[0].mxu0
        %5329 = vdwg.mxu0
        %5330 = vst.msk [vmem:[%s320] sm:$0xff] %vm2132, %v5272
        %5331 = vst.msk [vmem:[%s320 + $0x8] sm:$0xff] %vm2132, %v5277
        %5332 = vst.msk [vmem:[%s320 + $0x10] sm:$0xff] %vm2132, %v5282
        %5333 = vst.msk [vmem:[%s320 + $0x18] sm:$0xff] %vm2132, %v5287
        %5334 = vst.msk [vmem:[%s320 + $0x20] sm:$0xff] %vm2132, %v5292
        %5335 = vst.msk [vmem:[%s320 + $0x28] sm:$0xff] %vm2132, %v5297
        %5336 = vst.msk [vmem:[%s320 + $0x30] sm:$0xff] %vm2132, %v5302
        %5337 = vst.msk [vmem:[%s320 + $0x38] sm:$0xff] %vm2132, %v5307
        %5338 = vst.msk [vmem:[%s320 + $0x40] sm:$0xff] %vm2132, %v5312
        %5339 = vst.msk [vmem:[%s320 + $0x48] sm:$0xff] %vm2132, %v5317
        %5340 = vst.msk [vmem:[%s320 + $0x50] sm:$0xff] %vm2132, %v5322
        %5341 = vst.msk [vmem:[%s320 + $0x58] sm:$0xff] %vm2132, %v5327
        %p5342 = scmp.lt.s32.totalorder %s20, 1
        %s5343 = scalar_select %p5342, %s20, 1
        %s5344 = smul.addr %s5343, 12
        %s5345 = smul.addr %s5344, 8
        %s5346 = scalar_lea.vmem %s8, %s5345
        // Predicated region
        $region57: #{_lambda_.1} parent=51 // pred_check
          %p5347 = pneg %p211
        $region58: #{_lambda_.1} parent=51 // pred_check_branch
          %5349 = sbr.rel (%p5347) target = $region60
        $region59: #{_lambda_.1} parent=51 // pred_region
          _
        $region60: #{_lambda_.1} parent=51 // pred_fallthru
          _
      $region52: #{_lambda_.1} parent=5 // pred_fallthru
        _
      %p5350 = scmp.le.s32.totalorder 2, %s15
      // Predicated region
      $region61: #{_lambda_.1} parent=5 // pred_check
        %p5351 = pneg %p5350
      $region62: #{_lambda_.1} parent=5 // pred_check_branch
        %5353 = sbr.rel (%p5351) target = $region64
      $region63: #{_lambda_.1} parent=5 // pred_region
        %s5354 = ssub.s32 %s15, 2
        // Predicated region
        $region65: #{_lambda_.1} parent=63 // pred_check
          %p5355 = pneg %p217
        $region66: #{_lambda_.1} parent=63 // pred_check_branch
          %5357 = sbr.rel (%p5355) target = $region68
        $region67: #{_lambda_.1} parent=63 // pred_region
          %p5358 = scmp.lt.s32.totalorder %s21, 1
          %s5359 = scalar_select %p5358, %s21, 1
          %s5360 = smul.addr %s5359, 12
          %s5361 = smul.addr %s5360, 8
          %s5362 = scalar_lea.vmem %s8, %s5361
        $region68: #{_lambda_.1} parent=63 // pred_fallthru
          _
      $region64: #{_lambda_.1} parent=5 // pred_fallthru
        _
    $region6: #{_lambda_.1} parent=1 // loop_footer
      %s19 = sadd.s32 1, %s15
    $region7: #{_lambda_.1} parent=1 // loop_footer_branch
      %14 = sbr.rel target = $region3
    $region8: #{_lambda_.1} parent=1 // loop_exit
      _
    %5363 = vsyncpa [#allocation3], 1
    %s5364 = scalar_lea.sflag [#allocation3], 1
    %5365 = vsyncpa %s5364, 1

</llo_original>
